<compile_context>
chip_gen: v6e
topology: v6e:2x2x1
jax: 0.10.0
libtpu: 0.0.40
codegen_flags: <defaults>
</compile_context>

<pallas_src>
import functools

import numpy as np
import jax
import jax.numpy as jnp
from jax.experimental import pallas as pl
from jax.experimental.pallas import tpu as pltpu

LANES = 128
NUM_CLASSES = 10
NEG_INF = -1e30
COMPUTE_DTYPE = jnp.bfloat16   # dot-operand dtype (accumulation is always f32)


# ------------------------------ fused kernel ---------------------------------

def _lenet_fused_kernel(x_ref, t1_ref, b1_ref, t2_ref, b2_ref,
                        wf1_ref, bf1_ref, wf2_ref, bf2_ref, wf3_ref, bf3_ref,
                        o_ref, *, tb):
    """Whole LeNet forward for `tb` images.

    x_ref rows are ordered (q = h%4, r = h//4, image) with lanes = w*3 + c (zero-padded to
    128), so the stride-2 (pooled) row slabs of both convs are contiguous slices."""
    x = x_ref[...]                                    # (32*tb, 128) bf16
    cdt = x.dtype

    def xslab(s):
        # image rows {4*t + s : t in [0,7)} for every image in the tile, ordered (t, image)
        q, beta = s % 4, s // 4
        start = (q * 8 + beta) * tb
        return x[start:start + 7 * tb, :]

    def conv_pool(slab, wts, bias):
        # relu(bias + max over 4 pooling parities of a row-Toeplitz matmul)
        acc = None
        for a in (0, 1):                              # output-row parity (picks the slabs)
            lhs = jnp.concatenate([slab(a + i) for i in range(5)], axis=-1)   # (M, 640)
            for wt in wts:                            # output-column parity (picks the weights)
                y = jnp.dot(lhs, wt, preferred_element_type=jnp.float32)
                acc = y if acc is None else jnp.maximum(acc, y)
        return jnp.maximum(acc + bias, 0.0).astype(cdt)

    # conv1 + ReLU + 2x2 maxpool, computed separately for even / odd pooled rows so that
    # conv2's stride-2 row slabs are contiguous.  Rows (t, image); lanes (wp1*6 + c1), 84 valid.
    t1w = (t1_ref[0], t1_ref[1])
    b1 = b1_ref[...]
    a1_even = conv_pool(xslab, t1w, b1)               # pooled rows 0,2,...,12  -> (7*tb, 128)
    a1_odd = conv_pool(lambda s: xslab(s + 2), t1w, b1)   # pooled rows 1,3,...,13

    def a1slab(s):
        # conv1 pooled rows {2*hp2 + s : hp2 in [0,5)}, ordered (hp2, image)
        src = a1_even if s % 2 == 0 else a1_odd
        u = s // 2
        return src[u * tb:(u + 5) * tb, :]

    # conv2 + ReLU + 2x2 maxpool -> (5*tb, 128): rows (hp2, image), lanes (wp2*16 + c2), 80 valid.
    a2 = conv_pool(a1slab, (t2_ref[0], t2_ref[1]), b2_ref[...])

    # fc head: gather each image's 5 pooled rows along lanes -> (tb, 640), then 3 dense layers.
    feat = jnp.concatenate([a2[h * tb:(h + 1) * tb, :] for h in range(5)], axis=-1)
    h = jnp.dot(feat, wf1_ref[...], preferred_element_type=jnp.float32) + bf1_ref[...]
    h = jnp.maximum(h, 0.0).astype(cdt)
    h = jnp.dot(h, wf2_ref[...], preferred_element_type=jnp.float32) + bf2_ref[...]
    h = jnp.maximum(h, 0.0).astype(cdt)
    logits = jnp.dot(h, wf3_ref[...], preferred_element_type=jnp.float32) + bf3_ref[...]

    # softmax; padded logit lanes carry a -1e30 bias baked into bf3, so no mask is needed.
    m = jnp.max(logits, axis=-1, keepdims=True)
    e = jnp.exp(logits - m)
    o_ref[0] = e * pl.reciprocal(jnp.sum(e, axis=-1, keepdims=True), approx=True)


# ------------------------------ wrapper ---------------------------------------

def classifier_net(x_nchw, kp, *, tb=None):
    """x_nchw: (B, 3, 32, 32) like the PyTorch module. Returns (B, 10) softmax probs."""
    B, C, H, W = x_nchw.shape
    assert (C, H, W) == (3, 32, 32), "LeNet head expects 3x32x32 inputs"

    if tb is None:
        tb = min(32, B)
        if B >= 2:
            tb = min(tb, pl.cdiv(B, 2))   # >= 2 grid steps so both v7x TensorCores are used
    nb = pl.cdiv(B, tb)
    b_pad = nb * tb

    # Zero-amplification input relayout (XLA glue): NCHW -> rows h with lanes = w*3+c (pad 128),
    # batch padded to nb*tb, then block rows ordered (q = h%4, r = h//4, image-within-tile).
    x = jnp.transpose(x_nchw, (0, 2, 3, 1)).reshape(B, 32, 96)
    x = jnp.pad(x, ((0, b_pad - B), (0, 0), (0, LANES - 96))).astype(COMPUTE_DTYPE)
    x = x.reshape(nb, tb, 8, 4, LANES).transpose(0, 3, 2, 1, 4).reshape(nb * 32 * tb, LANES)

    wspec = lambda shape: pl.BlockSpec(shape, lambda m, _s=len(shape): (0,) * _s)
    out = pl.pallas_call(
        functools.partial(_lenet_fused_kernel, tb=tb),
        out_shape=jax.ShapeDtypeStruct((nb, tb, LANES), jnp.float32),
        grid=(nb,),
        in_specs=[pl.BlockSpec((32 * tb, LANES), lambda m: (m, 0)),
                  wspec((2, 5 * LANES, LANES)), wspec((1, LANES)),
                  wspec((2, 5 * LANES, LANES)), wspec((1, LANES)),
                  wspec((5 * LANES, LANES)), wspec((1, LANES)),
                  wspec((LANES, LANES)), wspec((1, LANES)),
                  wspec((LANES, LANES)), wspec((1, LANES))],
        out_specs=pl.BlockSpec((1, tb, LANES), lambda m: (m, 0, 0)),
        compiler_params=pltpu.CompilerParams(dimension_semantics=("parallel",)),
    )(x, kp["t1"], kp["b1"], kp["t2"], kp["b2"],
      kp["wf1"], kp["bf1"], kp["wf2"], kp["bf2"], kp["wf3"], kp["bf3"])

    return out.reshape(b_pad, LANES)[:B, :NUM_CLASSES]


# ------------------------------ params / prep ---------------------------------

def make_torch_params(key):
    """Parameters in the PyTorch module's native layouts (conv OIHW, linear (out, in))."""
    ks = jax.random.split(key, 10)

    def u(k, shape, fan_in):
        bound = 1.0 / float(fan_in) ** 0.5
        return jax.random.uniform(k, shape, jnp.float32, -bound, bound)

    return {
        "conv1_w": u(ks[0], (6, 3, 5, 5), 75),   "conv1_b": u(ks[1], (6,), 75),
        "conv2_w": u(ks[2], (16, 6, 5, 5), 150), "conv2_b": u(ks[3], (16,), 150),
        "fc1_w": u(ks[4], (120, 400), 400),      "fc1_b": u(ks[5], (120,), 400),
        "fc2_w": u(ks[6], (84, 120), 120),       "fc2_b": u(ks[7], (84,), 120),
        "fc3_w": u(ks[8], (10, 84), 84),         "fc3_b": u(ks[9], (10,), 84),
    }


def prepare_params(tp, dtype=COMPUTE_DTYPE):
    """One-time host-side repack into the kernel's row-Toeplitz / lane-padded layouts."""
    w1 = np.asarray(tp["conv1_w"]); w2 = np.asarray(tp["conv2_w"])
    f1 = np.asarray(tp["fc1_w"]); f2 = np.asarray(tp["fc2_w"]); f3 = np.asarray(tp["fc3_w"])

    # conv1 row-Toeplitz: [col parity c, kernel row i, in-lane = w*3+ci, out = wp1*6 + co1]
    t1 = np.zeros((2, 5, LANES, LANES), np.float32)
    for c in range(2):
        for i in range(5):
            for wp in range(14):
                for j in range(5):
                    w = 2 * wp + c + j
                    for ci in range(3):
                        t1[c, i, 3 * w + ci, wp * 6:wp * 6 + 6] = w1[:, ci, i, j]
    b1 = np.zeros((1, LANES), np.float32)
    b1[0, :84] = np.tile(np.asarray(tp["conv1_b"]), 14)

    # conv2 row-Toeplitz: [c2, i2, in-lane = wp1*6 + co1, out = wp2*16 + co2]
    t2 = np.zeros((2, 5, LANES, LANES), np.float32)
    for c in range(2):
        for i in range(5):
            for wp2 in range(5):
                for j in range(5):
                    wp1 = 2 * wp2 + c + j
                    for co1 in range(6):
                        t2[c, i, wp1 * 6 + co1, wp2 * 16:wp2 * 16 + 16] = w2[:, co1, i, j]
    b2 = np.zeros((1, LANES), np.float32)
    b2[0, :80] = np.tile(np.asarray(tp["conv2_b"]), 5)

    # fc1: rows ordered (hp2, wp2*16 + co2) to match the kernel's pooled-feature concat order;
    # PyTorch flatten index of (16, 5, 5) is co2*25 + hp2*5 + wp2.
    wf1 = np.zeros((5, LANES, LANES), np.float32)
    for hp2 in range(5):
        for wp2 in range(5):
            for co2 in range(16):
                wf1[hp2, wp2 * 16 + co2, :120] = f1[:, co2 * 25 + hp2 * 5 + wp2]
    bf1 = np.zeros((1, LANES), np.float32); bf1[0, :120] = np.asarray(tp["fc1_b"])

    wf2 = np.zeros((LANES, LANES), np.float32); wf2[:120, :84] = f2.T
    bf2 = np.zeros((1, LANES), np.float32); bf2[0, :84] = np.asarray(tp["fc2_b"])

    wf3 = np.zeros((LANES, LANES), np.float32); wf3[:84, :NUM_CLASSES] = f3.T
    bf3 = np.full((1, LANES), NEG_INF, np.float32)   # padded logits masked via the bias itself
    bf3[0, :NUM_CLASSES] = np.asarray(tp["fc3_b"])

    jd = lambda a: jnp.asarray(a, dtype)
    jf = lambda a: jnp.asarray(a, jnp.float32)
    return {"t1": jd(t1.reshape(2, 5 * LANES, LANES)), "b1": jf(b1),
            "t2": jd(t2.reshape(2, 5 * LANES, LANES)), "b2": jf(b2),
            "wf1": jd(wf1.reshape(5 * LANES, LANES)), "bf1": jf(bf1),
            "wf2": jd(wf2), "bf2": jf(bf2),
            "wf3": jd(wf3), "bf3": jf(bf3)}


# ------------------------------ main ------------------------------------------

if __name__ == "__main__":
    root = jax.random.PRNGKey(0)
    pkey, xkey = jax.random.split(root)
    kparams = prepare_params(make_torch_params(pkey))

    # fc1 expects 16*5*5 features -> 3x32x32 input (LeNet/CIFAR), NCHW like PyTorch.
    x = jax.random.normal(xkey, (2, 3, 32, 32), jnp.float32)

    fwd = jax.jit(classifier_net)
    out = jax.block_until_ready(fwd(x, kparams))

    assert out.shape == (2, NUM_CLASSES)
    assert bool(jnp.all(jnp.isfinite(out)))
    assert bool(jnp.all(out >= 0.0))
    # approx-reciprocal softmax: rows sum to 1 up to the EUP rcp error (+ bf16 operands)
    assert bool(jnp.all(jnp.abs(jnp.sum(out, axis=-1) - 1.0) < 2e-2))
    print("KERNEL_OK")
</pallas_src>

<mosaic_0001>
module attributes {stable_mosaic.version = 11 : i64} {
  func.func @_lenet_fused_kernel(%arg0: i32, %arg1: memref<32x128xbf16, #tpu.memory_space<vmem>>, %arg2: memref<2x640x128xbf16, #tpu.memory_space<vmem>>, %arg3: memref<1x128xf32, #tpu.memory_space<vmem>>, %arg4: memref<2x640x128xbf16, #tpu.memory_space<vmem>>, %arg5: memref<1x128xf32, #tpu.memory_space<vmem>>, %arg6: memref<640x128xbf16, #tpu.memory_space<vmem>>, %arg7: memref<1x128xf32, #tpu.memory_space<vmem>>, %arg8: memref<128x128xbf16, #tpu.memory_space<vmem>>, %arg9: memref<1x128xf32, #tpu.memory_space<vmem>>, %arg10: memref<128x128xbf16, #tpu.memory_space<vmem>>, %arg11: memref<1x128xf32, #tpu.memory_space<vmem>>, %arg12: memref<1x1x128xf32, #tpu.memory_space<vmem>>) attributes {dimension_semantics = [#tpu.dimension_semantics<parallel>], iteration_bounds = array<i64: 2>, scalar_prefetch = 0 : i64, scratch_operands = 0 : i64, tpu.core_type = #tpu.core_type<tc>, window_params = [{transform_indices = @transform_0, window_bounds = array<i64: 32, 128>}, {pipeline_mode = #tpu.pipeline_mode<synchronous>, transform_indices = @transform_1, window_bounds = array<i64: 2, 640, 128>}, {pipeline_mode = #tpu.pipeline_mode<synchronous>, transform_indices = @transform_2, window_bounds = array<i64: 1, 128>}, {pipeline_mode = #tpu.pipeline_mode<synchronous>, transform_indices = @transform_3, window_bounds = array<i64: 2, 640, 128>}, {pipeline_mode = #tpu.pipeline_mode<synchronous>, transform_indices = @transform_4, window_bounds = array<i64: 1, 128>}, {pipeline_mode = #tpu.pipeline_mode<synchronous>, transform_indices = @transform_5, window_bounds = array<i64: 640, 128>}, {pipeline_mode = #tpu.pipeline_mode<synchronous>, transform_indices = @transform_6, window_bounds = array<i64: 1, 128>}, {pipeline_mode = #tpu.pipeline_mode<synchronous>, transform_indices = @transform_7, window_bounds = array<i64: 128, 128>}, {pipeline_mode = #tpu.pipeline_mode<synchronous>, transform_indices = @transform_8, window_bounds = array<i64: 1, 128>}, {pipeline_mode = #tpu.pipeline_mode<synchronous>, transform_indices = @transform_9, window_bounds = array<i64: 128, 128>}, {pipeline_mode = #tpu.pipeline_mode<synchronous>, transform_indices = @transform_10, window_bounds = array<i64: 1, 128>}, {transform_indices = @transform_11, window_bounds = array<i64: 1, 1, 128>}]} {
    %c0 = arith.constant 0 : index
    %c0_0 = arith.constant 0 : index
    %0 = vector.load %arg1[%c0, %c0_0] : memref<32x128xbf16, #tpu.memory_space<vmem>>, vector<32x128xbf16>
    %c0_1 = arith.constant 0 : index
    %c0_2 = arith.constant 0 : index
    %c0_3 = arith.constant 0 : index
    %1 = vector.load %arg2[%c0_1, %c0_2, %c0_3] : memref<2x640x128xbf16, #tpu.memory_space<vmem>>, vector<1x640x128xbf16>
    %2 = vector.shape_cast %1 : vector<1x640x128xbf16> to vector<640x128xbf16>
    %c1 = arith.constant 1 : index
    %c0_4 = arith.constant 0 : index
    %c0_5 = arith.constant 0 : index
    %3 = vector.load %arg2[%c1, %c0_4, %c0_5] : memref<2x640x128xbf16, #tpu.memory_space<vmem>>, vector<1x640x128xbf16>
    %4 = vector.shape_cast %3 : vector<1x640x128xbf16> to vector<640x128xbf16>
    %c0_6 = arith.constant 0 : index
    %c0_7 = arith.constant 0 : index
    %5 = vector.load %arg3[%c0_6, %c0_7] : memref<1x128xf32, #tpu.memory_space<vmem>>, vector<1x128xf32>
    %6 = vector.extract_strided_slice %0 {offsets = [0, 0], sizes = [7, 128], strides = [1, 1]} : vector<32x128xbf16> to vector<7x128xbf16>
    %7 = vector.extract_strided_slice %0 {offsets = [8, 0], sizes = [7, 128], strides = [1, 1]} : vector<32x128xbf16> to vector<7x128xbf16>
    %8 = vector.extract_strided_slice %0 {offsets = [16, 0], sizes = [7, 128], strides = [1, 1]} : vector<32x128xbf16> to vector<7x128xbf16>
    %9 = vector.extract_strided_slice %0 {offsets = [24, 0], sizes = [7, 128], strides = [1, 1]} : vector<32x128xbf16> to vector<7x128xbf16>
    %10 = vector.extract_strided_slice %0 {offsets = [1, 0], sizes = [7, 128], strides = [1, 1]} : vector<32x128xbf16> to vector<7x128xbf16>
    %11 = tpu.concatenate %6, %7, %8, %9, %10 in 1 : vector<7x128xbf16>, vector<7x128xbf16>, vector<7x128xbf16>, vector<7x128xbf16>, vector<7x128xbf16> -> vector<7x640xbf16>
    %cst = arith.constant dense<0.000000e+00> : vector<7x128xf32>
    %12 = tpu.matmul %11, %2, %cst {dimension_numbers = #tpu.dot_dimension_numbers<[1], [0], [0], [1], [0, 0, 1, 1], [], []>} : vector<7x640xbf16>, vector<640x128xbf16>, vector<7x128xf32> -> vector<7x128xf32>
    %cst_8 = arith.constant dense<0.000000e+00> : vector<7x128xf32>
    %13 = tpu.matmul %11, %4, %cst_8 {dimension_numbers = #tpu.dot_dimension_numbers<[1], [0], [0], [1], [0, 0, 1, 1], [], []>} : vector<7x640xbf16>, vector<640x128xbf16>, vector<7x128xf32> -> vector<7x128xf32>
    %14 = arith.maximumf %12, %13 : vector<7x128xf32>
    %15 = vector.extract_strided_slice %0 {offsets = [8, 0], sizes = [7, 128], strides = [1, 1]} : vector<32x128xbf16> to vector<7x128xbf16>
    %16 = vector.extract_strided_slice %0 {offsets = [16, 0], sizes = [7, 128], strides = [1, 1]} : vector<32x128xbf16> to vector<7x128xbf16>
    %17 = vector.extract_strided_slice %0 {offsets = [24, 0], sizes = [7, 128], strides = [1, 1]} : vector<32x128xbf16> to vector<7x128xbf16>
    %18 = vector.extract_strided_slice %0 {offsets = [1, 0], sizes = [7, 128], strides = [1, 1]} : vector<32x128xbf16> to vector<7x128xbf16>
    %19 = vector.extract_strided_slice %0 {offsets = [9, 0], sizes = [7, 128], strides = [1, 1]} : vector<32x128xbf16> to vector<7x128xbf16>
    %20 = tpu.concatenate %15, %16, %17, %18, %19 in 1 : vector<7x128xbf16>, vector<7x128xbf16>, vector<7x128xbf16>, vector<7x128xbf16>, vector<7x128xbf16> -> vector<7x640xbf16>
    %cst_9 = arith.constant dense<0.000000e+00> : vector<7x128xf32>
    %21 = tpu.matmul %20, %2, %cst_9 {dimension_numbers = #tpu.dot_dimension_numbers<[1], [0], [0], [1], [0, 0, 1, 1], [], []>} : vector<7x640xbf16>, vector<640x128xbf16>, vector<7x128xf32> -> vector<7x128xf32>
    %22 = arith.maximumf %14, %21 : vector<7x128xf32>
    %cst_10 = arith.constant dense<0.000000e+00> : vector<7x128xf32>
    %23 = tpu.matmul %20, %4, %cst_10 {dimension_numbers = #tpu.dot_dimension_numbers<[1], [0], [0], [1], [0, 0, 1, 1], [], []>} : vector<7x640xbf16>, vector<640x128xbf16>, vector<7x128xf32> -> vector<7x128xf32>
    %24 = arith.maximumf %22, %23 : vector<7x128xf32>
    %25 = vector.broadcast %5 : vector<1x128xf32> to vector<7x128xf32>
    %26 = arith.addf %24, %25 : vector<7x128xf32>
    %cst_11 = arith.constant 0.000000e+00 : f32
    %27 = vector.broadcast %cst_11 : f32 to vector<7x128xf32>
    %28 = arith.maximumf %26, %27 : vector<7x128xf32>
    %29 = arith.truncf %28 : vector<7x128xf32> to vector<7x128xbf16>
    %30 = vector.extract_strided_slice %0 {offsets = [16, 0], sizes = [7, 128], strides = [1, 1]} : vector<32x128xbf16> to vector<7x128xbf16>
    %31 = vector.extract_strided_slice %0 {offsets = [24, 0], sizes = [7, 128], strides = [1, 1]} : vector<32x128xbf16> to vector<7x128xbf16>
    %32 = vector.extract_strided_slice %0 {offsets = [1, 0], sizes = [7, 128], strides = [1, 1]} : vector<32x128xbf16> to vector<7x128xbf16>
    %33 = vector.extract_strided_slice %0 {offsets = [9, 0], sizes = [7, 128], strides = [1, 1]} : vector<32x128xbf16> to vector<7x128xbf16>
    %34 = vector.extract_strided_slice %0 {offsets = [17, 0], sizes = [7, 128], strides = [1, 1]} : vector<32x128xbf16> to vector<7x128xbf16>
    %35 = tpu.concatenate %30, %31, %32, %33, %34 in 1 : vector<7x128xbf16>, vector<7x128xbf16>, vector<7x128xbf16>, vector<7x128xbf16>, vector<7x128xbf16> -> vector<7x640xbf16>
    %cst_12 = arith.constant dense<0.000000e+00> : vector<7x128xf32>
    %36 = tpu.matmul %35, %2, %cst_12 {dimension_numbers = #tpu.dot_dimension_numbers<[1], [0], [0], [1], [0, 0, 1, 1], [], []>} : vector<7x640xbf16>, vector<640x128xbf16>, vector<7x128xf32> -> vector<7x128xf32>
    %cst_13 = arith.constant dense<0.000000e+00> : vector<7x128xf32>
    %37 = tpu.matmul %35, %4, %cst_13 {dimension_numbers = #tpu.dot_dimension_numbers<[1], [0], [0], [1], [0, 0, 1, 1], [], []>} : vector<7x640xbf16>, vector<640x128xbf16>, vector<7x128xf32> -> vector<7x128xf32>
    %38 = arith.maximumf %36, %37 : vector<7x128xf32>
    %39 = vector.extract_strided_slice %0 {offsets = [24, 0], sizes = [7, 128], strides = [1, 1]} : vector<32x128xbf16> to vector<7x128xbf16>
    %40 = vector.extract_strided_slice %0 {offsets = [1, 0], sizes = [7, 128], strides = [1, 1]} : vector<32x128xbf16> to vector<7x128xbf16>
    %41 = vector.extract_strided_slice %0 {offsets = [9, 0], sizes = [7, 128], strides = [1, 1]} : vector<32x128xbf16> to vector<7x128xbf16>
    %42 = vector.extract_strided_slice %0 {offsets = [17, 0], sizes = [7, 128], strides = [1, 1]} : vector<32x128xbf16> to vector<7x128xbf16>
    %43 = vector.extract_strided_slice %0 {offsets = [25, 0], sizes = [7, 128], strides = [1, 1]} : vector<32x128xbf16> to vector<7x128xbf16>
    %44 = tpu.concatenate %39, %40, %41, %42, %43 in 1 : vector<7x128xbf16>, vector<7x128xbf16>, vector<7x128xbf16>, vector<7x128xbf16>, vector<7x128xbf16> -> vector<7x640xbf16>
    %cst_14 = arith.constant dense<0.000000e+00> : vector<7x128xf32>
    %45 = tpu.matmul %44, %2, %cst_14 {dimension_numbers = #tpu.dot_dimension_numbers<[1], [0], [0], [1], [0, 0, 1, 1], [], []>} : vector<7x640xbf16>, vector<640x128xbf16>, vector<7x128xf32> -> vector<7x128xf32>
    %46 = arith.maximumf %38, %45 : vector<7x128xf32>
    %cst_15 = arith.constant dense<0.000000e+00> : vector<7x128xf32>
    %47 = tpu.matmul %44, %4, %cst_15 {dimension_numbers = #tpu.dot_dimension_numbers<[1], [0], [0], [1], [0, 0, 1, 1], [], []>} : vector<7x640xbf16>, vector<640x128xbf16>, vector<7x128xf32> -> vector<7x128xf32>
    %48 = arith.maximumf %46, %47 : vector<7x128xf32>
    %49 = vector.broadcast %5 : vector<1x128xf32> to vector<7x128xf32>
    %50 = arith.addf %48, %49 : vector<7x128xf32>
    %cst_16 = arith.constant 0.000000e+00 : f32
    %51 = vector.broadcast %cst_16 : f32 to vector<7x128xf32>
    %52 = arith.maximumf %50, %51 : vector<7x128xf32>
    %53 = arith.truncf %52 : vector<7x128xf32> to vector<7x128xbf16>
    %c0_17 = arith.constant 0 : index
    %c0_18 = arith.constant 0 : index
    %c0_19 = arith.constant 0 : index
    %54 = vector.load %arg4[%c0_17, %c0_18, %c0_19] : memref<2x640x128xbf16, #tpu.memory_space<vmem>>, vector<1x640x128xbf16>
    %55 = vector.shape_cast %54 : vector<1x640x128xbf16> to vector<640x128xbf16>
    %c1_20 = arith.constant 1 : index
    %c0_21 = arith.constant 0 : index
    %c0_22 = arith.constant 0 : index
    %56 = vector.load %arg4[%c1_20, %c0_21, %c0_22] : memref<2x640x128xbf16, #tpu.memory_space<vmem>>, vector<1x640x128xbf16>
    %57 = vector.shape_cast %56 : vector<1x640x128xbf16> to vector<640x128xbf16>
    %c0_23 = arith.constant 0 : index
    %c0_24 = arith.constant 0 : index
    %58 = vector.load %arg5[%c0_23, %c0_24] : memref<1x128xf32, #tpu.memory_space<vmem>>, vector<1x128xf32>
    %59 = vector.extract_strided_slice %29 {offsets = [0, 0], sizes = [5, 128], strides = [1, 1]} : vector<7x128xbf16> to vector<5x128xbf16>
    %60 = vector.extract_strided_slice %53 {offsets = [0, 0], sizes = [5, 128], strides = [1, 1]} : vector<7x128xbf16> to vector<5x128xbf16>
    %61 = vector.extract_strided_slice %29 {offsets = [1, 0], sizes = [5, 128], strides = [1, 1]} : vector<7x128xbf16> to vector<5x128xbf16>
    %62 = vector.extract_strided_slice %53 {offsets = [1, 0], sizes = [5, 128], strides = [1, 1]} : vector<7x128xbf16> to vector<5x128xbf16>
    %63 = vector.extract_strided_slice %29 {offsets = [2, 0], sizes = [5, 128], strides = [1, 1]} : vector<7x128xbf16> to vector<5x128xbf16>
    %64 = tpu.concatenate %59, %60, %61, %62, %63 in 1 : vector<5x128xbf16>, vector<5x128xbf16>, vector<5x128xbf16>, vector<5x128xbf16>, vector<5x128xbf16> -> vector<5x640xbf16>
    %cst_25 = arith.constant dense<0.000000e+00> : vector<5x128xf32>
    %65 = tpu.matmul %64, %55, %cst_25 {dimension_numbers = #tpu.dot_dimension_numbers<[1], [0], [0], [1], [0, 0, 1, 1], [], []>} : vector<5x640xbf16>, vector<640x128xbf16>, vector<5x128xf32> -> vector<5x128xf32>
    %cst_26 = arith.constant dense<0.000000e+00> : vector<5x128xf32>
    %66 = tpu.matmul %64, %57, %cst_26 {dimension_numbers = #tpu.dot_dimension_numbers<[1], [0], [0], [1], [0, 0, 1, 1], [], []>} : vector<5x640xbf16>, vector<640x128xbf16>, vector<5x128xf32> -> vector<5x128xf32>
    %67 = arith.maximumf %65, %66 : vector<5x128xf32>
    %68 = vector.extract_strided_slice %53 {offsets = [0, 0], sizes = [5, 128], strides = [1, 1]} : vector<7x128xbf16> to vector<5x128xbf16>
    %69 = vector.extract_strided_slice %29 {offsets = [1, 0], sizes = [5, 128], strides = [1, 1]} : vector<7x128xbf16> to vector<5x128xbf16>
    %70 = vector.extract_strided_slice %53 {offsets = [1, 0], sizes = [5, 128], strides = [1, 1]} : vector<7x128xbf16> to vector<5x128xbf16>
    %71 = vector.extract_strided_slice %29 {offsets = [2, 0], sizes = [5, 128], strides = [1, 1]} : vector<7x128xbf16> to vector<5x128xbf16>
    %72 = vector.extract_strided_slice %53 {offsets = [2, 0], sizes = [5, 128], strides = [1, 1]} : vector<7x128xbf16> to vector<5x128xbf16>
    %73 = tpu.concatenate %68, %69, %70, %71, %72 in 1 : vector<5x128xbf16>, vector<5x128xbf16>, vector<5x128xbf16>, vector<5x128xbf16>, vector<5x128xbf16> -> vector<5x640xbf16>
    %cst_27 = arith.constant dense<0.000000e+00> : vector<5x128xf32>
    %74 = tpu.matmul %73, %55, %cst_27 {dimension_numbers = #tpu.dot_dimension_numbers<[1], [0], [0], [1], [0, 0, 1, 1], [], []>} : vector<5x640xbf16>, vector<640x128xbf16>, vector<5x128xf32> -> vector<5x128xf32>
    %75 = arith.maximumf %67, %74 : vector<5x128xf32>
    %cst_28 = arith.constant dense<0.000000e+00> : vector<5x128xf32>
    %76 = tpu.matmul %73, %57, %cst_28 {dimension_numbers = #tpu.dot_dimension_numbers<[1], [0], [0], [1], [0, 0, 1, 1], [], []>} : vector<5x640xbf16>, vector<640x128xbf16>, vector<5x128xf32> -> vector<5x128xf32>
    %77 = arith.maximumf %75, %76 : vector<5x128xf32>
    %78 = vector.broadcast %58 : vector<1x128xf32> to vector<5x128xf32>
    %79 = arith.addf %77, %78 : vector<5x128xf32>
    %cst_29 = arith.constant 0.000000e+00 : f32
    %80 = vector.broadcast %cst_29 : f32 to vector<5x128xf32>
    %81 = arith.maximumf %79, %80 : vector<5x128xf32>
    %82 = arith.truncf %81 : vector<5x128xf32> to vector<5x128xbf16>
    %83 = vector.extract_strided_slice %82 {offsets = [0, 0], sizes = [1, 128], strides = [1, 1]} : vector<5x128xbf16> to vector<1x128xbf16>
    %84 = vector.extract_strided_slice %82 {offsets = [1, 0], sizes = [1, 128], strides = [1, 1]} : vector<5x128xbf16> to vector<1x128xbf16>
    %85 = vector.extract_strided_slice %82 {offsets = [2, 0], sizes = [1, 128], strides = [1, 1]} : vector<5x128xbf16> to vector<1x128xbf16>
    %86 = vector.extract_strided_slice %82 {offsets = [3, 0], sizes = [1, 128], strides = [1, 1]} : vector<5x128xbf16> to vector<1x128xbf16>
    %87 = vector.extract_strided_slice %82 {offsets = [4, 0], sizes = [1, 128], strides = [1, 1]} : vector<5x128xbf16> to vector<1x128xbf16>
    %88 = tpu.concatenate %83, %84, %85, %86, %87 in 1 : vector<1x128xbf16>, vector<1x128xbf16>, vector<1x128xbf16>, vector<1x128xbf16>, vector<1x128xbf16> -> vector<1x640xbf16>
    %c0_30 = arith.constant 0 : index
    %c0_31 = arith.constant 0 : index
    %89 = vector.load %arg6[%c0_30, %c0_31] : memref<640x128xbf16, #tpu.memory_space<vmem>>, vector<640x128xbf16>
    %cst_32 = arith.constant dense<0.000000e+00> : vector<1x128xf32>
    %90 = tpu.matmul %88, %89, %cst_32 {dimension_numbers = #tpu.dot_dimension_numbers<[1], [0], [0], [1], [0, 0, 1, 1], [], []>} : vector<1x640xbf16>, vector<640x128xbf16>, vector<1x128xf32> -> vector<1x128xf32>
    %c0_33 = arith.constant 0 : index
    %c0_34 = arith.constant 0 : index
    %91 = vector.load %arg7[%c0_33, %c0_34] : memref<1x128xf32, #tpu.memory_space<vmem>>, vector<1x128xf32>
    %92 = arith.addf %90, %91 : vector<1x128xf32>
    %cst_35 = arith.constant 0.000000e+00 : f32
    %93 = vector.broadcast %cst_35 : f32 to vector<1x128xf32>
    %94 = arith.maximumf %92, %93 : vector<1x128xf32>
    %95 = arith.truncf %94 : vector<1x128xf32> to vector<1x128xbf16>
    %c0_36 = arith.constant 0 : index
    %c0_37 = arith.constant 0 : index
    %96 = vector.load %arg8[%c0_36, %c0_37] : memref<128x128xbf16, #tpu.memory_space<vmem>>, vector<128x128xbf16>
    %cst_38 = arith.constant dense<0.000000e+00> : vector<1x128xf32>
    %97 = tpu.matmul %95, %96, %cst_38 {dimension_numbers = #tpu.dot_dimension_numbers<[1], [0], [0], [1], [0, 0, 1, 1], [], []>} : vector<1x128xbf16>, vector<128x128xbf16>, vector<1x128xf32> -> vector<1x128xf32>
    %c0_39 = arith.constant 0 : index
    %c0_40 = arith.constant 0 : index
    %98 = vector.load %arg9[%c0_39, %c0_40] : memref<1x128xf32, #tpu.memory_space<vmem>>, vector<1x128xf32>
    %99 = arith.addf %97, %98 : vector<1x128xf32>
    %cst_41 = arith.constant 0.000000e+00 : f32
    %100 = vector.broadcast %cst_41 : f32 to vector<1x128xf32>
    %101 = arith.maximumf %99, %100 : vector<1x128xf32>
    %102 = arith.truncf %101 : vector<1x128xf32> to vector<1x128xbf16>
    %c0_42 = arith.constant 0 : index
    %c0_43 = arith.constant 0 : index
    %103 = vector.load %arg10[%c0_42, %c0_43] : memref<128x128xbf16, #tpu.memory_space<vmem>>, vector<128x128xbf16>
    %cst_44 = arith.constant dense<0.000000e+00> : vector<1x128xf32>
    %104 = tpu.matmul %102, %103, %cst_44 {dimension_numbers = #tpu.dot_dimension_numbers<[1], [0], [0], [1], [0, 0, 1, 1], [], []>} : vector<1x128xbf16>, vector<128x128xbf16>, vector<1x128xf32> -> vector<1x128xf32>
    %c0_45 = arith.constant 0 : index
    %c0_46 = arith.constant 0 : index
    %105 = vector.load %arg11[%c0_45, %c0_46] : memref<1x128xf32, #tpu.memory_space<vmem>>, vector<1x128xf32>
    %106 = arith.addf %104, %105 : vector<1x128xf32>
    %cst_47 = arith.constant dense<0xFF800000> : vector<1xf32>
    %107 = vector.multi_reduction <maximumf>, %106, %cst_47 [1] : vector<1x128xf32> to vector<1xf32>
    %108 = vector.shape_cast %107 : vector<1xf32> to vector<1x1xf32>
    %109 = vector.broadcast %108 : vector<1x1xf32> to vector<1x128xf32>
    %110 = arith.subf %106, %109 : vector<1x128xf32>
    %111 = math.exp %110 : vector<1x128xf32>
    %cst_48 = arith.constant dense<0.000000e+00> : vector<1xf32>
    %112 = vector.multi_reduction <add>, %111, %cst_48 [1] : vector<1x128xf32> to vector<1xf32>
    %113 = vector.shape_cast %112 : vector<1xf32> to vector<1x1xf32>
    %114 = tpu.reciprocal %113 {approx = true} : vector<1x1xf32> -> vector<1x1xf32>
    %115 = vector.broadcast %114 : vector<1x1xf32> to vector<1x128xf32>
    %116 = arith.mulf %111, %115 : vector<1x128xf32>
    %c0_49 = arith.constant 0 : index
    %c0_50 = arith.constant 0 : index
    %c0_51 = arith.constant 0 : index
    %117 = vector.load %arg12[%c0_49, %c0_50, %c0_51] : memref<1x1x128xf32, #tpu.memory_space<vmem>>, vector<1x1x128xf32>
    %118 = vector.shape_cast %117 : vector<1x1x128xf32> to vector<1x128xf32>
    %119 = vector.shape_cast %116 : vector<1x128xf32> to vector<1x1x128xf32>
    tpu.vector_store %arg12[%c0_49, %c0_50, %c0_51], %119 {strides = array<i32>} : memref<1x1x128xf32, #tpu.memory_space<vmem>>, vector<1x1x128xf32>,
    return
  }
  func.func @transform_0(%arg0: i32) -> (i32, i32) {
    %c0_i32 = arith.constant 0 : i32
    %c0_i32_0 = arith.constant 0 : i32
    return %arg0, %c0_i32 : i32, i32
  }
  func.func @transform_1(%arg0: i32) -> (i32, i32, i32) {
    %c0_i32 = arith.constant 0 : i32
    %c0_i32_0 = arith.constant 0 : i32
    %c0_i32_1 = arith.constant 0 : i32
    %c0_i32_2 = arith.constant 0 : i32
    return %c0_i32, %c0_i32_0, %c0_i32_1 : i32, i32, i32
  }
  func.func @transform_2(%arg0: i32) -> (i32, i32) {
    %c0_i32 = arith.constant 0 : i32
    %c0_i32_0 = arith.constant 0 : i32
    %c0_i32_1 = arith.constant 0 : i32
    return %c0_i32, %c0_i32_0 : i32, i32
  }
  func.func @transform_3(%arg0: i32) -> (i32, i32, i32) {
    %c0_i32 = arith.constant 0 : i32
    %c0_i32_0 = arith.constant 0 : i32
    %c0_i32_1 = arith.constant 0 : i32
    %c0_i32_2 = arith.constant 0 : i32
    return %c0_i32, %c0_i32_0, %c0_i32_1 : i32, i32, i32
  }
  func.func @transform_4(%arg0: i32) -> (i32, i32) {
    %c0_i32 = arith.constant 0 : i32
    %c0_i32_0 = arith.constant 0 : i32
    %c0_i32_1 = arith.constant 0 : i32
    return %c0_i32, %c0_i32_0 : i32, i32
  }
  func.func @transform_5(%arg0: i32) -> (i32, i32) {
    %c0_i32 = arith.constant 0 : i32
    %c0_i32_0 = arith.constant 0 : i32
    %c0_i32_1 = arith.constant 0 : i32
    return %c0_i32, %c0_i32_0 : i32, i32
  }
  func.func @transform_6(%arg0: i32) -> (i32, i32) {
    %c0_i32 = arith.constant 0 : i32
    %c0_i32_0 = arith.constant 0 : i32
    %c0_i32_1 = arith.constant 0 : i32
    return %c0_i32, %c0_i32_0 : i32, i32
  }
  func.func @transform_7(%arg0: i32) -> (i32, i32) {
    %c0_i32 = arith.constant 0 : i32
    %c0_i32_0 = arith.constant 0 : i32
    %c0_i32_1 = arith.constant 0 : i32
    return %c0_i32, %c0_i32_0 : i32, i32
  }
  func.func @transform_8(%arg0: i32) -> (i32, i32) {
    %c0_i32 = arith.constant 0 : i32
    %c0_i32_0 = arith.constant 0 : i32
    %c0_i32_1 = arith.constant 0 : i32
    return %c0_i32, %c0_i32_0 : i32, i32
  }
  func.func @transform_9(%arg0: i32) -> (i32, i32) {
    %c0_i32 = arith.constant 0 : i32
    %c0_i32_0 = arith.constant 0 : i32
    %c0_i32_1 = arith.constant 0 : i32
    return %c0_i32, %c0_i32_0 : i32, i32
  }
  func.func @transform_10(%arg0: i32) -> (i32, i32) {
    %c0_i32 = arith.constant 0 : i32
    %c0_i32_0 = arith.constant 0 : i32
    %c0_i32_1 = arith.constant 0 : i32
    return %c0_i32, %c0_i32_0 : i32, i32
  }
  func.func @transform_11(%arg0: i32) -> (i32, i32, i32) {
    %c0_i32 = arith.constant 0 : i32
    %c0_i32_0 = arith.constant 0 : i32
    %c0_i32_1 = arith.constant 0 : i32
    return %arg0, %c0_i32, %c0_i32_0 : i32, i32, i32
  }
}

</mosaic_0001>

<llo_original>
// kernel: classifier_net.1
$region0: #{classifier_net.1}
  #allocation0 [shape = 'u32[]', space=smem, size = 0x4, offset = 0x4, fixed_abs, tag = 'smem constant byte address 0x4 - core index']
  #allocation1 [shape = 'u32[144,128]{1,0:T(1,128)}', space=vmem, size = 0x12000, scoped, tag = 'internal scratch']
  %s0 = inlined_call_operand.vmem [shape: bf16[64,128], index: 0, kind: input, shape index: {}]
  %s1 = inlined_call_operand.vmem [shape: bf16[2,640,128], index: 1, kind: input, shape index: {}]
  %s2 = inlined_call_operand.vmem [shape: f32[1,128], index: 2, kind: input, shape index: {}]
  %s3 = inlined_call_operand.hbm [shape: bf16[2,640,128], index: 3, kind: input, shape index: {}]
  %s4 = inlined_call_operand.vmem [shape: f32[1,128], index: 4, kind: input, shape index: {}]
  %s5 = inlined_call_operand.hbm [shape: bf16[640,128], index: 5, kind: input, shape index: {}]
  %s6 = inlined_call_operand.vmem [shape: f32[1,128], index: 6, kind: input, shape index: {}]
  %s7 = inlined_call_operand.vmem [shape: bf16[128,128], index: 7, kind: input, shape index: {}]
  %s8 = inlined_call_operand.vmem [shape: f32[1,128], index: 8, kind: input, shape index: {}]
  %s9 = inlined_call_operand.hbm [shape: bf16[128,128], index: 9, kind: input, shape index: {}]
  %s10 = inlined_call_operand.vmem [shape: f32[1,128], index: 10, kind: input, shape index: {}]
  %s11 = inlined_call_operand.hbm [shape: f32[2,1,128], index: 11, kind: output, shape index: {}]
  %s12 = sld [smem:[#allocation0]]
  $region89: #{classifier_net.1} parent=0
    _
  %s14 = ssub.s32 1, %s12
  %s15 = scalar_select 0, %s14, %s12
  $region1: #{classifier_net.1} parent=0
    #allocation2 [shape = 'u8[327680]{0}', space=vmem, size = 0x50000, scoped, tag = 'input window, operand 3, single buffered']
    #allocation3 [shape = 's32[2]{0}', space=sflag, size = 0x8, scoped, tag = 'scoped memory for classifier_net.1']
    #allocation4 [shape = 's32[2]{0}', space=sflag, size = 0x8, scoped, tag = 'scoped memory for classifier_net.1']
    #allocation5 [shape = 'u8[163840]{0}', space=vmem, size = 0x28000, scoped, tag = 'input window, operand 5, single buffered']
    #allocation6 [shape = 's32[1]{0}', space=sflag, size = 0x4, scoped, tag = 'scoped memory for classifier_net.1']
    #allocation7 [shape = 'u8[32768]{0}', space=vmem, size = 0x8000, scoped, tag = 'input window, operand 9, single buffered']
    #allocation8 [shape = 'u8[1024]{0}', space=vmem, size = 0x400, scoped, tag = 'output window, operand 0']
    %16 = vsyncpa [#allocation3], 0
    %17 = vsyncpa [#allocation6], 0
    %18 = vsyncpa [#allocation4], 0
    %s19 = scalar_lea.sflag [#allocation4], 1
    %20 = vsyncpa %s19, 0
    loop: start=0, step=1, limit=4
    $region2: #{classifier_net.1} parent=1 // loop_pre_header
      _
    $region3: #{classifier_net.1} parent=1 // loop_header
      %s22 = sphi 0, %s26
      %p23 = scmp.ge.s32.totalorder %s22, 4
      %s32 = sphi 0, %s34
      %s35 = sphi 0, %s32
      %s36 = sphi 0, %s35
      %s52 = sphi 0, %s36
      %s56 = sphi 0, %s56
      %s58 = sphi 0, %s56
      %s59 = sphi 0, %s58
      %s73 = sphi 0, %s59
      %s77 = sphi 0, %s77
      %s79 = sphi 0, %s77
      %s80 = sphi 0, %s79
      %s94 = sphi 0, %s80
      %s98 = sphi 0, %s98
      %s100 = sphi 0, %s98
      %s101 = sphi 0, %s100
      %s115 = sphi 0, %s101
      %s119 = sphi 0, %s119
      %s121 = sphi 0, %s119
      %s122 = sphi 0, %s121
      %s136 = sphi 0, %s122
      %s140 = sphi 0, %s140
      %s142 = sphi 0, %s140
      %s143 = sphi 0, %s142
      %s157 = sphi 0, %s143
      %s161 = sphi 0, %s161
      %s163 = sphi 0, %s161
      %s164 = sphi 0, %s163
      %s178 = sphi 0, %s164
      %s182 = sphi 0, %s182
      %s184 = sphi 0, %s182
      %s185 = sphi 0, %s184
      %s199 = sphi 0, %s185
      %s203 = sphi 0, %s203
      %s205 = sphi 0, %s203
      %s206 = sphi 0, %s205
      %s220 = sphi 0, %s206
      %s224 = sphi 0, %s224
      %s226 = sphi 0, %s224
      %s227 = sphi 0, %s226
      %s241 = sphi 0, %s227
      %s245 = sphi 0, %s245
      %s247 = sphi 0, %s245
      %s248 = sphi 0, %s247
      %s262 = sphi 0, %s248
      %s268 = sphi 0, %s270
      %s271 = sphi 0, %s268
      %s272 = sphi 0, %s271
      %s288 = sphi 0, %s272
    $region4: #{classifier_net.1} parent=1 // loop_header_branch
      %25 = sbr.rel (%p23) target = $region8
    $region5: #{classifier_net.1} parent=1 // loop_body
      %s27 = ssub.s32 %s22, 1
      %s28 = ssub.s32 %s22, 2
      %s29 = sadd.s32 %s22, 1
      %s30 = ssub.s32 %s22, %s29
      %p31 = scmp.eq.s32.totalorder %s30, 0
      %s33 = sadd.s32 %s32, 1
      %s34 = scalar_select %p31, %s32, %s33
      %p37 = pneg %p31
      %p38 = scmp.eq.s32.totalorder %s22, 1
      %p39 = por %p37, %p38
      %p40 = scmp.ne.s32.totalorder %s32, %s35
      %p41 = scmp.eq.s32.totalorder %s22, 0
      %p42 = por %p40, %p41
      %p43 = scmp.ne.s32.totalorder %s32, %s35
      %p44 = scmp.eq.s32.totalorder %s27, 1
      %p45 = por %p43, %p44
      %p46 = scmp.ne.s32.totalorder %s35, %s36
      %p47 = scmp.eq.s32.totalorder %s27, 0
      %p48 = por %p46, %p47
      %p49 = scmp.ne.s32.totalorder %s35, %s36
      %p50 = scmp.eq.s32.totalorder %s28, 1
      %p51 = por %p49, %p50
      %p53 = scmp.ne.s32.totalorder %s36, %s52
      %p54 = scmp.eq.s32.totalorder %s28, 0
      %p55 = por %p53, %p54
      %s57 = sadd.s32 %s56, 1
      %p60 = scmp.eq.s32.totalorder %s22, 1
      %p61 = scmp.ne.s32.totalorder %s56, %s58
      %p62 = scmp.eq.s32.totalorder %s22, 0
      %p63 = por %p61, %p62
      %p64 = scmp.ne.s32.totalorder %s56, %s58
      %p65 = scmp.eq.s32.totalorder %s27, 1
      %p66 = por %p64, %p65
      %p67 = scmp.ne.s32.totalorder %s58, %s59
      %p68 = scmp.eq.s32.totalorder %s27, 0
      %p69 = por %p67, %p68
      %p70 = scmp.ne.s32.totalorder %s58, %s59
      %p71 = scmp.eq.s32.totalorder %s28, 1
      %p72 = por %p70, %p71
      %p74 = scmp.ne.s32.totalorder %s59, %s73
      %p75 = scmp.eq.s32.totalorder %s28, 0
      %p76 = por %p74, %p75
      %s78 = sadd.s32 %s77, 1
      %p81 = scmp.eq.s32.totalorder %s22, 1
      %p82 = scmp.ne.s32.totalorder %s77, %s79
      %p83 = scmp.eq.s32.totalorder %s22, 0
      %p84 = por %p82, %p83
      %p85 = scmp.ne.s32.totalorder %s77, %s79
      %p86 = scmp.eq.s32.totalorder %s27, 1
      %p87 = por %p85, %p86
      %p88 = scmp.ne.s32.totalorder %s79, %s80
      %p89 = scmp.eq.s32.totalorder %s27, 0
      %p90 = por %p88, %p89
      %p91 = scmp.ne.s32.totalorder %s79, %s80
      %p92 = scmp.eq.s32.totalorder %s28, 1
      %p93 = por %p91, %p92
      %p95 = scmp.ne.s32.totalorder %s80, %s94
      %p96 = scmp.eq.s32.totalorder %s28, 0
      %p97 = por %p95, %p96
      %s99 = sadd.s32 %s98, 1
      %p102 = scmp.eq.s32.totalorder %s22, 1
      %p103 = scmp.ne.s32.totalorder %s98, %s100
      %p104 = scmp.eq.s32.totalorder %s22, 0
      %p105 = por %p103, %p104
      %p106 = scmp.ne.s32.totalorder %s98, %s100
      %p107 = scmp.eq.s32.totalorder %s27, 1
      %p108 = por %p106, %p107
      %p109 = scmp.ne.s32.totalorder %s100, %s101
      %p110 = scmp.eq.s32.totalorder %s27, 0
      %p111 = por %p109, %p110
      %p112 = scmp.ne.s32.totalorder %s100, %s101
      %p113 = scmp.eq.s32.totalorder %s28, 1
      %p114 = por %p112, %p113
      %p116 = scmp.ne.s32.totalorder %s101, %s115
      %p117 = scmp.eq.s32.totalorder %s28, 0
      %p118 = por %p116, %p117
      %s120 = sadd.s32 %s119, 1
      %p123 = scmp.eq.s32.totalorder %s22, 1
      %p124 = scmp.ne.s32.totalorder %s119, %s121
      %p125 = scmp.eq.s32.totalorder %s22, 0
      %p126 = por %p124, %p125
      %p127 = scmp.ne.s32.totalorder %s119, %s121
      %p128 = scmp.eq.s32.totalorder %s27, 1
      %p129 = por %p127, %p128
      %p130 = scmp.ne.s32.totalorder %s121, %s122
      %p131 = scmp.eq.s32.totalorder %s27, 0
      %p132 = por %p130, %p131
      %p133 = scmp.ne.s32.totalorder %s121, %s122
      %p134 = scmp.eq.s32.totalorder %s28, 1
      %p135 = por %p133, %p134
      %p137 = scmp.ne.s32.totalorder %s122, %s136
      %p138 = scmp.eq.s32.totalorder %s28, 0
      %p139 = por %p137, %p138
      %s141 = sadd.s32 %s140, 1
      %p144 = scmp.eq.s32.totalorder %s22, 1
      %p145 = scmp.ne.s32.totalorder %s140, %s142
      %p146 = scmp.eq.s32.totalorder %s22, 0
      %p147 = por %p145, %p146
      %p148 = scmp.ne.s32.totalorder %s140, %s142
      %p149 = scmp.eq.s32.totalorder %s27, 1
      %p150 = por %p148, %p149
      %p151 = scmp.ne.s32.totalorder %s142, %s143
      %p152 = scmp.eq.s32.totalorder %s27, 0
      %p153 = por %p151, %p152
      %p154 = scmp.ne.s32.totalorder %s142, %s143
      %p155 = scmp.eq.s32.totalorder %s28, 1
      %p156 = por %p154, %p155
      %p158 = scmp.ne.s32.totalorder %s143, %s157
      %p159 = scmp.eq.s32.totalorder %s28, 0
      %p160 = por %p158, %p159
      %s162 = sadd.s32 %s161, 1
      %p165 = scmp.eq.s32.totalorder %s22, 1
      %p166 = scmp.ne.s32.totalorder %s161, %s163
      %p167 = scmp.eq.s32.totalorder %s22, 0
      %p168 = por %p166, %p167
      %p169 = scmp.ne.s32.totalorder %s161, %s163
      %p170 = scmp.eq.s32.totalorder %s27, 1
      %p171 = por %p169, %p170
      %p172 = scmp.ne.s32.totalorder %s163, %s164
      %p173 = scmp.eq.s32.totalorder %s27, 0
      %p174 = por %p172, %p173
      %p175 = scmp.ne.s32.totalorder %s163, %s164
      %p176 = scmp.eq.s32.totalorder %s28, 1
      %p177 = por %p175, %p176
      %p179 = scmp.ne.s32.totalorder %s164, %s178
      %p180 = scmp.eq.s32.totalorder %s28, 0
      %p181 = por %p179, %p180
      %s183 = sadd.s32 %s182, 1
      %p186 = scmp.eq.s32.totalorder %s22, 1
      %p187 = scmp.ne.s32.totalorder %s182, %s184
      %p188 = scmp.eq.s32.totalorder %s22, 0
      %p189 = por %p187, %p188
      %p190 = scmp.ne.s32.totalorder %s182, %s184
      %p191 = scmp.eq.s32.totalorder %s27, 1
      %p192 = por %p190, %p191
      %p193 = scmp.ne.s32.totalorder %s184, %s185
      %p194 = scmp.eq.s32.totalorder %s27, 0
      %p195 = por %p193, %p194
      %p196 = scmp.ne.s32.totalorder %s184, %s185
      %p197 = scmp.eq.s32.totalorder %s28, 1
      %p198 = por %p196, %p197
      %p200 = scmp.ne.s32.totalorder %s185, %s199
      %p201 = scmp.eq.s32.totalorder %s28, 0
      %p202 = por %p200, %p201
      %s204 = sadd.s32 %s203, 1
      %p207 = scmp.eq.s32.totalorder %s22, 1
      %p208 = scmp.ne.s32.totalorder %s203, %s205
      %p209 = scmp.eq.s32.totalorder %s22, 0
      %p210 = por %p208, %p209
      %p211 = scmp.ne.s32.totalorder %s203, %s205
      %p212 = scmp.eq.s32.totalorder %s27, 1
      %p213 = por %p211, %p212
      %p214 = scmp.ne.s32.totalorder %s205, %s206
      %p215 = scmp.eq.s32.totalorder %s27, 0
      %p216 = por %p214, %p215
      %p217 = scmp.ne.s32.totalorder %s205, %s206
      %p218 = scmp.eq.s32.totalorder %s28, 1
      %p219 = por %p217, %p218
      %p221 = scmp.ne.s32.totalorder %s206, %s220
      %p222 = scmp.eq.s32.totalorder %s28, 0
      %p223 = por %p221, %p222
      %s225 = sadd.s32 %s224, 1
      %p228 = scmp.eq.s32.totalorder %s22, 1
      %p229 = scmp.ne.s32.totalorder %s224, %s226
      %p230 = scmp.eq.s32.totalorder %s22, 0
      %p231 = por %p229, %p230
      %p232 = scmp.ne.s32.totalorder %s224, %s226
      %p233 = scmp.eq.s32.totalorder %s27, 1
      %p234 = por %p232, %p233
      %p235 = scmp.ne.s32.totalorder %s226, %s227
      %p236 = scmp.eq.s32.totalorder %s27, 0
      %p237 = por %p235, %p236
      %p238 = scmp.ne.s32.totalorder %s226, %s227
      %p239 = scmp.eq.s32.totalorder %s28, 1
      %p240 = por %p238, %p239
      %p242 = scmp.ne.s32.totalorder %s227, %s241
      %p243 = scmp.eq.s32.totalorder %s28, 0
      %p244 = por %p242, %p243
      %s246 = sadd.s32 %s245, 1
      %p249 = scmp.eq.s32.totalorder %s22, 1
      %p250 = scmp.ne.s32.totalorder %s245, %s247
      %p251 = scmp.eq.s32.totalorder %s22, 0
      %p252 = por %p250, %p251
      %p253 = scmp.ne.s32.totalorder %s245, %s247
      %p254 = scmp.eq.s32.totalorder %s27, 1
      %p255 = por %p253, %p254
      %p256 = scmp.ne.s32.totalorder %s247, %s248
      %p257 = scmp.eq.s32.totalorder %s27, 0
      %p258 = por %p256, %p257
      %p259 = scmp.ne.s32.totalorder %s247, %s248
      %p260 = scmp.eq.s32.totalorder %s28, 1
      %p261 = por %p259, %p260
      %p263 = scmp.ne.s32.totalorder %s248, %s262
      %p264 = scmp.eq.s32.totalorder %s28, 0
      %p265 = por %p263, %p264
      %s266 = ssub.s32 %s22, %s29
      %p267 = scmp.eq.s32.totalorder %s266, 0
      %s269 = sadd.s32 %s268, 1
      %s270 = scalar_select %p267, %s268, %s269
      %p273 = pneg %p267
      %p274 = scmp.eq.s32.totalorder %s22, 1
      %p275 = por %p273, %p274
      %p276 = scmp.ne.s32.totalorder %s268, %s271
      %p277 = scmp.eq.s32.totalorder %s22, 0
      %p278 = por %p276, %p277
      %p279 = scmp.ne.s32.totalorder %s268, %s271
      %p280 = scmp.eq.s32.totalorder %s27, 1
      %p281 = por %p279, %p280
      %p282 = scmp.ne.s32.totalorder %s271, %s272
      %p283 = scmp.eq.s32.totalorder %s27, 0
      %p284 = por %p282, %p283
      %p285 = scmp.ne.s32.totalorder %s271, %s272
      %p286 = scmp.eq.s32.totalorder %s28, 1
      %p287 = por %p285, %p286
      %p289 = scmp.ne.s32.totalorder %s272, %s288
      %p290 = scmp.eq.s32.totalorder %s28, 0
      %p291 = por %p289, %p290
      %p292 = scmp.le.s32.totalorder 1, %s22
      %p293 = scmp.lt.s32.totalorder %s22, 3
      %p294 = pnand %p292, %p293
      %p295 = pneg %p294
      // Predicated region
      $region9: #{classifier_net.1} parent=5 // pred_check
        _
      $region10: #{classifier_net.1} parent=5 // pred_check_branch
        %297 = sbr.rel (%p294) target = $region12
      $region11: #{classifier_net.1} parent=5 // pred_region
        %s298 = ssub.s32 %s22, 1
        // Predicated region
        $region13: #{classifier_net.1} parent=11 // pred_check
          %p299 = pneg %p69
        $region14: #{classifier_net.1} parent=11 // pred_check_branch
          %301 = sbr.rel (%p299) target = $region16
        $region15: #{classifier_net.1} parent=11 // pred_region
          _
        $region16: #{classifier_net.1} parent=11 // pred_fallthru
          _
        // Predicated region
        $region17: #{classifier_net.1} parent=11 // pred_check
          %p302 = pneg %p90
        $region18: #{classifier_net.1} parent=11 // pred_check_branch
          %304 = sbr.rel (%p302) target = $region20
        $region19: #{classifier_net.1} parent=11 // pred_region
          _
        $region20: #{classifier_net.1} parent=11 // pred_fallthru
          _
        // Predicated region
        $region21: #{classifier_net.1} parent=11 // pred_check
          %p305 = pneg %p111
        $region22: #{classifier_net.1} parent=11 // pred_check_branch
          %307 = sbr.rel (%p305) target = $region24
        $region23: #{classifier_net.1} parent=11 // pred_region
          %s309 = ssub.s32 10240, 10240
          %310 = vsyncadd [#allocation3], %s309
          %s311 = sshll.u32 [#allocation2], 4
          %s312 = int_to_ptr.vmem [resolvable:$true] %s311
          %317 = dma.hbm_to_vmem [thread:$0]  %s3, 10240, %s312, [#allocation3], 64, 64, 4
        $region24: #{classifier_net.1} parent=11 // pred_fallthru
          _
        // Predicated region
        $region25: #{classifier_net.1} parent=11 // pred_check
          %p318 = pneg %p132
        $region26: #{classifier_net.1} parent=11 // pred_check_branch
          %320 = sbr.rel (%p318) target = $region28
        $region27: #{classifier_net.1} parent=11 // pred_region
          _
        $region28: #{classifier_net.1} parent=11 // pred_fallthru
          _
        // Predicated region
        $region29: #{classifier_net.1} parent=11 // pred_check
          %p321 = pneg %p153
        $region30: #{classifier_net.1} parent=11 // pred_check_branch
          %323 = sbr.rel (%p321) target = $region32
        $region31: #{classifier_net.1} parent=11 // pred_region
          %s325 = ssub.s32 5120, 5120
          %326 = vsyncadd [#allocation6], %s325
          %s327 = sshll.u32 [#allocation5], 4
          %s328 = int_to_ptr.vmem [resolvable:$true] %s327
          %333 = dma.hbm_to_vmem [thread:$0]  %s5, 5120, %s328, [#allocation6], 64, 64, 4
        $region32: #{classifier_net.1} parent=11 // pred_fallthru
          _
        // Predicated region
        $region33: #{classifier_net.1} parent=11 // pred_check
          %p334 = pneg %p174
        $region34: #{classifier_net.1} parent=11 // pred_check_branch
          %336 = sbr.rel (%p334) target = $region36
        $region35: #{classifier_net.1} parent=11 // pred_region
          _
        $region36: #{classifier_net.1} parent=11 // pred_fallthru
          _
        // Predicated region
        $region37: #{classifier_net.1} parent=11 // pred_check
          %p337 = pneg %p195
        $region38: #{classifier_net.1} parent=11 // pred_check_branch
          %339 = sbr.rel (%p337) target = $region40
        $region39: #{classifier_net.1} parent=11 // pred_region
          _
        $region40: #{classifier_net.1} parent=11 // pred_fallthru
          _
        // Predicated region
        $region41: #{classifier_net.1} parent=11 // pred_check
          %p340 = pneg %p216
        $region42: #{classifier_net.1} parent=11 // pred_check_branch
          %342 = sbr.rel (%p340) target = $region44
        $region43: #{classifier_net.1} parent=11 // pred_region
          _
        $region44: #{classifier_net.1} parent=11 // pred_fallthru
          _
        // Predicated region
        $region45: #{classifier_net.1} parent=11 // pred_check
          %p343 = pneg %p237
        $region46: #{classifier_net.1} parent=11 // pred_check_branch
          %345 = sbr.rel (%p343) target = $region48
        $region47: #{classifier_net.1} parent=11 // pred_region
          %s347 = ssub.s32 1024, 1024
          %348 = vsyncadd [#allocation6], %s347
          %s349 = sshll.u32 [#allocation7], 4
          %s350 = int_to_ptr.vmem [resolvable:$true] %s349
          %355 = dma.hbm_to_vmem [thread:$0]  %s9, 1024, %s350, [#allocation6], 64, 64, 4
        $region48: #{classifier_net.1} parent=11 // pred_fallthru
          _
        // Predicated region
        $region49: #{classifier_net.1} parent=11 // pred_check
          %p356 = pneg %p258
        $region50: #{classifier_net.1} parent=11 // pred_check_branch
          %358 = sbr.rel (%p356) target = $region52
        $region51: #{classifier_net.1} parent=11 // pred_region
          _
        $region52: #{classifier_net.1} parent=11 // pred_fallthru
          _
      $region12: #{classifier_net.1} parent=5 // pred_fallthru
        _
      %p359 = scmp.lt.s32.totalorder %s22, 2
      // Predicated region
      $region53: #{classifier_net.1} parent=5 // pred_check
        %p360 = pneg %p359
      $region54: #{classifier_net.1} parent=5 // pred_check_branch
        %362 = sbr.rel (%p360) target = $region56
      $region55: #{classifier_net.1} parent=5 // pred_region
        // Predicated region
        $region57: #{classifier_net.1} parent=55 // pred_check
          %p363 = pneg %p42
        $region58: #{classifier_net.1} parent=55 // pred_check_branch
          %365 = sbr.rel (%p363) target = $region60
        $region59: #{classifier_net.1} parent=55 // pred_region
          %s366 = smul.u32 4, %s22
          %p367 = scmp.lt.s32.totalorder %s366, 7
          %s368 = scalar_select %p367, %s366, 7
          %s369 = smul.addr %s368, 4
          %s370 = scalar_lea.vmem %s0, %s369
          %s371 = smul.u32 4, %s22
        $region60: #{classifier_net.1} parent=55 // pred_fallthru
          _
      $region56: #{classifier_net.1} parent=5 // pred_fallthru
        _
      %p372 = scmp.le.s32.totalorder 1, %s22
      %p373 = scmp.lt.s32.totalorder %s22, 3
      %p374 = pnand %p372, %p373
      %p375 = pneg %p374
      // Predicated region
      $region61: #{classifier_net.1} parent=5 // pred_check
        _
      $region62: #{classifier_net.1} parent=5 // pred_check_branch
        %377 = sbr.rel (%p374) target = $region64
      $region63: #{classifier_net.1} parent=5 // pred_region
        %s378 = ssub.s32 %s22, 1
        // Predicated region
        $region65: #{classifier_net.1} parent=63 // pred_check
          %p379 = pneg %p111
        $region66: #{classifier_net.1} parent=63 // pred_check_branch
          %381 = sbr.rel (%p379) target = $region68
        $region67: #{classifier_net.1} parent=63 // pred_region
          %382 = dma.done [#allocation3], 10240
        $region68: #{classifier_net.1} parent=63 // pred_fallthru
          _
        // Predicated region
        $region69: #{classifier_net.1} parent=63 // pred_check
          %p383 = pneg %p153
        $region70: #{classifier_net.1} parent=63 // pred_check_branch
          %385 = sbr.rel (%p383) target = $region72
        $region71: #{classifier_net.1} parent=63 // pred_region
          %386 = dma.done [#allocation6], 5120
        $region72: #{classifier_net.1} parent=63 // pred_fallthru
          _
        // Predicated region
        $region73: #{classifier_net.1} parent=63 // pred_check
          %p387 = pneg %p237
        $region74: #{classifier_net.1} parent=63 // pred_check_branch
          %389 = sbr.rel (%p387) target = $region76
        $region75: #{classifier_net.1} parent=63 // pred_region
          %390 = dma.done [#allocation6], 1024
        $region76: #{classifier_net.1} parent=63 // pred_fallthru
          _
        %s391 = smul.u32 4, %s27
        %p392 = scmp.lt.s32.totalorder %s391, 7
        %s393 = scalar_select %p392, %s391, 7
        %s394 = smul.addr %s393, 4
        %s395 = scalar_lea.vmem %s0, %s394
        %p396 = pneg %p48
        %p397 = pneg %p45
        %p398 = pneg %p69
        %p399 = pneg %p66
        %p400 = pneg %p90
        %p401 = pneg %p87
        %p402 = pneg %p111
        %p403 = pneg %p108
        %p404 = pneg %p132
        %p405 = pneg %p129
        %p406 = pneg %p153
        %p407 = pneg %p150
        %p408 = pneg %p174
        %p409 = pneg %p171
        %p410 = pneg %p195
        %p411 = pneg %p192
        %p412 = pneg %p216
        %p413 = pneg %p213
        %p414 = pneg %p237
        %p415 = pneg %p234
        %p416 = pneg %p258
        %p417 = pneg %p255
        %p418 = pneg %p284
        %p419 = pneg %p281
        %s420 = sand.u32 %s271, 1
        %s421 = scalar_lea.sflag [#allocation4], %s420
        %s422 = sand.u32 %s271, 1
        %s423 = scalar_lea.vmem [#allocation8], %s422
        %s424 = smul.u32 4, %s27
        %p425 = scmp.lt.s32.totalorder %s424, 7
        %s426 = scalar_select %p425, %s424, 7
        %s427 = smul.addr %s426, 4
        %s428 = scalar_lea.vmem %s0, %s427
        %s429 = smul.u32 4, %s27
        %v431 = vld [vmem:[%s428] sm:$0xf]
        %v432 = vld [vmem:[%s428 + $0x4] sm:$0xf]
        %v433 = vld [vmem:[%s428 + $0x8] sm:$0xf]
        %v434 = vld [vmem:[%s428 + $0xc] sm:$0xf]
        %v435 = vld [vmem:[%s1] sm:$0xf]
        %v436 = vld [vmem:[%s1 + $0x4] sm:$0xf]
        %v437 = vld [vmem:[%s1 + $0x8] sm:$0xf]
        %v438 = vld [vmem:[%s1 + $0xc] sm:$0xf]
        %v439 = vld [vmem:[%s1 + $0x10] sm:$0xf]
        %v440 = vld [vmem:[%s1 + $0x14] sm:$0xf]
        %v441 = vld [vmem:[%s1 + $0x18] sm:$0xf]
        %v442 = vld [vmem:[%s1 + $0x1c] sm:$0xf]
        %v443 = vld [vmem:[%s1 + $0x20] sm:$0xf]
        %v444 = vld [vmem:[%s1 + $0x24] sm:$0xf]
        %v445 = vld [vmem:[%s1 + $0x28] sm:$0xf]
        %v446 = vld [vmem:[%s1 + $0x2c] sm:$0xf]
        %v447 = vld [vmem:[%s1 + $0x30] sm:$0xf]
        %v448 = vld [vmem:[%s1 + $0x34] sm:$0xf]
        %v449 = vld [vmem:[%s1 + $0x38] sm:$0xf]
        %v450 = vld [vmem:[%s1 + $0x3c] sm:$0xf]
        %v451 = vld [vmem:[%s1 + $0x40] sm:$0xf]
        %v452 = vld [vmem:[%s1 + $0x44] sm:$0xf]
        %v453 = vld [vmem:[%s1 + $0x48] sm:$0xf]
        %v454 = vld [vmem:[%s1 + $0x4c] sm:$0xf]
        %v455 = vld [vmem:[%s1 + $0x50] sm:$0xf]
        %v456 = vld [vmem:[%s1 + $0x54] sm:$0xf]
        %v457 = vld [vmem:[%s1 + $0x58] sm:$0xf]
        %v458 = vld [vmem:[%s1 + $0x5c] sm:$0xf]
        %v459 = vld [vmem:[%s1 + $0x60] sm:$0xf]
        %v460 = vld [vmem:[%s1 + $0x64] sm:$0xf]
        %v461 = vld [vmem:[%s1 + $0x68] sm:$0xf]
        %v462 = vld [vmem:[%s1 + $0x6c] sm:$0xf]
        %v463 = vld [vmem:[%s1 + $0x70] sm:$0xf]
        %v464 = vld [vmem:[%s1 + $0x74] sm:$0xf]
        %v465 = vld [vmem:[%s1 + $0x78] sm:$0xf]
        %v466 = vld [vmem:[%s1 + $0x7c] sm:$0xf]
        %v467 = vld [vmem:[%s1 + $0x80] sm:$0xf]
        %v468 = vld [vmem:[%s1 + $0x84] sm:$0xf]
        %v469 = vld [vmem:[%s1 + $0x88] sm:$0xf]
        %v470 = vld [vmem:[%s1 + $0x8c] sm:$0xf]
        %v471 = vld [vmem:[%s1 + $0x90] sm:$0xf]
        %v472 = vld [vmem:[%s1 + $0x94] sm:$0xf]
        %v473 = vld [vmem:[%s1 + $0x98] sm:$0xf]
        %v474 = vld [vmem:[%s1 + $0x9c] sm:$0xf]
        %v475 = vld [vmem:[%s1 + $0xa0] sm:$0xf]
        %v476 = vld [vmem:[%s1 + $0xa4] sm:$0xf]
        %v477 = vld [vmem:[%s1 + $0xa8] sm:$0xf]
        %v478 = vld [vmem:[%s1 + $0xac] sm:$0xf]
        %v479 = vld [vmem:[%s1 + $0xb0] sm:$0xf]
        %v480 = vld [vmem:[%s1 + $0xb4] sm:$0xf]
        %v481 = vld [vmem:[%s1 + $0xb8] sm:$0xf]
        %v482 = vld [vmem:[%s1 + $0xbc] sm:$0xf]
        %v483 = vld [vmem:[%s1 + $0xc0] sm:$0xf]
        %v484 = vld [vmem:[%s1 + $0xc4] sm:$0xf]
        %v485 = vld [vmem:[%s1 + $0xc8] sm:$0xf]
        %v486 = vld [vmem:[%s1 + $0xcc] sm:$0xf]
        %v487 = vld [vmem:[%s1 + $0xd0] sm:$0xf]
        %v488 = vld [vmem:[%s1 + $0xd4] sm:$0xf]
        %v489 = vld [vmem:[%s1 + $0xd8] sm:$0xf]
        %v490 = vld [vmem:[%s1 + $0xdc] sm:$0xf]
        %v491 = vld [vmem:[%s1 + $0xe0] sm:$0xf]
        %v492 = vld [vmem:[%s1 + $0xe4] sm:$0xf]
        %v493 = vld [vmem:[%s1 + $0xe8] sm:$0xf]
        %v494 = vld [vmem:[%s1 + $0xec] sm:$0xf]
        %v495 = vld [vmem:[%s1 + $0xf0] sm:$0xf]
        %v496 = vld [vmem:[%s1 + $0xf4] sm:$0xf]
        %v497 = vld [vmem:[%s1 + $0xf8] sm:$0xf]
        %v498 = vld [vmem:[%s1 + $0xfc] sm:$0xf]
        %v499 = vld [vmem:[%s1 + $0x100] sm:$0xf]
        %v500 = vld [vmem:[%s1 + $0x104] sm:$0xf]
        %v501 = vld [vmem:[%s1 + $0x108] sm:$0xf]
        %v502 = vld [vmem:[%s1 + $0x10c] sm:$0xf]
        %v503 = vld [vmem:[%s1 + $0x110] sm:$0xf]
        %v504 = vld [vmem:[%s1 + $0x114] sm:$0xf]
        %v505 = vld [vmem:[%s1 + $0x118] sm:$0xf]
        %v506 = vld [vmem:[%s1 + $0x11c] sm:$0xf]
        %v507 = vld [vmem:[%s1 + $0x120] sm:$0xf]
        %v508 = vld [vmem:[%s1 + $0x124] sm:$0xf]
        %v509 = vld [vmem:[%s1 + $0x128] sm:$0xf]
        %v510 = vld [vmem:[%s1 + $0x12c] sm:$0xf]
        %v511 = vld [vmem:[%s1 + $0x130] sm:$0xf]
        %v512 = vld [vmem:[%s1 + $0x134] sm:$0xf]
        %v513 = vld [vmem:[%s1 + $0x138] sm:$0xf]
        %v514 = vld [vmem:[%s1 + $0x13c] sm:$0xf]
        %s515 = scalar_lea.vmem %s1, 320
        %v516 = vld [vmem:[%s515] sm:$0xf]
        %v517 = vld [vmem:[%s515 + $0x4] sm:$0xf]
        %v518 = vld [vmem:[%s515 + $0x8] sm:$0xf]
        %v519 = vld [vmem:[%s515 + $0xc] sm:$0xf]
        %v520 = vld [vmem:[%s515 + $0x10] sm:$0xf]
        %v521 = vld [vmem:[%s515 + $0x14] sm:$0xf]
        %v522 = vld [vmem:[%s515 + $0x18] sm:$0xf]
        %v523 = vld [vmem:[%s515 + $0x1c] sm:$0xf]
        %v524 = vld [vmem:[%s515 + $0x20] sm:$0xf]
        %v525 = vld [vmem:[%s515 + $0x24] sm:$0xf]
        %v526 = vld [vmem:[%s515 + $0x28] sm:$0xf]
        %v527 = vld [vmem:[%s515 + $0x2c] sm:$0xf]
        %v528 = vld [vmem:[%s515 + $0x30] sm:$0xf]
        %v529 = vld [vmem:[%s515 + $0x34] sm:$0xf]
        %v530 = vld [vmem:[%s515 + $0x38] sm:$0xf]
        %v531 = vld [vmem:[%s515 + $0x3c] sm:$0xf]
        %v532 = vld [vmem:[%s515 + $0x40] sm:$0xf]
        %v533 = vld [vmem:[%s515 + $0x44] sm:$0xf]
        %v534 = vld [vmem:[%s515 + $0x48] sm:$0xf]
        %v535 = vld [vmem:[%s515 + $0x4c] sm:$0xf]
        %v536 = vld [vmem:[%s515 + $0x50] sm:$0xf]
        %v537 = vld [vmem:[%s515 + $0x54] sm:$0xf]
        %v538 = vld [vmem:[%s515 + $0x58] sm:$0xf]
        %v539 = vld [vmem:[%s515 + $0x5c] sm:$0xf]
        %v540 = vld [vmem:[%s515 + $0x60] sm:$0xf]
        %v541 = vld [vmem:[%s515 + $0x64] sm:$0xf]
        %v542 = vld [vmem:[%s515 + $0x68] sm:$0xf]
        %v543 = vld [vmem:[%s515 + $0x6c] sm:$0xf]
        %v544 = vld [vmem:[%s515 + $0x70] sm:$0xf]
        %v545 = vld [vmem:[%s515 + $0x74] sm:$0xf]
        %v546 = vld [vmem:[%s515 + $0x78] sm:$0xf]
        %v547 = vld [vmem:[%s515 + $0x7c] sm:$0xf]
        %v548 = vld [vmem:[%s515 + $0x80] sm:$0xf]
        %v549 = vld [vmem:[%s515 + $0x84] sm:$0xf]
        %v550 = vld [vmem:[%s515 + $0x88] sm:$0xf]
        %v551 = vld [vmem:[%s515 + $0x8c] sm:$0xf]
        %v552 = vld [vmem:[%s515 + $0x90] sm:$0xf]
        %v553 = vld [vmem:[%s515 + $0x94] sm:$0xf]
        %v554 = vld [vmem:[%s515 + $0x98] sm:$0xf]
        %v555 = vld [vmem:[%s515 + $0x9c] sm:$0xf]
        %v556 = vld [vmem:[%s515 + $0xa0] sm:$0xf]
        %v557 = vld [vmem:[%s515 + $0xa4] sm:$0xf]
        %v558 = vld [vmem:[%s515 + $0xa8] sm:$0xf]
        %v559 = vld [vmem:[%s515 + $0xac] sm:$0xf]
        %v560 = vld [vmem:[%s515 + $0xb0] sm:$0xf]
        %v561 = vld [vmem:[%s515 + $0xb4] sm:$0xf]
        %v562 = vld [vmem:[%s515 + $0xb8] sm:$0xf]
        %v563 = vld [vmem:[%s515 + $0xbc] sm:$0xf]
        %v564 = vld [vmem:[%s515 + $0xc0] sm:$0xf]
        %v565 = vld [vmem:[%s515 + $0xc4] sm:$0xf]
        %v566 = vld [vmem:[%s515 + $0xc8] sm:$0xf]
        %v567 = vld [vmem:[%s515 + $0xcc] sm:$0xf]
        %v568 = vld [vmem:[%s515 + $0xd0] sm:$0xf]
        %v569 = vld [vmem:[%s515 + $0xd4] sm:$0xf]
        %v570 = vld [vmem:[%s515 + $0xd8] sm:$0xf]
        %v571 = vld [vmem:[%s515 + $0xdc] sm:$0xf]
        %v572 = vld [vmem:[%s515 + $0xe0] sm:$0xf]
        %v573 = vld [vmem:[%s515 + $0xe4] sm:$0xf]
        %v574 = vld [vmem:[%s515 + $0xe8] sm:$0xf]
        %v575 = vld [vmem:[%s515 + $0xec] sm:$0xf]
        %v576 = vld [vmem:[%s515 + $0xf0] sm:$0xf]
        %v577 = vld [vmem:[%s515 + $0xf4] sm:$0xf]
        %v578 = vld [vmem:[%s515 + $0xf8] sm:$0xf]
        %v579 = vld [vmem:[%s515 + $0xfc] sm:$0xf]
        %v580 = vld [vmem:[%s515 + $0x100] sm:$0xf]
        %v581 = vld [vmem:[%s515 + $0x104] sm:$0xf]
        %v582 = vld [vmem:[%s515 + $0x108] sm:$0xf]
        %v583 = vld [vmem:[%s515 + $0x10c] sm:$0xf]
        %v584 = vld [vmem:[%s515 + $0x110] sm:$0xf]
        %v585 = vld [vmem:[%s515 + $0x114] sm:$0xf]
        %v586 = vld [vmem:[%s515 + $0x118] sm:$0xf]
        %v587 = vld [vmem:[%s515 + $0x11c] sm:$0xf]
        %v588 = vld [vmem:[%s515 + $0x120] sm:$0xf]
        %v589 = vld [vmem:[%s515 + $0x124] sm:$0xf]
        %v590 = vld [vmem:[%s515 + $0x128] sm:$0xf]
        %v591 = vld [vmem:[%s515 + $0x12c] sm:$0xf]
        %v592 = vld [vmem:[%s515 + $0x130] sm:$0xf]
        %v593 = vld [vmem:[%s515 + $0x134] sm:$0xf]
        %v594 = vld [vmem:[%s515 + $0x138] sm:$0xf]
        %v595 = vld [vmem:[%s515 + $0x13c] sm:$0xf]
        %v596 = vld [vmem:[%s2] sm:$0x1]
        %v598 = vunpack.c.l.b16 %v431
        %v599 = vpack.c.b16 %v598, %v598
        %v601 = vshrl.u32 %v599, 16
        %v603 = vshll.u32 %v599, 16
        %v605 = vrot.slane %v603, 1
        %v606 = vor.u32 %v601, %v605
        %v688 = vunpack.c.l.b16 %v435
        %v689 = vunpack.c.l.b16 %v436
        %v690 = vunpack.c.l.b16 %v437
        %v691 = vunpack.c.l.b16 %v438
        %v692 = vunpack.c.l.b16 %v439
        %v693 = vunpack.c.l.b16 %v440
        %v694 = vunpack.c.l.b16 %v441
        %v695 = vunpack.c.l.b16 %v442
        %v696 = vunpack.c.l.b16 %v443
        %v697 = vunpack.c.l.b16 %v444
        %v698 = vunpack.c.l.b16 %v445
        %v699 = vunpack.c.l.b16 %v446
        %v700 = vunpack.c.l.b16 %v447
        %v701 = vunpack.c.l.b16 %v448
        %v702 = vunpack.c.l.b16 %v449
        %v703 = vunpack.c.l.b16 %v450
        %v704 = vunpack.c.l.b16 %v451
        %v705 = vunpack.c.l.b16 %v452
        %v706 = vunpack.c.l.b16 %v453
        %v707 = vunpack.c.l.b16 %v454
        %v708 = vunpack.c.l.b16 %v455
        %v709 = vunpack.c.l.b16 %v456
        %v710 = vunpack.c.l.b16 %v457
        %v711 = vunpack.c.l.b16 %v458
        %v712 = vunpack.c.l.b16 %v459
        %v713 = vunpack.c.l.b16 %v460
        %v714 = vunpack.c.l.b16 %v461
        %v715 = vunpack.c.l.b16 %v462
        %v716 = vunpack.c.l.b16 %v463
        %v717 = vunpack.c.l.b16 %v464
        %v718 = vunpack.c.l.b16 %v465
        %v719 = vunpack.c.l.b16 %v466
        %v720 = vunpack.c.l.b16 %v467
        %v721 = vunpack.c.l.b16 %v468
        %v722 = vunpack.c.l.b16 %v469
        %v723 = vunpack.c.l.b16 %v470
        %v724 = vunpack.c.l.b16 %v471
        %v725 = vunpack.c.l.b16 %v472
        %v726 = vunpack.c.l.b16 %v473
        %v727 = vunpack.c.l.b16 %v474
        %v728 = vunpack.c.l.b16 %v475
        %v729 = vunpack.c.l.b16 %v476
        %v730 = vunpack.c.l.b16 %v477
        %v731 = vunpack.c.l.b16 %v478
        %v732 = vunpack.c.l.b16 %v479
        %v733 = vunpack.c.l.b16 %v480
        %v734 = vunpack.c.l.b16 %v481
        %v735 = vunpack.c.l.b16 %v482
        %v736 = vunpack.c.l.b16 %v483
        %v737 = vunpack.c.l.b16 %v484
        %v738 = vunpack.c.l.b16 %v485
        %v739 = vunpack.c.l.b16 %v486
        %v740 = vunpack.c.l.b16 %v487
        %v741 = vunpack.c.l.b16 %v488
        %v742 = vunpack.c.l.b16 %v489
        %v743 = vunpack.c.l.b16 %v490
        %v744 = vunpack.c.l.b16 %v491
        %v745 = vunpack.c.l.b16 %v492
        %v746 = vunpack.c.l.b16 %v493
        %v747 = vunpack.c.l.b16 %v494
        %v748 = vunpack.c.l.b16 %v495
        %v749 = vunpack.c.l.b16 %v496
        %v750 = vunpack.c.l.b16 %v497
        %v751 = vunpack.c.l.b16 %v498
        %v752 = vunpack.c.l.b16 %v499
        %v753 = vunpack.c.l.b16 %v500
        %v754 = vunpack.c.l.b16 %v501
        %v755 = vunpack.c.l.b16 %v502
        %v756 = vunpack.c.l.b16 %v503
        %v757 = vunpack.c.l.b16 %v504
        %v758 = vunpack.c.l.b16 %v505
        %v759 = vunpack.c.l.b16 %v506
        %v760 = vunpack.c.l.b16 %v507
        %v761 = vunpack.c.l.b16 %v508
        %v762 = vunpack.c.l.b16 %v509
        %v763 = vunpack.c.l.b16 %v510
        %v764 = vunpack.c.l.b16 %v511
        %v765 = vunpack.c.l.b16 %v512
        %v766 = vunpack.c.l.b16 %v513
        %v767 = vunpack.c.l.b16 %v514
        %v768 = vpack.c.b16 %v689, %v688
        %v769 = vpack.c.b16 %v691, %v690
        %v770 = vpack.c.b16 %v693, %v692
        %v771 = vpack.c.b16 %v695, %v694
        %v772 = vpack.c.b16 %v697, %v696
        %v773 = vpack.c.b16 %v699, %v698
        %v774 = vpack.c.b16 %v701, %v700
        %v775 = vpack.c.b16 %v703, %v702
        %v776 = vpack.c.b16 %v705, %v704
        %v777 = vpack.c.b16 %v707, %v706
        %v778 = vpack.c.b16 %v709, %v708
        %v779 = vpack.c.b16 %v711, %v710
        %v780 = vpack.c.b16 %v713, %v712
        %v781 = vpack.c.b16 %v715, %v714
        %v782 = vpack.c.b16 %v717, %v716
        %v783 = vpack.c.b16 %v719, %v718
        %v784 = vpack.c.b16 %v721, %v720
        %v785 = vpack.c.b16 %v723, %v722
        %v786 = vpack.c.b16 %v725, %v724
        %v787 = vpack.c.b16 %v727, %v726
        %v788 = vpack.c.b16 %v729, %v728
        %v789 = vpack.c.b16 %v731, %v730
        %v790 = vpack.c.b16 %v733, %v732
        %v791 = vpack.c.b16 %v735, %v734
        %v792 = vpack.c.b16 %v737, %v736
        %v793 = vpack.c.b16 %v739, %v738
        %v794 = vpack.c.b16 %v741, %v740
        %v795 = vpack.c.b16 %v743, %v742
        %v796 = vpack.c.b16 %v745, %v744
        %v797 = vpack.c.b16 %v747, %v746
        %v798 = vpack.c.b16 %v749, %v748
        %v799 = vpack.c.b16 %v751, %v750
        %v800 = vpack.c.b16 %v753, %v752
        %v801 = vpack.c.b16 %v755, %v754
        %v802 = vpack.c.b16 %v757, %v756
        %v803 = vpack.c.b16 %v759, %v758
        %v804 = vpack.c.b16 %v761, %v760
        %v805 = vpack.c.b16 %v763, %v762
        %v806 = vpack.c.b16 %v765, %v764
        %v807 = vpack.c.b16 %v767, %v766
        %848 = vmatprep.subr.bf16.mxu0 0
        %849 = vmatpush1.bf16.msra.mxu0 %v775
        %850 = vmatprep.subr.bf16.mxu0 0
        %851 = vmatpush1.bf16.msra.mxu0 %v774
        %852 = vmatprep.subr.bf16.mxu0 0
        %853 = vmatpush1.bf16.msra.mxu0 %v773
        %854 = vmatprep.subr.bf16.mxu0 0
        %855 = vmatpush1.bf16.msra.mxu0 %v772
        %856 = vmatprep.subr.bf16.mxu0 0
        %857 = vmatpush1.bf16.msra.mxu0 %v771
        %858 = vmatprep.subr.bf16.mxu0 0
        %859 = vmatpush1.bf16.msra.mxu0 %v770
        %860 = vmatprep.subr.bf16.mxu0 0
        %861 = vmatpush1.bf16.msra.mxu0 %v769
        %862 = vmatprep.subr.bf16.mxu0 0
        %863 = vmatpush1.bf16.msra.mxu0 %v768
        %864 = vmatprep.subr.bf16.mxu0 0
        %865 = vmatpush2.bf16.msra.mxu0 %v783
        %866 = vmatprep.subr.bf16.mxu0 0
        %867 = vmatpush2.bf16.msra.mxu0 %v782
        %868 = vmatprep.subr.bf16.mxu0 0
        %869 = vmatpush2.bf16.msra.mxu0 %v781
        %870 = vmatprep.subr.bf16.mxu0 0
        %871 = vmatpush2.bf16.msra.mxu0 %v780
        %872 = vmatprep.subr.bf16.mxu0 0
        %873 = vmatpush2.bf16.msra.mxu0 %v779
        %874 = vmatprep.subr.bf16.mxu0 0
        %875 = vmatpush2.bf16.msra.mxu0 %v778
        %876 = vmatprep.subr.bf16.mxu0 0
        %877 = vmatpush2.bf16.msra.mxu0 %v777
        %878 = vmatprep.subr.bf16.mxu0 0
        %879 = vmatpush2.bf16.msra.mxu0 %v776
        %880 = vmatprep.mubr.bf16.mxu0 %v432
        %881 = vmatmul.mubr.bf16.gmra.mxu0 %v431
        %v882 = vpop.f32.mrf.mxu0
        %v883 = vadd.f32 0.0, %v882
        %v884 = vpop.f32.mrf.mxu0
        %v885 = vpop.f32.mrf.mxu0
        %v886 = vpop.f32.mrf.mxu0
        %887 = vdwg.mxu0
        %888 = vmatprep.subr.bf16.mxu0 0
        %889 = vmatpush1.bf16.msra.mxu0 %v791
        %890 = vmatprep.subr.bf16.mxu0 0
        %891 = vmatpush1.bf16.msra.mxu0 %v790
        %892 = vmatprep.subr.bf16.mxu0 0
        %893 = vmatpush1.bf16.msra.mxu0 %v789
        %894 = vmatprep.subr.bf16.mxu0 0
        %895 = vmatpush1.bf16.msra.mxu0 %v788
        %896 = vmatprep.subr.bf16.mxu0 0
        %897 = vmatpush1.bf16.msra.mxu0 %v787
        %898 = vmatprep.subr.bf16.mxu0 0
        %899 = vmatpush1.bf16.msra.mxu0 %v786
        %900 = vmatprep.subr.bf16.mxu0 0
        %901 = vmatpush1.bf16.msra.mxu0 %v785
        %902 = vmatprep.subr.bf16.mxu0 0
        %903 = vmatpush1.bf16.msra.mxu0 %v784
        %904 = vmatprep.subr.bf16.mxu0 0
        %905 = vmatpush2.bf16.msra.mxu0 %v799
        %906 = vmatprep.subr.bf16.mxu0 0
        %907 = vmatpush2.bf16.msra.mxu0 %v798
        %908 = vmatprep.subr.bf16.mxu0 0
        %909 = vmatpush2.bf16.msra.mxu0 %v797
        %910 = vmatprep.subr.bf16.mxu0 0
        %911 = vmatpush2.bf16.msra.mxu0 %v796
        %912 = vmatprep.subr.bf16.mxu0 0
        %913 = vmatpush2.bf16.msra.mxu0 %v795
        %914 = vmatprep.subr.bf16.mxu0 0
        %915 = vmatpush2.bf16.msra.mxu0 %v794
        %916 = vmatprep.subr.bf16.mxu0 0
        %917 = vmatpush2.bf16.msra.mxu0 %v793
        %918 = vmatprep.subr.bf16.mxu0 0
        %919 = vmatpush2.bf16.msra.mxu0 %v792
        %920 = vmatprep.mubr.bf16.mxu0 %v434
        %921 = vmatmul.mubr.bf16.gmra.mxu0 %v433
        %v922 = vpop.f32.mrf.mxu0
        %v923 = vadd.f32 %v883, %v922
        %v924 = vpop.f32.mrf.mxu0
        %v925 = vpop.f32.mrf.mxu0
        %v926 = vpop.f32.mrf.mxu0
        %927 = vdwg.mxu0
        %928 = vmatprep.subr.bf16.mxu0 0
        %929 = vmatpush1.bf16.msra.mxu0 %v807
        %930 = vmatprep.subr.bf16.mxu0 0
        %931 = vmatpush1.bf16.msra.mxu0 %v806
        %932 = vmatprep.subr.bf16.mxu0 0
        %933 = vmatpush1.bf16.msra.mxu0 %v805
        %934 = vmatprep.subr.bf16.mxu0 0
        %935 = vmatpush1.bf16.msra.mxu0 %v804
        %936 = vmatprep.subr.bf16.mxu0 0
        %937 = vmatpush1.bf16.msra.mxu0 %v803
        %938 = vmatprep.subr.bf16.mxu0 0
        %939 = vmatpush1.bf16.msra.mxu0 %v802
        %940 = vmatprep.subr.bf16.mxu0 0
        %941 = vmatpush1.bf16.msra.mxu0 %v801
        %942 = vmatprep.subr.bf16.mxu0 0
        %943 = vmatpush1.bf16.msra.mxu0 %v800
        %944 = vmatprep.subr.bf16.mxu0 0
        %945 = vmatpush2.bf16.msra.mxu0 0
        %946 = vmatprep.subr.bf16.mxu0 0
        %947 = vmatpush2.bf16.msra.mxu0 0
        %948 = vmatprep.subr.bf16.mxu0 0
        %949 = vmatpush2.bf16.msra.mxu0 0
        %950 = vmatprep.subr.bf16.mxu0 0
        %951 = vmatpush2.bf16.msra.mxu0 0
        %952 = vmatprep.subr.bf16.mxu0 0
        %953 = vmatpush2.bf16.msra.mxu0 0
        %954 = vmatprep.subr.bf16.mxu0 0
        %955 = vmatpush2.bf16.msra.mxu0 0
        %956 = vmatprep.subr.bf16.mxu0 0
        %957 = vmatpush2.bf16.msra.mxu0 0
        %958 = vmatprep.subr.bf16.mxu0 0
        %959 = vmatpush2.bf16.msra.mxu0 0
        %960 = vmatprep.mubr.bf16.mxu0 0
        %961 = vmatmul.mubr.bf16.gmra.mxu0 %v606
        %v962 = vpop.f32.mrf.mxu0
        %v963 = vadd.f32 %v923, %v962
        %v964 = vpop.f32.mrf.mxu0
        %v965 = vpop.f32.mrf.mxu0
        %v966 = vpop.f32.mrf.mxu0
        %967 = vdwg.mxu0
        %v1048 = vunpack.c.l.b16 %v516
        %v1049 = vunpack.c.l.b16 %v517
        %v1050 = vunpack.c.l.b16 %v518
        %v1051 = vunpack.c.l.b16 %v519
        %v1052 = vunpack.c.l.b16 %v520
        %v1053 = vunpack.c.l.b16 %v521
        %v1054 = vunpack.c.l.b16 %v522
        %v1055 = vunpack.c.l.b16 %v523
        %v1056 = vunpack.c.l.b16 %v524
        %v1057 = vunpack.c.l.b16 %v525
        %v1058 = vunpack.c.l.b16 %v526
        %v1059 = vunpack.c.l.b16 %v527
        %v1060 = vunpack.c.l.b16 %v528
        %v1061 = vunpack.c.l.b16 %v529
        %v1062 = vunpack.c.l.b16 %v530
        %v1063 = vunpack.c.l.b16 %v531
        %v1064 = vunpack.c.l.b16 %v532
        %v1065 = vunpack.c.l.b16 %v533
        %v1066 = vunpack.c.l.b16 %v534
        %v1067 = vunpack.c.l.b16 %v535
        %v1068 = vunpack.c.l.b16 %v536
        %v1069 = vunpack.c.l.b16 %v537
        %v1070 = vunpack.c.l.b16 %v538
        %v1071 = vunpack.c.l.b16 %v539
        %v1072 = vunpack.c.l.b16 %v540
        %v1073 = vunpack.c.l.b16 %v541
        %v1074 = vunpack.c.l.b16 %v542
        %v1075 = vunpack.c.l.b16 %v543
        %v1076 = vunpack.c.l.b16 %v544
        %v1077 = vunpack.c.l.b16 %v545
        %v1078 = vunpack.c.l.b16 %v546
        %v1079 = vunpack.c.l.b16 %v547
        %v1080 = vunpack.c.l.b16 %v548
        %v1081 = vunpack.c.l.b16 %v549
        %v1082 = vunpack.c.l.b16 %v550
        %v1083 = vunpack.c.l.b16 %v551
        %v1084 = vunpack.c.l.b16 %v552
        %v1085 = vunpack.c.l.b16 %v553
        %v1086 = vunpack.c.l.b16 %v554
        %v1087 = vunpack.c.l.b16 %v555
        %v1088 = vunpack.c.l.b16 %v556
        %v1089 = vunpack.c.l.b16 %v557
        %v1090 = vunpack.c.l.b16 %v558
        %v1091 = vunpack.c.l.b16 %v559
        %v1092 = vunpack.c.l.b16 %v560
        %v1093 = vunpack.c.l.b16 %v561
        %v1094 = vunpack.c.l.b16 %v562
        %v1095 = vunpack.c.l.b16 %v563
        %v1096 = vunpack.c.l.b16 %v564
        %v1097 = vunpack.c.l.b16 %v565
        %v1098 = vunpack.c.l.b16 %v566
        %v1099 = vunpack.c.l.b16 %v567
        %v1100 = vunpack.c.l.b16 %v568
        %v1101 = vunpack.c.l.b16 %v569
        %v1102 = vunpack.c.l.b16 %v570
        %v1103 = vunpack.c.l.b16 %v571
        %v1104 = vunpack.c.l.b16 %v572
        %v1105 = vunpack.c.l.b16 %v573
        %v1106 = vunpack.c.l.b16 %v574
        %v1107 = vunpack.c.l.b16 %v575
        %v1108 = vunpack.c.l.b16 %v576
        %v1109 = vunpack.c.l.b16 %v577
        %v1110 = vunpack.c.l.b16 %v578
        %v1111 = vunpack.c.l.b16 %v579
        %v1112 = vunpack.c.l.b16 %v580
        %v1113 = vunpack.c.l.b16 %v581
        %v1114 = vunpack.c.l.b16 %v582
        %v1115 = vunpack.c.l.b16 %v583
        %v1116 = vunpack.c.l.b16 %v584
        %v1117 = vunpack.c.l.b16 %v585
        %v1118 = vunpack.c.l.b16 %v586
        %v1119 = vunpack.c.l.b16 %v587
        %v1120 = vunpack.c.l.b16 %v588
        %v1121 = vunpack.c.l.b16 %v589
        %v1122 = vunpack.c.l.b16 %v590
        %v1123 = vunpack.c.l.b16 %v591
        %v1124 = vunpack.c.l.b16 %v592
        %v1125 = vunpack.c.l.b16 %v593
        %v1126 = vunpack.c.l.b16 %v594
        %v1127 = vunpack.c.l.b16 %v595
        %v1128 = vpack.c.b16 %v1049, %v1048
        %v1129 = vpack.c.b16 %v1051, %v1050
        %v1130 = vpack.c.b16 %v1053, %v1052
        %v1131 = vpack.c.b16 %v1055, %v1054
        %v1132 = vpack.c.b16 %v1057, %v1056
        %v1133 = vpack.c.b16 %v1059, %v1058
        %v1134 = vpack.c.b16 %v1061, %v1060
        %v1135 = vpack.c.b16 %v1063, %v1062
        %v1136 = vpack.c.b16 %v1065, %v1064
        %v1137 = vpack.c.b16 %v1067, %v1066
        %v1138 = vpack.c.b16 %v1069, %v1068
        %v1139 = vpack.c.b16 %v1071, %v1070
        %v1140 = vpack.c.b16 %v1073, %v1072
        %v1141 = vpack.c.b16 %v1075, %v1074
        %v1142 = vpack.c.b16 %v1077, %v1076
        %v1143 = vpack.c.b16 %v1079, %v1078
        %v1144 = vpack.c.b16 %v1081, %v1080
        %v1145 = vpack.c.b16 %v1083, %v1082
        %v1146 = vpack.c.b16 %v1085, %v1084
        %v1147 = vpack.c.b16 %v1087, %v1086
        %v1148 = vpack.c.b16 %v1089, %v1088
        %v1149 = vpack.c.b16 %v1091, %v1090
        %v1150 = vpack.c.b16 %v1093, %v1092
        %v1151 = vpack.c.b16 %v1095, %v1094
        %v1152 = vpack.c.b16 %v1097, %v1096
        %v1153 = vpack.c.b16 %v1099, %v1098
        %v1154 = vpack.c.b16 %v1101, %v1100
        %v1155 = vpack.c.b16 %v1103, %v1102
        %v1156 = vpack.c.b16 %v1105, %v1104
        %v1157 = vpack.c.b16 %v1107, %v1106
        %v1158 = vpack.c.b16 %v1109, %v1108
        %v1159 = vpack.c.b16 %v1111, %v1110
        %v1160 = vpack.c.b16 %v1113, %v1112
        %v1161 = vpack.c.b16 %v1115, %v1114
        %v1162 = vpack.c.b16 %v1117, %v1116
        %v1163 = vpack.c.b16 %v1119, %v1118
        %v1164 = vpack.c.b16 %v1121, %v1120
        %v1165 = vpack.c.b16 %v1123, %v1122
        %v1166 = vpack.c.b16 %v1125, %v1124
        %v1167 = vpack.c.b16 %v1127, %v1126
        %1208 = vmatprep.subr.bf16.mxu0 0
        %1209 = vmatpush1.bf16.msra.mxu0 %v1135
        %1210 = vmatprep.subr.bf16.mxu0 0
        %1211 = vmatpush1.bf16.msra.mxu0 %v1134
        %1212 = vmatprep.subr.bf16.mxu0 0
        %1213 = vmatpush1.bf16.msra.mxu0 %v1133
        %1214 = vmatprep.subr.bf16.mxu0 0
        %1215 = vmatpush1.bf16.msra.mxu0 %v1132
        %1216 = vmatprep.subr.bf16.mxu0 0
        %1217 = vmatpush1.bf16.msra.mxu0 %v1131
        %1218 = vmatprep.subr.bf16.mxu0 0
        %1219 = vmatpush1.bf16.msra.mxu0 %v1130
        %1220 = vmatprep.subr.bf16.mxu0 0
        %1221 = vmatpush1.bf16.msra.mxu0 %v1129
        %1222 = vmatprep.subr.bf16.mxu0 0
        %1223 = vmatpush1.bf16.msra.mxu0 %v1128
        %1224 = vmatprep.subr.bf16.mxu0 0
        %1225 = vmatpush2.bf16.msra.mxu0 %v1143
        %1226 = vmatprep.subr.bf16.mxu0 0
        %1227 = vmatpush2.bf16.msra.mxu0 %v1142
        %1228 = vmatprep.subr.bf16.mxu0 0
        %1229 = vmatpush2.bf16.msra.mxu0 %v1141
        %1230 = vmatprep.subr.bf16.mxu0 0
        %1231 = vmatpush2.bf16.msra.mxu0 %v1140
        %1232 = vmatprep.subr.bf16.mxu0 0
        %1233 = vmatpush2.bf16.msra.mxu0 %v1139
        %1234 = vmatprep.subr.bf16.mxu0 0
        %1235 = vmatpush2.bf16.msra.mxu0 %v1138
        %1236 = vmatprep.subr.bf16.mxu0 0
        %1237 = vmatpush2.bf16.msra.mxu0 %v1137
        %1238 = vmatprep.subr.bf16.mxu0 0
        %1239 = vmatpush2.bf16.msra.mxu0 %v1136
        %1240 = vmatprep.mubr.bf16.mxu0 %v432
        %1241 = vmatmul.mubr.bf16.gmra.mxu0 %v431
        %v1242 = vpop.f32.mrf.mxu0
        %v1243 = vadd.f32 0.0, %v1242
        %v1244 = vpop.f32.mrf.mxu0
        %v1245 = vpop.f32.mrf.mxu0
        %v1246 = vpop.f32.mrf.mxu0
        %1247 = vdwg.mxu0
        %1248 = vmatprep.subr.bf16.mxu0 0
        %1249 = vmatpush1.bf16.msra.mxu0 %v1151
        %1250 = vmatprep.subr.bf16.mxu0 0
        %1251 = vmatpush1.bf16.msra.mxu0 %v1150
        %1252 = vmatprep.subr.bf16.mxu0 0
        %1253 = vmatpush1.bf16.msra.mxu0 %v1149
        %1254 = vmatprep.subr.bf16.mxu0 0
        %1255 = vmatpush1.bf16.msra.mxu0 %v1148
        %1256 = vmatprep.subr.bf16.mxu0 0
        %1257 = vmatpush1.bf16.msra.mxu0 %v1147
        %1258 = vmatprep.subr.bf16.mxu0 0
        %1259 = vmatpush1.bf16.msra.mxu0 %v1146
        %1260 = vmatprep.subr.bf16.mxu0 0
        %1261 = vmatpush1.bf16.msra.mxu0 %v1145
        %1262 = vmatprep.subr.bf16.mxu0 0
        %1263 = vmatpush1.bf16.msra.mxu0 %v1144
        %1264 = vmatprep.subr.bf16.mxu0 0
        %1265 = vmatpush2.bf16.msra.mxu0 %v1159
        %1266 = vmatprep.subr.bf16.mxu0 0
        %1267 = vmatpush2.bf16.msra.mxu0 %v1158
        %1268 = vmatprep.subr.bf16.mxu0 0
        %1269 = vmatpush2.bf16.msra.mxu0 %v1157
        %1270 = vmatprep.subr.bf16.mxu0 0
        %1271 = vmatpush2.bf16.msra.mxu0 %v1156
        %1272 = vmatprep.subr.bf16.mxu0 0
        %1273 = vmatpush2.bf16.msra.mxu0 %v1155
        %1274 = vmatprep.subr.bf16.mxu0 0
        %1275 = vmatpush2.bf16.msra.mxu0 %v1154
        %1276 = vmatprep.subr.bf16.mxu0 0
        %1277 = vmatpush2.bf16.msra.mxu0 %v1153
        %1278 = vmatprep.subr.bf16.mxu0 0
        %1279 = vmatpush2.bf16.msra.mxu0 %v1152
        %1280 = vmatprep.mubr.bf16.mxu0 %v434
        %1281 = vmatmul.mubr.bf16.gmra.mxu0 %v433
        %v1282 = vpop.f32.mrf.mxu0
        %v1283 = vadd.f32 %v1243, %v1282
        %v1284 = vpop.f32.mrf.mxu0
        %v1285 = vpop.f32.mrf.mxu0
        %v1286 = vpop.f32.mrf.mxu0
        %1287 = vdwg.mxu0
        %1288 = vmatprep.subr.bf16.mxu0 0
        %1289 = vmatpush1.bf16.msra.mxu0 %v1167
        %1290 = vmatprep.subr.bf16.mxu0 0
        %1291 = vmatpush1.bf16.msra.mxu0 %v1166
        %1292 = vmatprep.subr.bf16.mxu0 0
        %1293 = vmatpush1.bf16.msra.mxu0 %v1165
        %1294 = vmatprep.subr.bf16.mxu0 0
        %1295 = vmatpush1.bf16.msra.mxu0 %v1164
        %1296 = vmatprep.subr.bf16.mxu0 0
        %1297 = vmatpush1.bf16.msra.mxu0 %v1163
        %1298 = vmatprep.subr.bf16.mxu0 0
        %1299 = vmatpush1.bf16.msra.mxu0 %v1162
        %1300 = vmatprep.subr.bf16.mxu0 0
        %1301 = vmatpush1.bf16.msra.mxu0 %v1161
        %1302 = vmatprep.subr.bf16.mxu0 0
        %1303 = vmatpush1.bf16.msra.mxu0 %v1160
        %1304 = vmatprep.subr.bf16.mxu0 0
        %1305 = vmatpush2.bf16.msra.mxu0 0
        %1306 = vmatprep.subr.bf16.mxu0 0
        %1307 = vmatpush2.bf16.msra.mxu0 0
        %1308 = vmatprep.subr.bf16.mxu0 0
        %1309 = vmatpush2.bf16.msra.mxu0 0
        %1310 = vmatprep.subr.bf16.mxu0 0
        %1311 = vmatpush2.bf16.msra.mxu0 0
        %1312 = vmatprep.subr.bf16.mxu0 0
        %1313 = vmatpush2.bf16.msra.mxu0 0
        %1314 = vmatprep.subr.bf16.mxu0 0
        %1315 = vmatpush2.bf16.msra.mxu0 0
        %1316 = vmatprep.subr.bf16.mxu0 0
        %1317 = vmatpush2.bf16.msra.mxu0 0
        %1318 = vmatprep.subr.bf16.mxu0 0
        %1319 = vmatpush2.bf16.msra.mxu0 0
        %1320 = vmatprep.mubr.bf16.mxu0 0
        %1321 = vmatmul.mubr.bf16.gmra.mxu0 %v606
        %v1322 = vpop.f32.mrf.mxu0
        %v1323 = vadd.f32 %v1283, %v1322
        %v1324 = vpop.f32.mrf.mxu0
        %v1325 = vpop.f32.mrf.mxu0
        %v1326 = vpop.f32.mrf.mxu0
        %1327 = vdwg.mxu0
        %v1328 = vmax.f32 %v963, %v1323
        %v1330 = vunpack.c.l.b16 %v432
        %v1331 = vpack.c.b16 %v1330, %v1330
        %v1333 = vshrl.u32 %v1331, 16
        %v1335 = vshll.u32 %v1331, 16
        %v1337 = vrot.slane %v1335, 1
        %v1338 = vor.u32 %v1333, %v1337
        %1340 = vmatprep.subr.bf16.mxu0 0
        %1341 = vmatpush1.bf16.msra.mxu0 %v775
        %1342 = vmatprep.subr.bf16.mxu0 0
        %1343 = vmatpush1.bf16.msra.mxu0 %v774
        %1344 = vmatprep.subr.bf16.mxu0 0
        %1345 = vmatpush1.bf16.msra.mxu0 %v773
        %1346 = vmatprep.subr.bf16.mxu0 0
        %1347 = vmatpush1.bf16.msra.mxu0 %v772
        %1348 = vmatprep.subr.bf16.mxu0 0
        %1349 = vmatpush1.bf16.msra.mxu0 %v771
        %1350 = vmatprep.subr.bf16.mxu0 0
        %1351 = vmatpush1.bf16.msra.mxu0 %v770
        %1352 = vmatprep.subr.bf16.mxu0 0
        %1353 = vmatpush1.bf16.msra.mxu0 %v769
        %1354 = vmatprep.subr.bf16.mxu0 0
        %1355 = vmatpush1.bf16.msra.mxu0 %v768
        %1356 = vmatprep.subr.bf16.mxu0 0
        %1357 = vmatpush2.bf16.msra.mxu0 %v783
        %1358 = vmatprep.subr.bf16.mxu0 0
        %1359 = vmatpush2.bf16.msra.mxu0 %v782
        %1360 = vmatprep.subr.bf16.mxu0 0
        %1361 = vmatpush2.bf16.msra.mxu0 %v781
        %1362 = vmatprep.subr.bf16.mxu0 0
        %1363 = vmatpush2.bf16.msra.mxu0 %v780
        %1364 = vmatprep.subr.bf16.mxu0 0
        %1365 = vmatpush2.bf16.msra.mxu0 %v779
        %1366 = vmatprep.subr.bf16.mxu0 0
        %1367 = vmatpush2.bf16.msra.mxu0 %v778
        %1368 = vmatprep.subr.bf16.mxu0 0
        %1369 = vmatpush2.bf16.msra.mxu0 %v777
        %1370 = vmatprep.subr.bf16.mxu0 0
        %1371 = vmatpush2.bf16.msra.mxu0 %v776
        %1372 = vmatprep.mubr.bf16.mxu0 %v433
        %1373 = vmatmul.mubr.bf16.gmra.mxu0 %v432
        %v1374 = vpop.f32.mrf.mxu0
        %v1375 = vadd.f32 0.0, %v1374
        %v1376 = vpop.f32.mrf.mxu0
        %v1377 = vpop.f32.mrf.mxu0
        %v1378 = vpop.f32.mrf.mxu0
        %1379 = vdwg.mxu0
        %1380 = vmatprep.subr.bf16.mxu0 0
        %1381 = vmatpush1.bf16.msra.mxu0 %v791
        %1382 = vmatprep.subr.bf16.mxu0 0
        %1383 = vmatpush1.bf16.msra.mxu0 %v790
        %1384 = vmatprep.subr.bf16.mxu0 0
        %1385 = vmatpush1.bf16.msra.mxu0 %v789
        %1386 = vmatprep.subr.bf16.mxu0 0
        %1387 = vmatpush1.bf16.msra.mxu0 %v788
        %1388 = vmatprep.subr.bf16.mxu0 0
        %1389 = vmatpush1.bf16.msra.mxu0 %v787
        %1390 = vmatprep.subr.bf16.mxu0 0
        %1391 = vmatpush1.bf16.msra.mxu0 %v786
        %1392 = vmatprep.subr.bf16.mxu0 0
        %1393 = vmatpush1.bf16.msra.mxu0 %v785
        %1394 = vmatprep.subr.bf16.mxu0 0
        %1395 = vmatpush1.bf16.msra.mxu0 %v784
        %1396 = vmatprep.subr.bf16.mxu0 0
        %1397 = vmatpush2.bf16.msra.mxu0 %v799
        %1398 = vmatprep.subr.bf16.mxu0 0
        %1399 = vmatpush2.bf16.msra.mxu0 %v798
        %1400 = vmatprep.subr.bf16.mxu0 0
        %1401 = vmatpush2.bf16.msra.mxu0 %v797
        %1402 = vmatprep.subr.bf16.mxu0 0
        %1403 = vmatpush2.bf16.msra.mxu0 %v796
        %1404 = vmatprep.subr.bf16.mxu0 0
        %1405 = vmatpush2.bf16.msra.mxu0 %v795
        %1406 = vmatprep.subr.bf16.mxu0 0
        %1407 = vmatpush2.bf16.msra.mxu0 %v794
        %1408 = vmatprep.subr.bf16.mxu0 0
        %1409 = vmatpush2.bf16.msra.mxu0 %v793
        %1410 = vmatprep.subr.bf16.mxu0 0
        %1411 = vmatpush2.bf16.msra.mxu0 %v792
        %1412 = vmatprep.mubr.bf16.mxu0 %v606
        %1413 = vmatmul.mubr.bf16.gmra.mxu0 %v434
        %v1414 = vpop.f32.mrf.mxu0
        %v1415 = vadd.f32 %v1375, %v1414
        %v1416 = vpop.f32.mrf.mxu0
        %v1417 = vpop.f32.mrf.mxu0
        %v1418 = vpop.f32.mrf.mxu0
        %1419 = vdwg.mxu0
        %1420 = vmatprep.subr.bf16.mxu0 0
        %1421 = vmatpush1.bf16.msra.mxu0 %v807
        %1422 = vmatprep.subr.bf16.mxu0 0
        %1423 = vmatpush1.bf16.msra.mxu0 %v806
        %1424 = vmatprep.subr.bf16.mxu0 0
        %1425 = vmatpush1.bf16.msra.mxu0 %v805
        %1426 = vmatprep.subr.bf16.mxu0 0
        %1427 = vmatpush1.bf16.msra.mxu0 %v804
        %1428 = vmatprep.subr.bf16.mxu0 0
        %1429 = vmatpush1.bf16.msra.mxu0 %v803
        %1430 = vmatprep.subr.bf16.mxu0 0
        %1431 = vmatpush1.bf16.msra.mxu0 %v802
        %1432 = vmatprep.subr.bf16.mxu0 0
        %1433 = vmatpush1.bf16.msra.mxu0 %v801
        %1434 = vmatprep.subr.bf16.mxu0 0
        %1435 = vmatpush1.bf16.msra.mxu0 %v800
        %1436 = vmatprep.subr.bf16.mxu0 0
        %1437 = vmatpush2.bf16.msra.mxu0 0
        %1438 = vmatprep.subr.bf16.mxu0 0
        %1439 = vmatpush2.bf16.msra.mxu0 0
        %1440 = vmatprep.subr.bf16.mxu0 0
        %1441 = vmatpush2.bf16.msra.mxu0 0
        %1442 = vmatprep.subr.bf16.mxu0 0
        %1443 = vmatpush2.bf16.msra.mxu0 0
        %1444 = vmatprep.subr.bf16.mxu0 0
        %1445 = vmatpush2.bf16.msra.mxu0 0
        %1446 = vmatprep.subr.bf16.mxu0 0
        %1447 = vmatpush2.bf16.msra.mxu0 0
        %1448 = vmatprep.subr.bf16.mxu0 0
        %1449 = vmatpush2.bf16.msra.mxu0 0
        %1450 = vmatprep.subr.bf16.mxu0 0
        %1451 = vmatpush2.bf16.msra.mxu0 0
        %1452 = vmatprep.mubr.bf16.mxu0 0
        %1453 = vmatmul.mubr.bf16.gmra.mxu0 %v1338
        %v1454 = vpop.f32.mrf.mxu0
        %v1455 = vadd.f32 %v1415, %v1454
        %v1456 = vpop.f32.mrf.mxu0
        %v1457 = vpop.f32.mrf.mxu0
        %v1458 = vpop.f32.mrf.mxu0
        %1459 = vdwg.mxu0
        %v1460 = vmax.f32 %v1328, %v1455
        %1461 = vmatprep.subr.bf16.mxu0 0
        %1462 = vmatpush1.bf16.msra.mxu0 %v1135
        %1463 = vmatprep.subr.bf16.mxu0 0
        %1464 = vmatpush1.bf16.msra.mxu0 %v1134
        %1465 = vmatprep.subr.bf16.mxu0 0
        %1466 = vmatpush1.bf16.msra.mxu0 %v1133
        %1467 = vmatprep.subr.bf16.mxu0 0
        %1468 = vmatpush1.bf16.msra.mxu0 %v1132
        %1469 = vmatprep.subr.bf16.mxu0 0
        %1470 = vmatpush1.bf16.msra.mxu0 %v1131
        %1471 = vmatprep.subr.bf16.mxu0 0
        %1472 = vmatpush1.bf16.msra.mxu0 %v1130
        %1473 = vmatprep.subr.bf16.mxu0 0
        %1474 = vmatpush1.bf16.msra.mxu0 %v1129
        %1475 = vmatprep.subr.bf16.mxu0 0
        %1476 = vmatpush1.bf16.msra.mxu0 %v1128
        %1477 = vmatprep.subr.bf16.mxu0 0
        %1478 = vmatpush2.bf16.msra.mxu0 %v1143
        %1479 = vmatprep.subr.bf16.mxu0 0
        %1480 = vmatpush2.bf16.msra.mxu0 %v1142
        %1481 = vmatprep.subr.bf16.mxu0 0
        %1482 = vmatpush2.bf16.msra.mxu0 %v1141
        %1483 = vmatprep.subr.bf16.mxu0 0
        %1484 = vmatpush2.bf16.msra.mxu0 %v1140
        %1485 = vmatprep.subr.bf16.mxu0 0
        %1486 = vmatpush2.bf16.msra.mxu0 %v1139
        %1487 = vmatprep.subr.bf16.mxu0 0
        %1488 = vmatpush2.bf16.msra.mxu0 %v1138
        %1489 = vmatprep.subr.bf16.mxu0 0
        %1490 = vmatpush2.bf16.msra.mxu0 %v1137
        %1491 = vmatprep.subr.bf16.mxu0 0
        %1492 = vmatpush2.bf16.msra.mxu0 %v1136
        %1493 = vmatprep.mubr.bf16.mxu0 %v433
        %1494 = vmatmul.mubr.bf16.gmra.mxu0 %v432
        %v1495 = vpop.f32.mrf.mxu0
        %v1496 = vadd.f32 0.0, %v1495
        %v1497 = vpop.f32.mrf.mxu0
        %v1498 = vpop.f32.mrf.mxu0
        %v1499 = vpop.f32.mrf.mxu0
        %1500 = vdwg.mxu0
        %1501 = vmatprep.subr.bf16.mxu0 0
        %1502 = vmatpush1.bf16.msra.mxu0 %v1151
        %1503 = vmatprep.subr.bf16.mxu0 0
        %1504 = vmatpush1.bf16.msra.mxu0 %v1150
        %1505 = vmatprep.subr.bf16.mxu0 0
        %1506 = vmatpush1.bf16.msra.mxu0 %v1149
        %1507 = vmatprep.subr.bf16.mxu0 0
        %1508 = vmatpush1.bf16.msra.mxu0 %v1148
        %1509 = vmatprep.subr.bf16.mxu0 0
        %1510 = vmatpush1.bf16.msra.mxu0 %v1147
        %1511 = vmatprep.subr.bf16.mxu0 0
        %1512 = vmatpush1.bf16.msra.mxu0 %v1146
        %1513 = vmatprep.subr.bf16.mxu0 0
        %1514 = vmatpush1.bf16.msra.mxu0 %v1145
        %1515 = vmatprep.subr.bf16.mxu0 0
        %1516 = vmatpush1.bf16.msra.mxu0 %v1144
        %1517 = vmatprep.subr.bf16.mxu0 0
        %1518 = vmatpush2.bf16.msra.mxu0 %v1159
        %1519 = vmatprep.subr.bf16.mxu0 0
        %1520 = vmatpush2.bf16.msra.mxu0 %v1158
        %1521 = vmatprep.subr.bf16.mxu0 0
        %1522 = vmatpush2.bf16.msra.mxu0 %v1157
        %1523 = vmatprep.subr.bf16.mxu0 0
        %1524 = vmatpush2.bf16.msra.mxu0 %v1156
        %1525 = vmatprep.subr.bf16.mxu0 0
        %1526 = vmatpush2.bf16.msra.mxu0 %v1155
        %1527 = vmatprep.subr.bf16.mxu0 0
        %1528 = vmatpush2.bf16.msra.mxu0 %v1154
        %1529 = vmatprep.subr.bf16.mxu0 0
        %1530 = vmatpush2.bf16.msra.mxu0 %v1153
        %1531 = vmatprep.subr.bf16.mxu0 0
        %1532 = vmatpush2.bf16.msra.mxu0 %v1152
        %1533 = vmatprep.mubr.bf16.mxu0 %v606
        %1534 = vmatmul.mubr.bf16.gmra.mxu0 %v434
        %v1535 = vpop.f32.mrf.mxu0
        %v1536 = vadd.f32 %v1496, %v1535
        %v1537 = vpop.f32.mrf.mxu0
        %v1538 = vpop.f32.mrf.mxu0
        %v1539 = vpop.f32.mrf.mxu0
        %1540 = vdwg.mxu0
        %1541 = vmatprep.subr.bf16.mxu0 0
        %1542 = vmatpush1.bf16.msra.mxu0 %v1167
        %1543 = vmatprep.subr.bf16.mxu0 0
        %1544 = vmatpush1.bf16.msra.mxu0 %v1166
        %1545 = vmatprep.subr.bf16.mxu0 0
        %1546 = vmatpush1.bf16.msra.mxu0 %v1165
        %1547 = vmatprep.subr.bf16.mxu0 0
        %1548 = vmatpush1.bf16.msra.mxu0 %v1164
        %1549 = vmatprep.subr.bf16.mxu0 0
        %1550 = vmatpush1.bf16.msra.mxu0 %v1163
        %1551 = vmatprep.subr.bf16.mxu0 0
        %1552 = vmatpush1.bf16.msra.mxu0 %v1162
        %1553 = vmatprep.subr.bf16.mxu0 0
        %1554 = vmatpush1.bf16.msra.mxu0 %v1161
        %1555 = vmatprep.subr.bf16.mxu0 0
        %1556 = vmatpush1.bf16.msra.mxu0 %v1160
        %1557 = vmatprep.subr.bf16.mxu0 0
        %1558 = vmatpush2.bf16.msra.mxu0 0
        %1559 = vmatprep.subr.bf16.mxu0 0
        %1560 = vmatpush2.bf16.msra.mxu0 0
        %1561 = vmatprep.subr.bf16.mxu0 0
        %1562 = vmatpush2.bf16.msra.mxu0 0
        %1563 = vmatprep.subr.bf16.mxu0 0
        %1564 = vmatpush2.bf16.msra.mxu0 0
        %1565 = vmatprep.subr.bf16.mxu0 0
        %1566 = vmatpush2.bf16.msra.mxu0 0
        %1567 = vmatprep.subr.bf16.mxu0 0
        %1568 = vmatpush2.bf16.msra.mxu0 0
        %1569 = vmatprep.subr.bf16.mxu0 0
        %1570 = vmatpush2.bf16.msra.mxu0 0
        %1571 = vmatprep.subr.bf16.mxu0 0
        %1572 = vmatpush2.bf16.msra.mxu0 0
        %1573 = vmatprep.mubr.bf16.mxu0 0
        %1574 = vmatmul.mubr.bf16.gmra.mxu0 %v1338
        %v1575 = vpop.f32.mrf.mxu0
        %v1576 = vadd.f32 %v1536, %v1575
        %v1577 = vpop.f32.mrf.mxu0
        %v1578 = vpop.f32.mrf.mxu0
        %v1579 = vpop.f32.mrf.mxu0
        %1580 = vdwg.mxu0
        %v1581 = vmax.f32 %v1460, %v1576
        %v1583 = vlaneseq
        %v1584 = vshrl.u32 %v1583, 7
        %v1585 = vsub.s32 0, %v1584
        %v1586 = vrot.slane %v596, %v1585
        %v1588 = vadd.f32 %v1581, %v1586
        %v1589 = vmax.f32 %v1588, 0.0
        %v1590 = vpack.c.bf16 %v1589, %v1589
        %v1592 = vunpack.c.l.b16 %v433
        %v1593 = vpack.c.b16 %v1592, %v1592
        %v1595 = vshrl.u32 %v1593, 16
        %v1597 = vshll.u32 %v1593, 16
        %v1599 = vrot.slane %v1597, 1
        %v1600 = vor.u32 %v1595, %v1599
        %1602 = vmatprep.subr.bf16.mxu0 0
        %1603 = vmatpush1.bf16.msra.mxu0 %v775
        %1604 = vmatprep.subr.bf16.mxu0 0
        %1605 = vmatpush1.bf16.msra.mxu0 %v774
        %1606 = vmatprep.subr.bf16.mxu0 0
        %1607 = vmatpush1.bf16.msra.mxu0 %v773
        %1608 = vmatprep.subr.bf16.mxu0 0
        %1609 = vmatpush1.bf16.msra.mxu0 %v772
        %1610 = vmatprep.subr.bf16.mxu0 0
        %1611 = vmatpush1.bf16.msra.mxu0 %v771
        %1612 = vmatprep.subr.bf16.mxu0 0
        %1613 = vmatpush1.bf16.msra.mxu0 %v770
        %1614 = vmatprep.subr.bf16.mxu0 0
        %1615 = vmatpush1.bf16.msra.mxu0 %v769
        %1616 = vmatprep.subr.bf16.mxu0 0
        %1617 = vmatpush1.bf16.msra.mxu0 %v768
        %1618 = vmatprep.subr.bf16.mxu0 0
        %1619 = vmatpush2.bf16.msra.mxu0 %v783
        %1620 = vmatprep.subr.bf16.mxu0 0
        %1621 = vmatpush2.bf16.msra.mxu0 %v782
        %1622 = vmatprep.subr.bf16.mxu0 0
        %1623 = vmatpush2.bf16.msra.mxu0 %v781
        %1624 = vmatprep.subr.bf16.mxu0 0
        %1625 = vmatpush2.bf16.msra.mxu0 %v780
        %1626 = vmatprep.subr.bf16.mxu0 0
        %1627 = vmatpush2.bf16.msra.mxu0 %v779
        %1628 = vmatprep.subr.bf16.mxu0 0
        %1629 = vmatpush2.bf16.msra.mxu0 %v778
        %1630 = vmatprep.subr.bf16.mxu0 0
        %1631 = vmatpush2.bf16.msra.mxu0 %v777
        %1632 = vmatprep.subr.bf16.mxu0 0
        %1633 = vmatpush2.bf16.msra.mxu0 %v776
        %1634 = vmatprep.mubr.bf16.mxu0 %v434
        %1635 = vmatmul.mubr.bf16.gmra.mxu0 %v433
        %v1636 = vpop.f32.mrf.mxu0
        %v1637 = vadd.f32 0.0, %v1636
        %v1638 = vpop.f32.mrf.mxu0
        %v1639 = vpop.f32.mrf.mxu0
        %v1640 = vpop.f32.mrf.mxu0
        %1641 = vdwg.mxu0
        %1642 = vmatprep.subr.bf16.mxu0 0
        %1643 = vmatpush1.bf16.msra.mxu0 %v791
        %1644 = vmatprep.subr.bf16.mxu0 0
        %1645 = vmatpush1.bf16.msra.mxu0 %v790
        %1646 = vmatprep.subr.bf16.mxu0 0
        %1647 = vmatpush1.bf16.msra.mxu0 %v789
        %1648 = vmatprep.subr.bf16.mxu0 0
        %1649 = vmatpush1.bf16.msra.mxu0 %v788
        %1650 = vmatprep.subr.bf16.mxu0 0
        %1651 = vmatpush1.bf16.msra.mxu0 %v787
        %1652 = vmatprep.subr.bf16.mxu0 0
        %1653 = vmatpush1.bf16.msra.mxu0 %v786
        %1654 = vmatprep.subr.bf16.mxu0 0
        %1655 = vmatpush1.bf16.msra.mxu0 %v785
        %1656 = vmatprep.subr.bf16.mxu0 0
        %1657 = vmatpush1.bf16.msra.mxu0 %v784
        %1658 = vmatprep.subr.bf16.mxu0 0
        %1659 = vmatpush2.bf16.msra.mxu0 %v799
        %1660 = vmatprep.subr.bf16.mxu0 0
        %1661 = vmatpush2.bf16.msra.mxu0 %v798
        %1662 = vmatprep.subr.bf16.mxu0 0
        %1663 = vmatpush2.bf16.msra.mxu0 %v797
        %1664 = vmatprep.subr.bf16.mxu0 0
        %1665 = vmatpush2.bf16.msra.mxu0 %v796
        %1666 = vmatprep.subr.bf16.mxu0 0
        %1667 = vmatpush2.bf16.msra.mxu0 %v795
        %1668 = vmatprep.subr.bf16.mxu0 0
        %1669 = vmatpush2.bf16.msra.mxu0 %v794
        %1670 = vmatprep.subr.bf16.mxu0 0
        %1671 = vmatpush2.bf16.msra.mxu0 %v793
        %1672 = vmatprep.subr.bf16.mxu0 0
        %1673 = vmatpush2.bf16.msra.mxu0 %v792
        %1674 = vmatprep.mubr.bf16.mxu0 %v1338
        %1675 = vmatmul.mubr.bf16.gmra.mxu0 %v606
        %v1676 = vpop.f32.mrf.mxu0
        %v1677 = vadd.f32 %v1637, %v1676
        %v1678 = vpop.f32.mrf.mxu0
        %v1679 = vpop.f32.mrf.mxu0
        %v1680 = vpop.f32.mrf.mxu0
        %1681 = vdwg.mxu0
        %1682 = vmatprep.subr.bf16.mxu0 0
        %1683 = vmatpush1.bf16.msra.mxu0 %v807
        %1684 = vmatprep.subr.bf16.mxu0 0
        %1685 = vmatpush1.bf16.msra.mxu0 %v806
        %1686 = vmatprep.subr.bf16.mxu0 0
        %1687 = vmatpush1.bf16.msra.mxu0 %v805
        %1688 = vmatprep.subr.bf16.mxu0 0
        %1689 = vmatpush1.bf16.msra.mxu0 %v804
        %1690 = vmatprep.subr.bf16.mxu0 0
        %1691 = vmatpush1.bf16.msra.mxu0 %v803
        %1692 = vmatprep.subr.bf16.mxu0 0
        %1693 = vmatpush1.bf16.msra.mxu0 %v802
        %1694 = vmatprep.subr.bf16.mxu0 0
        %1695 = vmatpush1.bf16.msra.mxu0 %v801
        %1696 = vmatprep.subr.bf16.mxu0 0
        %1697 = vmatpush1.bf16.msra.mxu0 %v800
        %1698 = vmatprep.subr.bf16.mxu0 0
        %1699 = vmatpush2.bf16.msra.mxu0 0
        %1700 = vmatprep.subr.bf16.mxu0 0
        %1701 = vmatpush2.bf16.msra.mxu0 0
        %1702 = vmatprep.subr.bf16.mxu0 0
        %1703 = vmatpush2.bf16.msra.mxu0 0
        %1704 = vmatprep.subr.bf16.mxu0 0
        %1705 = vmatpush2.bf16.msra.mxu0 0
        %1706 = vmatprep.subr.bf16.mxu0 0
        %1707 = vmatpush2.bf16.msra.mxu0 0
        %1708 = vmatprep.subr.bf16.mxu0 0
        %1709 = vmatpush2.bf16.msra.mxu0 0
        %1710 = vmatprep.subr.bf16.mxu0 0
        %1711 = vmatpush2.bf16.msra.mxu0 0
        %1712 = vmatprep.subr.bf16.mxu0 0
        %1713 = vmatpush2.bf16.msra.mxu0 0
        %1714 = vmatprep.mubr.bf16.mxu0 0
        %1715 = vmatmul.mubr.bf16.gmra.mxu0 %v1600
        %v1716 = vpop.f32.mrf.mxu0
        %v1717 = vadd.f32 %v1677, %v1716
        %v1718 = vpop.f32.mrf.mxu0
        %v1719 = vpop.f32.mrf.mxu0
        %v1720 = vpop.f32.mrf.mxu0
        %1721 = vdwg.mxu0
        %1722 = vmatprep.subr.bf16.mxu0 0
        %1723 = vmatpush1.bf16.msra.mxu0 %v1135
        %1724 = vmatprep.subr.bf16.mxu0 0
        %1725 = vmatpush1.bf16.msra.mxu0 %v1134
        %1726 = vmatprep.subr.bf16.mxu0 0
        %1727 = vmatpush1.bf16.msra.mxu0 %v1133
        %1728 = vmatprep.subr.bf16.mxu0 0
        %1729 = vmatpush1.bf16.msra.mxu0 %v1132
        %1730 = vmatprep.subr.bf16.mxu0 0
        %1731 = vmatpush1.bf16.msra.mxu0 %v1131
        %1732 = vmatprep.subr.bf16.mxu0 0
        %1733 = vmatpush1.bf16.msra.mxu0 %v1130
        %1734 = vmatprep.subr.bf16.mxu0 0
        %1735 = vmatpush1.bf16.msra.mxu0 %v1129
        %1736 = vmatprep.subr.bf16.mxu0 0
        %1737 = vmatpush1.bf16.msra.mxu0 %v1128
        %1738 = vmatprep.subr.bf16.mxu0 0
        %1739 = vmatpush2.bf16.msra.mxu0 %v1143
        %1740 = vmatprep.subr.bf16.mxu0 0
        %1741 = vmatpush2.bf16.msra.mxu0 %v1142
        %1742 = vmatprep.subr.bf16.mxu0 0
        %1743 = vmatpush2.bf16.msra.mxu0 %v1141
        %1744 = vmatprep.subr.bf16.mxu0 0
        %1745 = vmatpush2.bf16.msra.mxu0 %v1140
        %1746 = vmatprep.subr.bf16.mxu0 0
        %1747 = vmatpush2.bf16.msra.mxu0 %v1139
        %1748 = vmatprep.subr.bf16.mxu0 0
        %1749 = vmatpush2.bf16.msra.mxu0 %v1138
        %1750 = vmatprep.subr.bf16.mxu0 0
        %1751 = vmatpush2.bf16.msra.mxu0 %v1137
        %1752 = vmatprep.subr.bf16.mxu0 0
        %1753 = vmatpush2.bf16.msra.mxu0 %v1136
        %1754 = vmatprep.mubr.bf16.mxu0 %v434
        %1755 = vmatmul.mubr.bf16.gmra.mxu0 %v433
        %v1756 = vpop.f32.mrf.mxu0
        %v1757 = vadd.f32 0.0, %v1756
        %v1758 = vpop.f32.mrf.mxu0
        %v1759 = vpop.f32.mrf.mxu0
        %v1760 = vpop.f32.mrf.mxu0
        %1761 = vdwg.mxu0
        %1762 = vmatprep.subr.bf16.mxu0 0
        %1763 = vmatpush1.bf16.msra.mxu0 %v1151
        %1764 = vmatprep.subr.bf16.mxu0 0
        %1765 = vmatpush1.bf16.msra.mxu0 %v1150
        %1766 = vmatprep.subr.bf16.mxu0 0
        %1767 = vmatpush1.bf16.msra.mxu0 %v1149
        %1768 = vmatprep.subr.bf16.mxu0 0
        %1769 = vmatpush1.bf16.msra.mxu0 %v1148
        %1770 = vmatprep.subr.bf16.mxu0 0
        %1771 = vmatpush1.bf16.msra.mxu0 %v1147
        %1772 = vmatprep.subr.bf16.mxu0 0
        %1773 = vmatpush1.bf16.msra.mxu0 %v1146
        %1774 = vmatprep.subr.bf16.mxu0 0
        %1775 = vmatpush1.bf16.msra.mxu0 %v1145
        %1776 = vmatprep.subr.bf16.mxu0 0
        %1777 = vmatpush1.bf16.msra.mxu0 %v1144
        %1778 = vmatprep.subr.bf16.mxu0 0
        %1779 = vmatpush2.bf16.msra.mxu0 %v1159
        %1780 = vmatprep.subr.bf16.mxu0 0
        %1781 = vmatpush2.bf16.msra.mxu0 %v1158
        %1782 = vmatprep.subr.bf16.mxu0 0
        %1783 = vmatpush2.bf16.msra.mxu0 %v1157
        %1784 = vmatprep.subr.bf16.mxu0 0
        %1785 = vmatpush2.bf16.msra.mxu0 %v1156
        %1786 = vmatprep.subr.bf16.mxu0 0
        %1787 = vmatpush2.bf16.msra.mxu0 %v1155
        %1788 = vmatprep.subr.bf16.mxu0 0
        %1789 = vmatpush2.bf16.msra.mxu0 %v1154
        %1790 = vmatprep.subr.bf16.mxu0 0
        %1791 = vmatpush2.bf16.msra.mxu0 %v1153
        %1792 = vmatprep.subr.bf16.mxu0 0
        %1793 = vmatpush2.bf16.msra.mxu0 %v1152
        %1794 = vmatprep.mubr.bf16.mxu0 %v1338
        %1795 = vmatmul.mubr.bf16.gmra.mxu0 %v606
        %v1796 = vpop.f32.mrf.mxu0
        %v1797 = vadd.f32 %v1757, %v1796
        %v1798 = vpop.f32.mrf.mxu0
        %v1799 = vpop.f32.mrf.mxu0
        %v1800 = vpop.f32.mrf.mxu0
        %1801 = vdwg.mxu0
        %1802 = vmatprep.subr.bf16.mxu0 0
        %1803 = vmatpush1.bf16.msra.mxu0 %v1167
        %1804 = vmatprep.subr.bf16.mxu0 0
        %1805 = vmatpush1.bf16.msra.mxu0 %v1166
        %1806 = vmatprep.subr.bf16.mxu0 0
        %1807 = vmatpush1.bf16.msra.mxu0 %v1165
        %1808 = vmatprep.subr.bf16.mxu0 0
        %1809 = vmatpush1.bf16.msra.mxu0 %v1164
        %1810 = vmatprep.subr.bf16.mxu0 0
        %1811 = vmatpush1.bf16.msra.mxu0 %v1163
        %1812 = vmatprep.subr.bf16.mxu0 0
        %1813 = vmatpush1.bf16.msra.mxu0 %v1162
        %1814 = vmatprep.subr.bf16.mxu0 0
        %1815 = vmatpush1.bf16.msra.mxu0 %v1161
        %1816 = vmatprep.subr.bf16.mxu0 0
        %1817 = vmatpush1.bf16.msra.mxu0 %v1160
        %1818 = vmatprep.subr.bf16.mxu0 0
        %1819 = vmatpush2.bf16.msra.mxu0 0
        %1820 = vmatprep.subr.bf16.mxu0 0
        %1821 = vmatpush2.bf16.msra.mxu0 0
        %1822 = vmatprep.subr.bf16.mxu0 0
        %1823 = vmatpush2.bf16.msra.mxu0 0
        %1824 = vmatprep.subr.bf16.mxu0 0
        %1825 = vmatpush2.bf16.msra.mxu0 0
        %1826 = vmatprep.subr.bf16.mxu0 0
        %1827 = vmatpush2.bf16.msra.mxu0 0
        %1828 = vmatprep.subr.bf16.mxu0 0
        %1829 = vmatpush2.bf16.msra.mxu0 0
        %1830 = vmatprep.subr.bf16.mxu0 0
        %1831 = vmatpush2.bf16.msra.mxu0 0
        %1832 = vmatprep.subr.bf16.mxu0 0
        %1833 = vmatpush2.bf16.msra.mxu0 0
        %1834 = vmatprep.mubr.bf16.mxu0 0
        %1835 = vmatmul.mubr.bf16.gmra.mxu0 %v1600
        %v1836 = vpop.f32.mrf.mxu0
        %v1837 = vadd.f32 %v1797, %v1836
        %v1838 = vpop.f32.mrf.mxu0
        %v1839 = vpop.f32.mrf.mxu0
        %v1840 = vpop.f32.mrf.mxu0
        %1841 = vdwg.mxu0
        %v1842 = vmax.f32 %v1717, %v1837
        %v1844 = vunpack.c.l.b16 %v434
        %v1845 = vpack.c.b16 %v1844, %v1844
        %v1847 = vshrl.u32 %v1845, 16
        %v1849 = vshll.u32 %v1845, 16
        %v1851 = vrot.slane %v1849, 1
        %v1852 = vor.u32 %v1847, %v1851
        %1854 = vmatprep.subr.bf16.mxu0 0
        %1855 = vmatpush1.bf16.msra.mxu0 %v775
        %1856 = vmatprep.subr.bf16.mxu0 0
        %1857 = vmatpush1.bf16.msra.mxu0 %v774
        %1858 = vmatprep.subr.bf16.mxu0 0
        %1859 = vmatpush1.bf16.msra.mxu0 %v773
        %1860 = vmatprep.subr.bf16.mxu0 0
        %1861 = vmatpush1.bf16.msra.mxu0 %v772
        %1862 = vmatprep.subr.bf16.mxu0 0
        %1863 = vmatpush1.bf16.msra.mxu0 %v771
        %1864 = vmatprep.subr.bf16.mxu0 0
        %1865 = vmatpush1.bf16.msra.mxu0 %v770
        %1866 = vmatprep.subr.bf16.mxu0 0
        %1867 = vmatpush1.bf16.msra.mxu0 %v769
        %1868 = vmatprep.subr.bf16.mxu0 0
        %1869 = vmatpush1.bf16.msra.mxu0 %v768
        %1870 = vmatprep.subr.bf16.mxu0 0
        %1871 = vmatpush2.bf16.msra.mxu0 %v783
        %1872 = vmatprep.subr.bf16.mxu0 0
        %1873 = vmatpush2.bf16.msra.mxu0 %v782
        %1874 = vmatprep.subr.bf16.mxu0 0
        %1875 = vmatpush2.bf16.msra.mxu0 %v781
        %1876 = vmatprep.subr.bf16.mxu0 0
        %1877 = vmatpush2.bf16.msra.mxu0 %v780
        %1878 = vmatprep.subr.bf16.mxu0 0
        %1879 = vmatpush2.bf16.msra.mxu0 %v779
        %1880 = vmatprep.subr.bf16.mxu0 0
        %1881 = vmatpush2.bf16.msra.mxu0 %v778
        %1882 = vmatprep.subr.bf16.mxu0 0
        %1883 = vmatpush2.bf16.msra.mxu0 %v777
        %1884 = vmatprep.subr.bf16.mxu0 0
        %1885 = vmatpush2.bf16.msra.mxu0 %v776
        %1886 = vmatprep.mubr.bf16.mxu0 %v606
        %1887 = vmatmul.mubr.bf16.gmra.mxu0 %v434
        %v1888 = vpop.f32.mrf.mxu0
        %v1889 = vadd.f32 0.0, %v1888
        %v1890 = vpop.f32.mrf.mxu0
        %v1891 = vpop.f32.mrf.mxu0
        %v1892 = vpop.f32.mrf.mxu0
        %1893 = vdwg.mxu0
        %1894 = vmatprep.subr.bf16.mxu0 0
        %1895 = vmatpush1.bf16.msra.mxu0 %v791
        %1896 = vmatprep.subr.bf16.mxu0 0
        %1897 = vmatpush1.bf16.msra.mxu0 %v790
        %1898 = vmatprep.subr.bf16.mxu0 0
        %1899 = vmatpush1.bf16.msra.mxu0 %v789
        %1900 = vmatprep.subr.bf16.mxu0 0
        %1901 = vmatpush1.bf16.msra.mxu0 %v788
        %1902 = vmatprep.subr.bf16.mxu0 0
        %1903 = vmatpush1.bf16.msra.mxu0 %v787
        %1904 = vmatprep.subr.bf16.mxu0 0
        %1905 = vmatpush1.bf16.msra.mxu0 %v786
        %1906 = vmatprep.subr.bf16.mxu0 0
        %1907 = vmatpush1.bf16.msra.mxu0 %v785
        %1908 = vmatprep.subr.bf16.mxu0 0
        %1909 = vmatpush1.bf16.msra.mxu0 %v784
        %1910 = vmatprep.subr.bf16.mxu0 0
        %1911 = vmatpush2.bf16.msra.mxu0 %v799
        %1912 = vmatprep.subr.bf16.mxu0 0
        %1913 = vmatpush2.bf16.msra.mxu0 %v798
        %1914 = vmatprep.subr.bf16.mxu0 0
        %1915 = vmatpush2.bf16.msra.mxu0 %v797
        %1916 = vmatprep.subr.bf16.mxu0 0
        %1917 = vmatpush2.bf16.msra.mxu0 %v796
        %1918 = vmatprep.subr.bf16.mxu0 0
        %1919 = vmatpush2.bf16.msra.mxu0 %v795
        %1920 = vmatprep.subr.bf16.mxu0 0
        %1921 = vmatpush2.bf16.msra.mxu0 %v794
        %1922 = vmatprep.subr.bf16.mxu0 0
        %1923 = vmatpush2.bf16.msra.mxu0 %v793
        %1924 = vmatprep.subr.bf16.mxu0 0
        %1925 = vmatpush2.bf16.msra.mxu0 %v792
        %1926 = vmatprep.mubr.bf16.mxu0 %v1600
        %1927 = vmatmul.mubr.bf16.gmra.mxu0 %v1338
        %v1928 = vpop.f32.mrf.mxu0
        %v1929 = vadd.f32 %v1889, %v1928
        %v1930 = vpop.f32.mrf.mxu0
        %v1931 = vpop.f32.mrf.mxu0
        %v1932 = vpop.f32.mrf.mxu0
        %1933 = vdwg.mxu0
        %1934 = vmatprep.subr.bf16.mxu0 0
        %1935 = vmatpush1.bf16.msra.mxu0 %v807
        %1936 = vmatprep.subr.bf16.mxu0 0
        %1937 = vmatpush1.bf16.msra.mxu0 %v806
        %1938 = vmatprep.subr.bf16.mxu0 0
        %1939 = vmatpush1.bf16.msra.mxu0 %v805
        %1940 = vmatprep.subr.bf16.mxu0 0
        %1941 = vmatpush1.bf16.msra.mxu0 %v804
        %1942 = vmatprep.subr.bf16.mxu0 0
        %1943 = vmatpush1.bf16.msra.mxu0 %v803
        %1944 = vmatprep.subr.bf16.mxu0 0
        %1945 = vmatpush1.bf16.msra.mxu0 %v802
        %1946 = vmatprep.subr.bf16.mxu0 0
        %1947 = vmatpush1.bf16.msra.mxu0 %v801
        %1948 = vmatprep.subr.bf16.mxu0 0
        %1949 = vmatpush1.bf16.msra.mxu0 %v800
        %1950 = vmatprep.subr.bf16.mxu0 0
        %1951 = vmatpush2.bf16.msra.mxu0 0
        %1952 = vmatprep.subr.bf16.mxu0 0
        %1953 = vmatpush2.bf16.msra.mxu0 0
        %1954 = vmatprep.subr.bf16.mxu0 0
        %1955 = vmatpush2.bf16.msra.mxu0 0
        %1956 = vmatprep.subr.bf16.mxu0 0
        %1957 = vmatpush2.bf16.msra.mxu0 0
        %1958 = vmatprep.subr.bf16.mxu0 0
        %1959 = vmatpush2.bf16.msra.mxu0 0
        %1960 = vmatprep.subr.bf16.mxu0 0
        %1961 = vmatpush2.bf16.msra.mxu0 0
        %1962 = vmatprep.subr.bf16.mxu0 0
        %1963 = vmatpush2.bf16.msra.mxu0 0
        %1964 = vmatprep.subr.bf16.mxu0 0
        %1965 = vmatpush2.bf16.msra.mxu0 0
        %1966 = vmatprep.mubr.bf16.mxu0 0
        %1967 = vmatmul.mubr.bf16.gmra.mxu0 %v1852
        %v1968 = vpop.f32.mrf.mxu0
        %v1969 = vadd.f32 %v1929, %v1968
        %v1970 = vpop.f32.mrf.mxu0
        %v1971 = vpop.f32.mrf.mxu0
        %v1972 = vpop.f32.mrf.mxu0
        %1973 = vdwg.mxu0
        %v1974 = vmax.f32 %v1842, %v1969
        %1975 = vmatprep.subr.bf16.mxu0 0
        %1976 = vmatpush1.bf16.msra.mxu0 %v1135
        %1977 = vmatprep.subr.bf16.mxu0 0
        %1978 = vmatpush1.bf16.msra.mxu0 %v1134
        %1979 = vmatprep.subr.bf16.mxu0 0
        %1980 = vmatpush1.bf16.msra.mxu0 %v1133
        %1981 = vmatprep.subr.bf16.mxu0 0
        %1982 = vmatpush1.bf16.msra.mxu0 %v1132
        %1983 = vmatprep.subr.bf16.mxu0 0
        %1984 = vmatpush1.bf16.msra.mxu0 %v1131
        %1985 = vmatprep.subr.bf16.mxu0 0
        %1986 = vmatpush1.bf16.msra.mxu0 %v1130
        %1987 = vmatprep.subr.bf16.mxu0 0
        %1988 = vmatpush1.bf16.msra.mxu0 %v1129
        %1989 = vmatprep.subr.bf16.mxu0 0
        %1990 = vmatpush1.bf16.msra.mxu0 %v1128
        %1991 = vmatprep.subr.bf16.mxu0 0
        %1992 = vmatpush2.bf16.msra.mxu0 %v1143
        %1993 = vmatprep.subr.bf16.mxu0 0
        %1994 = vmatpush2.bf16.msra.mxu0 %v1142
        %1995 = vmatprep.subr.bf16.mxu0 0
        %1996 = vmatpush2.bf16.msra.mxu0 %v1141
        %1997 = vmatprep.subr.bf16.mxu0 0
        %1998 = vmatpush2.bf16.msra.mxu0 %v1140
        %1999 = vmatprep.subr.bf16.mxu0 0
        %2000 = vmatpush2.bf16.msra.mxu0 %v1139
        %2001 = vmatprep.subr.bf16.mxu0 0
        %2002 = vmatpush2.bf16.msra.mxu0 %v1138
        %2003 = vmatprep.subr.bf16.mxu0 0
        %2004 = vmatpush2.bf16.msra.mxu0 %v1137
        %2005 = vmatprep.subr.bf16.mxu0 0
        %2006 = vmatpush2.bf16.msra.mxu0 %v1136
        %2007 = vmatprep.mubr.bf16.mxu0 %v606
        %2008 = vmatmul.mubr.bf16.gmra.mxu0 %v434
        %v2009 = vpop.f32.mrf.mxu0
        %v2010 = vadd.f32 0.0, %v2009
        %v2011 = vpop.f32.mrf.mxu0
        %v2012 = vpop.f32.mrf.mxu0
        %v2013 = vpop.f32.mrf.mxu0
        %2014 = vdwg.mxu0
        %2015 = vmatprep.subr.bf16.mxu0 0
        %2016 = vmatpush1.bf16.msra.mxu0 %v1151
        %2017 = vmatprep.subr.bf16.mxu0 0
        %2018 = vmatpush1.bf16.msra.mxu0 %v1150
        %2019 = vmatprep.subr.bf16.mxu0 0
        %2020 = vmatpush1.bf16.msra.mxu0 %v1149
        %2021 = vmatprep.subr.bf16.mxu0 0
        %2022 = vmatpush1.bf16.msra.mxu0 %v1148
        %2023 = vmatprep.subr.bf16.mxu0 0
        %2024 = vmatpush1.bf16.msra.mxu0 %v1147
        %2025 = vmatprep.subr.bf16.mxu0 0
        %2026 = vmatpush1.bf16.msra.mxu0 %v1146
        %2027 = vmatprep.subr.bf16.mxu0 0
        %2028 = vmatpush1.bf16.msra.mxu0 %v1145
        %2029 = vmatprep.subr.bf16.mxu0 0
        %2030 = vmatpush1.bf16.msra.mxu0 %v1144
        %2031 = vmatprep.subr.bf16.mxu0 0
        %2032 = vmatpush2.bf16.msra.mxu0 %v1159
        %2033 = vmatprep.subr.bf16.mxu0 0
        %2034 = vmatpush2.bf16.msra.mxu0 %v1158
        %2035 = vmatprep.subr.bf16.mxu0 0
        %2036 = vmatpush2.bf16.msra.mxu0 %v1157
        %2037 = vmatprep.subr.bf16.mxu0 0
        %2038 = vmatpush2.bf16.msra.mxu0 %v1156
        %2039 = vmatprep.subr.bf16.mxu0 0
        %2040 = vmatpush2.bf16.msra.mxu0 %v1155
        %2041 = vmatprep.subr.bf16.mxu0 0
        %2042 = vmatpush2.bf16.msra.mxu0 %v1154
        %2043 = vmatprep.subr.bf16.mxu0 0
        %2044 = vmatpush2.bf16.msra.mxu0 %v1153
        %2045 = vmatprep.subr.bf16.mxu0 0
        %2046 = vmatpush2.bf16.msra.mxu0 %v1152
        %2047 = vmatprep.mubr.bf16.mxu0 %v1600
        %2048 = vmatmul.mubr.bf16.gmra.mxu0 %v1338
        %v2049 = vpop.f32.mrf.mxu0
        %v2050 = vadd.f32 %v2010, %v2049
        %v2051 = vpop.f32.mrf.mxu0
        %v2052 = vpop.f32.mrf.mxu0
        %v2053 = vpop.f32.mrf.mxu0
        %2054 = vdwg.mxu0
        %2055 = vmatprep.subr.bf16.mxu0 0
        %2056 = vmatpush1.bf16.msra.mxu0 %v1167
        %2057 = vmatprep.subr.bf16.mxu0 0
        %2058 = vmatpush1.bf16.msra.mxu0 %v1166
        %2059 = vmatprep.subr.bf16.mxu0 0
        %2060 = vmatpush1.bf16.msra.mxu0 %v1165
        %2061 = vmatprep.subr.bf16.mxu0 0
        %2062 = vmatpush1.bf16.msra.mxu0 %v1164
        %2063 = vmatprep.subr.bf16.mxu0 0
        %2064 = vmatpush1.bf16.msra.mxu0 %v1163
        %2065 = vmatprep.subr.bf16.mxu0 0
        %2066 = vmatpush1.bf16.msra.mxu0 %v1162
        %2067 = vmatprep.subr.bf16.mxu0 0
        %2068 = vmatpush1.bf16.msra.mxu0 %v1161
        %2069 = vmatprep.subr.bf16.mxu0 0
        %2070 = vmatpush1.bf16.msra.mxu0 %v1160
        %2071 = vmatprep.subr.bf16.mxu0 0
        %2072 = vmatpush2.bf16.msra.mxu0 0
        %2073 = vmatprep.subr.bf16.mxu0 0
        %2074 = vmatpush2.bf16.msra.mxu0 0
        %2075 = vmatprep.subr.bf16.mxu0 0
        %2076 = vmatpush2.bf16.msra.mxu0 0
        %2077 = vmatprep.subr.bf16.mxu0 0
        %2078 = vmatpush2.bf16.msra.mxu0 0
        %2079 = vmatprep.subr.bf16.mxu0 0
        %2080 = vmatpush2.bf16.msra.mxu0 0
        %2081 = vmatprep.subr.bf16.mxu0 0
        %2082 = vmatpush2.bf16.msra.mxu0 0
        %2083 = vmatprep.subr.bf16.mxu0 0
        %2084 = vmatpush2.bf16.msra.mxu0 0
        %2085 = vmatprep.subr.bf16.mxu0 0
        %2086 = vmatpush2.bf16.msra.mxu0 0
        %2087 = vmatprep.mubr.bf16.mxu0 0
        %2088 = vmatmul.mubr.bf16.gmra.mxu0 %v1852
        %v2089 = vpop.f32.mrf.mxu0
        %v2090 = vadd.f32 %v2050, %v2089
        %v2091 = vpop.f32.mrf.mxu0
        %v2092 = vpop.f32.mrf.mxu0
        %v2093 = vpop.f32.mrf.mxu0
        %2094 = vdwg.mxu0
        %v2095 = vmax.f32 %v1974, %v2090
        %v2096 = vadd.f32 %v2095, %v1586
        %v2097 = vmax.f32 %v2096, 0.0
        %v2098 = vpack.c.bf16 %v2097, %v2097
        %v2099 = vld [vmem:[#allocation2] sm:$0xf]
        %v2100 = vld [vmem:[#allocation2 + $0x4] sm:$0xf]
        %v2101 = vld [vmem:[#allocation2 + $0x8] sm:$0xf]
        %v2102 = vld [vmem:[#allocation2 + $0xc] sm:$0xf]
        %v2103 = vld [vmem:[#allocation2 + $0x10] sm:$0xf]
        %v2104 = vld [vmem:[#allocation2 + $0x14] sm:$0xf]
        %v2105 = vld [vmem:[#allocation2 + $0x18] sm:$0xf]
        %v2106 = vld [vmem:[#allocation2 + $0x1c] sm:$0xf]
        %v2107 = vld [vmem:[#allocation2 + $0x20] sm:$0xf]
        %v2108 = vld [vmem:[#allocation2 + $0x24] sm:$0xf]
        %v2109 = vld [vmem:[#allocation2 + $0x28] sm:$0xf]
        %v2110 = vld [vmem:[#allocation2 + $0x2c] sm:$0xf]
        %v2111 = vld [vmem:[#allocation2 + $0x30] sm:$0xf]
        %v2112 = vld [vmem:[#allocation2 + $0x34] sm:$0xf]
        %v2113 = vld [vmem:[#allocation2 + $0x38] sm:$0xf]
        %v2114 = vld [vmem:[#allocation2 + $0x3c] sm:$0xf]
        %v2115 = vld [vmem:[#allocation2 + $0x40] sm:$0xf]
        %v2116 = vld [vmem:[#allocation2 + $0x44] sm:$0xf]
        %v2117 = vld [vmem:[#allocation2 + $0x48] sm:$0xf]
        %v2118 = vld [vmem:[#allocation2 + $0x4c] sm:$0xf]
        %v2119 = vld [vmem:[#allocation2 + $0x50] sm:$0xf]
        %v2120 = vld [vmem:[#allocation2 + $0x54] sm:$0xf]
        %v2121 = vld [vmem:[#allocation2 + $0x58] sm:$0xf]
        %v2122 = vld [vmem:[#allocation2 + $0x5c] sm:$0xf]
        %v2123 = vld [vmem:[#allocation2 + $0x60] sm:$0xf]
        %v2124 = vld [vmem:[#allocation2 + $0x64] sm:$0xf]
        %v2125 = vld [vmem:[#allocation2 + $0x68] sm:$0xf]
        %v2126 = vld [vmem:[#allocation2 + $0x6c] sm:$0xf]
        %v2127 = vld [vmem:[#allocation2 + $0x70] sm:$0xf]
        %v2128 = vld [vmem:[#allocation2 + $0x74] sm:$0xf]
        %v2129 = vld [vmem:[#allocation2 + $0x78] sm:$0xf]
        %v2130 = vld [vmem:[#allocation2 + $0x7c] sm:$0xf]
        %v2131 = vld [vmem:[#allocation2 + $0x80] sm:$0xf]
        %v2132 = vld [vmem:[#allocation2 + $0x84] sm:$0xf]
        %v2133 = vld [vmem:[#allocation2 + $0x88] sm:$0xf]
        %v2134 = vld [vmem:[#allocation2 + $0x8c] sm:$0xf]
        %v2135 = vld [vmem:[#allocation2 + $0x90] sm:$0xf]
        %v2136 = vld [vmem:[#allocation2 + $0x94] sm:$0xf]
        %v2137 = vld [vmem:[#allocation2 + $0x98] sm:$0xf]
        %v2138 = vld [vmem:[#allocation2 + $0x9c] sm:$0xf]
        %v2139 = vld [vmem:[#allocation2 + $0xa0] sm:$0xf]
        %v2140 = vld [vmem:[#allocation2 + $0xa4] sm:$0xf]
        %v2141 = vld [vmem:[#allocation2 + $0xa8] sm:$0xf]
        %v2142 = vld [vmem:[#allocation2 + $0xac] sm:$0xf]
        %v2143 = vld [vmem:[#allocation2 + $0xb0] sm:$0xf]
        %v2144 = vld [vmem:[#allocation2 + $0xb4] sm:$0xf]
        %v2145 = vld [vmem:[#allocation2 + $0xb8] sm:$0xf]
        %v2146 = vld [vmem:[#allocation2 + $0xbc] sm:$0xf]
        %v2147 = vld [vmem:[#allocation2 + $0xc0] sm:$0xf]
        %v2148 = vld [vmem:[#allocation2 + $0xc4] sm:$0xf]
        %v2149 = vld [vmem:[#allocation2 + $0xc8] sm:$0xf]
        %v2150 = vld [vmem:[#allocation2 + $0xcc] sm:$0xf]
        %v2151 = vld [vmem:[#allocation2 + $0xd0] sm:$0xf]
        %v2152 = vld [vmem:[#allocation2 + $0xd4] sm:$0xf]
        %v2153 = vld [vmem:[#allocation2 + $0xd8] sm:$0xf]
        %v2154 = vld [vmem:[#allocation2 + $0xdc] sm:$0xf]
        %v2155 = vld [vmem:[#allocation2 + $0xe0] sm:$0xf]
        %v2156 = vld [vmem:[#allocation2 + $0xe4] sm:$0xf]
        %v2157 = vld [vmem:[#allocation2 + $0xe8] sm:$0xf]
        %v2158 = vld [vmem:[#allocation2 + $0xec] sm:$0xf]
        %v2159 = vld [vmem:[#allocation2 + $0xf0] sm:$0xf]
        %v2160 = vld [vmem:[#allocation2 + $0xf4] sm:$0xf]
        %v2161 = vld [vmem:[#allocation2 + $0xf8] sm:$0xf]
        %v2162 = vld [vmem:[#allocation2 + $0xfc] sm:$0xf]
        %v2163 = vld [vmem:[#allocation2 + $0x100] sm:$0xf]
        %v2164 = vld [vmem:[#allocation2 + $0x104] sm:$0xf]
        %v2165 = vld [vmem:[#allocation2 + $0x108] sm:$0xf]
        %v2166 = vld [vmem:[#allocation2 + $0x10c] sm:$0xf]
        %v2167 = vld [vmem:[#allocation2 + $0x110] sm:$0xf]
        %v2168 = vld [vmem:[#allocation2 + $0x114] sm:$0xf]
        %v2169 = vld [vmem:[#allocation2 + $0x118] sm:$0xf]
        %v2170 = vld [vmem:[#allocation2 + $0x11c] sm:$0xf]
        %v2171 = vld [vmem:[#allocation2 + $0x120] sm:$0xf]
        %v2172 = vld [vmem:[#allocation2 + $0x124] sm:$0xf]
        %v2173 = vld [vmem:[#allocation2 + $0x128] sm:$0xf]
        %v2174 = vld [vmem:[#allocation2 + $0x12c] sm:$0xf]
        %v2175 = vld [vmem:[#allocation2 + $0x130] sm:$0xf]
        %v2176 = vld [vmem:[#allocation2 + $0x134] sm:$0xf]
        %v2177 = vld [vmem:[#allocation2 + $0x138] sm:$0xf]
        %v2178 = vld [vmem:[#allocation2 + $0x13c] sm:$0xf]
        %s2179 = scalar_lea.vmem [#allocation2], 320
        %v2180 = vld [vmem:[%s2179] sm:$0xf]
        %v2181 = vld [vmem:[%s2179 + $0x4] sm:$0xf]
        %v2182 = vld [vmem:[%s2179 + $0x8] sm:$0xf]
        %v2183 = vld [vmem:[%s2179 + $0xc] sm:$0xf]
        %v2184 = vld [vmem:[%s2179 + $0x10] sm:$0xf]
        %v2185 = vld [vmem:[%s2179 + $0x14] sm:$0xf]
        %v2186 = vld [vmem:[%s2179 + $0x18] sm:$0xf]
        %v2187 = vld [vmem:[%s2179 + $0x1c] sm:$0xf]
        %v2188 = vld [vmem:[%s2179 + $0x20] sm:$0xf]
        %v2189 = vld [vmem:[%s2179 + $0x24] sm:$0xf]
        %v2190 = vld [vmem:[%s2179 + $0x28] sm:$0xf]
        %v2191 = vld [vmem:[%s2179 + $0x2c] sm:$0xf]
        %v2192 = vld [vmem:[%s2179 + $0x30] sm:$0xf]
        %v2193 = vld [vmem:[%s2179 + $0x34] sm:$0xf]
        %v2194 = vld [vmem:[%s2179 + $0x38] sm:$0xf]
        %v2195 = vld [vmem:[%s2179 + $0x3c] sm:$0xf]
        %v2196 = vld [vmem:[%s2179 + $0x40] sm:$0xf]
        %v2197 = vld [vmem:[%s2179 + $0x44] sm:$0xf]
        %v2198 = vld [vmem:[%s2179 + $0x48] sm:$0xf]
        %v2199 = vld [vmem:[%s2179 + $0x4c] sm:$0xf]
        %v2200 = vld [vmem:[%s2179 + $0x50] sm:$0xf]
        %v2201 = vld [vmem:[%s2179 + $0x54] sm:$0xf]
        %v2202 = vld [vmem:[%s2179 + $0x58] sm:$0xf]
        %v2203 = vld [vmem:[%s2179 + $0x5c] sm:$0xf]
        %v2204 = vld [vmem:[%s2179 + $0x60] sm:$0xf]
        %v2205 = vld [vmem:[%s2179 + $0x64] sm:$0xf]
        %v2206 = vld [vmem:[%s2179 + $0x68] sm:$0xf]
        %v2207 = vld [vmem:[%s2179 + $0x6c] sm:$0xf]
        %v2208 = vld [vmem:[%s2179 + $0x70] sm:$0xf]
        %v2209 = vld [vmem:[%s2179 + $0x74] sm:$0xf]
        %v2210 = vld [vmem:[%s2179 + $0x78] sm:$0xf]
        %v2211 = vld [vmem:[%s2179 + $0x7c] sm:$0xf]
        %v2212 = vld [vmem:[%s2179 + $0x80] sm:$0xf]
        %v2213 = vld [vmem:[%s2179 + $0x84] sm:$0xf]
        %v2214 = vld [vmem:[%s2179 + $0x88] sm:$0xf]
        %v2215 = vld [vmem:[%s2179 + $0x8c] sm:$0xf]
        %v2216 = vld [vmem:[%s2179 + $0x90] sm:$0xf]
        %v2217 = vld [vmem:[%s2179 + $0x94] sm:$0xf]
        %v2218 = vld [vmem:[%s2179 + $0x98] sm:$0xf]
        %v2219 = vld [vmem:[%s2179 + $0x9c] sm:$0xf]
        %v2220 = vld [vmem:[%s2179 + $0xa0] sm:$0xf]
        %v2221 = vld [vmem:[%s2179 + $0xa4] sm:$0xf]
        %v2222 = vld [vmem:[%s2179 + $0xa8] sm:$0xf]
        %v2223 = vld [vmem:[%s2179 + $0xac] sm:$0xf]
        %v2224 = vld [vmem:[%s2179 + $0xb0] sm:$0xf]
        %v2225 = vld [vmem:[%s2179 + $0xb4] sm:$0xf]
        %v2226 = vld [vmem:[%s2179 + $0xb8] sm:$0xf]
        %v2227 = vld [vmem:[%s2179 + $0xbc] sm:$0xf]
        %v2228 = vld [vmem:[%s2179 + $0xc0] sm:$0xf]
        %v2229 = vld [vmem:[%s2179 + $0xc4] sm:$0xf]
        %v2230 = vld [vmem:[%s2179 + $0xc8] sm:$0xf]
        %v2231 = vld [vmem:[%s2179 + $0xcc] sm:$0xf]
        %v2232 = vld [vmem:[%s2179 + $0xd0] sm:$0xf]
        %v2233 = vld [vmem:[%s2179 + $0xd4] sm:$0xf]
        %v2234 = vld [vmem:[%s2179 + $0xd8] sm:$0xf]
        %v2235 = vld [vmem:[%s2179 + $0xdc] sm:$0xf]
        %v2236 = vld [vmem:[%s2179 + $0xe0] sm:$0xf]
        %v2237 = vld [vmem:[%s2179 + $0xe4] sm:$0xf]
        %v2238 = vld [vmem:[%s2179 + $0xe8] sm:$0xf]
        %v2239 = vld [vmem:[%s2179 + $0xec] sm:$0xf]
        %v2240 = vld [vmem:[%s2179 + $0xf0] sm:$0xf]
        %v2241 = vld [vmem:[%s2179 + $0xf4] sm:$0xf]
        %v2242 = vld [vmem:[%s2179 + $0xf8] sm:$0xf]
        %v2243 = vld [vmem:[%s2179 + $0xfc] sm:$0xf]
        %v2244 = vld [vmem:[%s2179 + $0x100] sm:$0xf]
        %v2245 = vld [vmem:[%s2179 + $0x104] sm:$0xf]
        %v2246 = vld [vmem:[%s2179 + $0x108] sm:$0xf]
        %v2247 = vld [vmem:[%s2179 + $0x10c] sm:$0xf]
        %v2248 = vld [vmem:[%s2179 + $0x110] sm:$0xf]
        %v2249 = vld [vmem:[%s2179 + $0x114] sm:$0xf]
        %v2250 = vld [vmem:[%s2179 + $0x118] sm:$0xf]
        %v2251 = vld [vmem:[%s2179 + $0x11c] sm:$0xf]
        %v2252 = vld [vmem:[%s2179 + $0x120] sm:$0xf]
        %v2253 = vld [vmem:[%s2179 + $0x124] sm:$0xf]
        %v2254 = vld [vmem:[%s2179 + $0x128] sm:$0xf]
        %v2255 = vld [vmem:[%s2179 + $0x12c] sm:$0xf]
        %v2256 = vld [vmem:[%s2179 + $0x130] sm:$0xf]
        %v2257 = vld [vmem:[%s2179 + $0x134] sm:$0xf]
        %v2258 = vld [vmem:[%s2179 + $0x138] sm:$0xf]
        %v2259 = vld [vmem:[%s2179 + $0x13c] sm:$0xf]
        %v2260 = vld [vmem:[%s4] sm:$0x1]
        %v2262 = vshrl.u32 %v1590, 16
        %v2264 = vshll.u32 %v1590, 16
        %v2266 = vrot.slane %v2264, 1
        %v2267 = vor.u32 %v2262, %v2266
        %v2270 = vshrl.u32 %v2098, 16
        %v2272 = vshll.u32 %v2098, 16
        %v2274 = vrot.slane %v2272, 1
        %v2275 = vor.u32 %v2270, %v2274
        %v2278 = vrot.slane %v1590, 1
        %v2360 = vunpack.c.l.b16 %v2099
        %v2361 = vunpack.c.l.b16 %v2100
        %v2362 = vunpack.c.l.b16 %v2101
        %v2363 = vunpack.c.l.b16 %v2102
        %v2364 = vunpack.c.l.b16 %v2103
        %v2365 = vunpack.c.l.b16 %v2104
        %v2366 = vunpack.c.l.b16 %v2105
        %v2367 = vunpack.c.l.b16 %v2106
        %v2368 = vunpack.c.l.b16 %v2107
        %v2369 = vunpack.c.l.b16 %v2108
        %v2370 = vunpack.c.l.b16 %v2109
        %v2371 = vunpack.c.l.b16 %v2110
        %v2372 = vunpack.c.l.b16 %v2111
        %v2373 = vunpack.c.l.b16 %v2112
        %v2374 = vunpack.c.l.b16 %v2113
        %v2375 = vunpack.c.l.b16 %v2114
        %v2376 = vunpack.c.l.b16 %v2115
        %v2377 = vunpack.c.l.b16 %v2116
        %v2378 = vunpack.c.l.b16 %v2117
        %v2379 = vunpack.c.l.b16 %v2118
        %v2380 = vunpack.c.l.b16 %v2119
        %v2381 = vunpack.c.l.b16 %v2120
        %v2382 = vunpack.c.l.b16 %v2121
        %v2383 = vunpack.c.l.b16 %v2122
        %v2384 = vunpack.c.l.b16 %v2123
        %v2385 = vunpack.c.l.b16 %v2124
        %v2386 = vunpack.c.l.b16 %v2125
        %v2387 = vunpack.c.l.b16 %v2126
        %v2388 = vunpack.c.l.b16 %v2127
        %v2389 = vunpack.c.l.b16 %v2128
        %v2390 = vunpack.c.l.b16 %v2129
        %v2391 = vunpack.c.l.b16 %v2130
        %v2392 = vunpack.c.l.b16 %v2131
        %v2393 = vunpack.c.l.b16 %v2132
        %v2394 = vunpack.c.l.b16 %v2133
        %v2395 = vunpack.c.l.b16 %v2134
        %v2396 = vunpack.c.l.b16 %v2135
        %v2397 = vunpack.c.l.b16 %v2136
        %v2398 = vunpack.c.l.b16 %v2137
        %v2399 = vunpack.c.l.b16 %v2138
        %v2400 = vunpack.c.l.b16 %v2139
        %v2401 = vunpack.c.l.b16 %v2140
        %v2402 = vunpack.c.l.b16 %v2141
        %v2403 = vunpack.c.l.b16 %v2142
        %v2404 = vunpack.c.l.b16 %v2143
        %v2405 = vunpack.c.l.b16 %v2144
        %v2406 = vunpack.c.l.b16 %v2145
        %v2407 = vunpack.c.l.b16 %v2146
        %v2408 = vunpack.c.l.b16 %v2147
        %v2409 = vunpack.c.l.b16 %v2148
        %v2410 = vunpack.c.l.b16 %v2149
        %v2411 = vunpack.c.l.b16 %v2150
        %v2412 = vunpack.c.l.b16 %v2151
        %v2413 = vunpack.c.l.b16 %v2152
        %v2414 = vunpack.c.l.b16 %v2153
        %v2415 = vunpack.c.l.b16 %v2154
        %v2416 = vunpack.c.l.b16 %v2155
        %v2417 = vunpack.c.l.b16 %v2156
        %v2418 = vunpack.c.l.b16 %v2157
        %v2419 = vunpack.c.l.b16 %v2158
        %v2420 = vunpack.c.l.b16 %v2159
        %v2421 = vunpack.c.l.b16 %v2160
        %v2422 = vunpack.c.l.b16 %v2161
        %v2423 = vunpack.c.l.b16 %v2162
        %v2424 = vunpack.c.l.b16 %v2163
        %v2425 = vunpack.c.l.b16 %v2164
        %v2426 = vunpack.c.l.b16 %v2165
        %v2427 = vunpack.c.l.b16 %v2166
        %v2428 = vunpack.c.l.b16 %v2167
        %v2429 = vunpack.c.l.b16 %v2168
        %v2430 = vunpack.c.l.b16 %v2169
        %v2431 = vunpack.c.l.b16 %v2170
        %v2432 = vunpack.c.l.b16 %v2171
        %v2433 = vunpack.c.l.b16 %v2172
        %v2434 = vunpack.c.l.b16 %v2173
        %v2435 = vunpack.c.l.b16 %v2174
        %v2436 = vunpack.c.l.b16 %v2175
        %v2437 = vunpack.c.l.b16 %v2176
        %v2438 = vunpack.c.l.b16 %v2177
        %v2439 = vunpack.c.l.b16 %v2178
        %v2440 = vpack.c.b16 %v2361, %v2360
        %v2441 = vpack.c.b16 %v2363, %v2362
        %v2442 = vpack.c.b16 %v2365, %v2364
        %v2443 = vpack.c.b16 %v2367, %v2366
        %v2444 = vpack.c.b16 %v2369, %v2368
        %v2445 = vpack.c.b16 %v2371, %v2370
        %v2446 = vpack.c.b16 %v2373, %v2372
        %v2447 = vpack.c.b16 %v2375, %v2374
        %v2448 = vpack.c.b16 %v2377, %v2376
        %v2449 = vpack.c.b16 %v2379, %v2378
        %v2450 = vpack.c.b16 %v2381, %v2380
        %v2451 = vpack.c.b16 %v2383, %v2382
        %v2452 = vpack.c.b16 %v2385, %v2384
        %v2453 = vpack.c.b16 %v2387, %v2386
        %v2454 = vpack.c.b16 %v2389, %v2388
        %v2455 = vpack.c.b16 %v2391, %v2390
        %v2456 = vpack.c.b16 %v2393, %v2392
        %v2457 = vpack.c.b16 %v2395, %v2394
        %v2458 = vpack.c.b16 %v2397, %v2396
        %v2459 = vpack.c.b16 %v2399, %v2398
        %v2460 = vpack.c.b16 %v2401, %v2400
        %v2461 = vpack.c.b16 %v2403, %v2402
        %v2462 = vpack.c.b16 %v2405, %v2404
        %v2463 = vpack.c.b16 %v2407, %v2406
        %v2464 = vpack.c.b16 %v2409, %v2408
        %v2465 = vpack.c.b16 %v2411, %v2410
        %v2466 = vpack.c.b16 %v2413, %v2412
        %v2467 = vpack.c.b16 %v2415, %v2414
        %v2468 = vpack.c.b16 %v2417, %v2416
        %v2469 = vpack.c.b16 %v2419, %v2418
        %v2470 = vpack.c.b16 %v2421, %v2420
        %v2471 = vpack.c.b16 %v2423, %v2422
        %v2472 = vpack.c.b16 %v2425, %v2424
        %v2473 = vpack.c.b16 %v2427, %v2426
        %v2474 = vpack.c.b16 %v2429, %v2428
        %v2475 = vpack.c.b16 %v2431, %v2430
        %v2476 = vpack.c.b16 %v2433, %v2432
        %v2477 = vpack.c.b16 %v2435, %v2434
        %v2478 = vpack.c.b16 %v2437, %v2436
        %v2479 = vpack.c.b16 %v2439, %v2438
        %2520 = vmatprep.subr.bf16.mxu0 0
        %2521 = vmatpush1.bf16.msra.mxu0 %v2447
        %2522 = vmatprep.subr.bf16.mxu0 0
        %2523 = vmatpush1.bf16.msra.mxu0 %v2446
        %2524 = vmatprep.subr.bf16.mxu0 0
        %2525 = vmatpush1.bf16.msra.mxu0 %v2445
        %2526 = vmatprep.subr.bf16.mxu0 0
        %2527 = vmatpush1.bf16.msra.mxu0 %v2444
        %2528 = vmatprep.subr.bf16.mxu0 0
        %2529 = vmatpush1.bf16.msra.mxu0 %v2443
        %2530 = vmatprep.subr.bf16.mxu0 0
        %2531 = vmatpush1.bf16.msra.mxu0 %v2442
        %2532 = vmatprep.subr.bf16.mxu0 0
        %2533 = vmatpush1.bf16.msra.mxu0 %v2441
        %2534 = vmatprep.subr.bf16.mxu0 0
        %2535 = vmatpush1.bf16.msra.mxu0 %v2440
        %2536 = vmatprep.subr.bf16.mxu0 0
        %2537 = vmatpush2.bf16.msra.mxu0 %v2455
        %2538 = vmatprep.subr.bf16.mxu0 0
        %2539 = vmatpush2.bf16.msra.mxu0 %v2454
        %2540 = vmatprep.subr.bf16.mxu0 0
        %2541 = vmatpush2.bf16.msra.mxu0 %v2453
        %2542 = vmatprep.subr.bf16.mxu0 0
        %2543 = vmatpush2.bf16.msra.mxu0 %v2452
        %2544 = vmatprep.subr.bf16.mxu0 0
        %2545 = vmatpush2.bf16.msra.mxu0 %v2451
        %2546 = vmatprep.subr.bf16.mxu0 0
        %2547 = vmatpush2.bf16.msra.mxu0 %v2450
        %2548 = vmatprep.subr.bf16.mxu0 0
        %2549 = vmatpush2.bf16.msra.mxu0 %v2449
        %2550 = vmatprep.subr.bf16.mxu0 0
        %2551 = vmatpush2.bf16.msra.mxu0 %v2448
        %2552 = vmatprep.mubr.bf16.mxu0 %v2098
        %2553 = vmatmul.mubr.bf16.gmra.mxu0 %v1590
        %v2554 = vpop.f32.mrf.mxu0
        %v2555 = vadd.f32 0.0, %v2554
        %v2556 = vpop.f32.mrf.mxu0
        %v2557 = vpop.f32.mrf.mxu0
        %v2558 = vpop.f32.mrf.mxu0
        %2559 = vdwg.mxu0
        %2560 = vmatprep.subr.bf16.mxu0 0
        %2561 = vmatpush1.bf16.msra.mxu0 %v2463
        %2562 = vmatprep.subr.bf16.mxu0 0
        %2563 = vmatpush1.bf16.msra.mxu0 %v2462
        %2564 = vmatprep.subr.bf16.mxu0 0
        %2565 = vmatpush1.bf16.msra.mxu0 %v2461
        %2566 = vmatprep.subr.bf16.mxu0 0
        %2567 = vmatpush1.bf16.msra.mxu0 %v2460
        %2568 = vmatprep.subr.bf16.mxu0 0
        %2569 = vmatpush1.bf16.msra.mxu0 %v2459
        %2570 = vmatprep.subr.bf16.mxu0 0
        %2571 = vmatpush1.bf16.msra.mxu0 %v2458
        %2572 = vmatprep.subr.bf16.mxu0 0
        %2573 = vmatpush1.bf16.msra.mxu0 %v2457
        %2574 = vmatprep.subr.bf16.mxu0 0
        %2575 = vmatpush1.bf16.msra.mxu0 %v2456
        %2576 = vmatprep.subr.bf16.mxu0 0
        %2577 = vmatpush2.bf16.msra.mxu0 %v2471
        %2578 = vmatprep.subr.bf16.mxu0 0
        %2579 = vmatpush2.bf16.msra.mxu0 %v2470
        %2580 = vmatprep.subr.bf16.mxu0 0
        %2581 = vmatpush2.bf16.msra.mxu0 %v2469
        %2582 = vmatprep.subr.bf16.mxu0 0
        %2583 = vmatpush2.bf16.msra.mxu0 %v2468
        %2584 = vmatprep.subr.bf16.mxu0 0
        %2585 = vmatpush2.bf16.msra.mxu0 %v2467
        %2586 = vmatprep.subr.bf16.mxu0 0
        %2587 = vmatpush2.bf16.msra.mxu0 %v2466
        %2588 = vmatprep.subr.bf16.mxu0 0
        %2589 = vmatpush2.bf16.msra.mxu0 %v2465
        %2590 = vmatprep.subr.bf16.mxu0 0
        %2591 = vmatpush2.bf16.msra.mxu0 %v2464
        %2592 = vmatprep.mubr.bf16.mxu0 %v2275
        %2593 = vmatmul.mubr.bf16.gmra.mxu0 %v2267
        %v2594 = vpop.f32.mrf.mxu0
        %v2595 = vadd.f32 %v2555, %v2594
        %v2596 = vpop.f32.mrf.mxu0
        %v2597 = vpop.f32.mrf.mxu0
        %v2598 = vpop.f32.mrf.mxu0
        %2599 = vdwg.mxu0
        %2600 = vmatprep.subr.bf16.mxu0 0
        %2601 = vmatpush1.bf16.msra.mxu0 %v2479
        %2602 = vmatprep.subr.bf16.mxu0 0
        %2603 = vmatpush1.bf16.msra.mxu0 %v2478
        %2604 = vmatprep.subr.bf16.mxu0 0
        %2605 = vmatpush1.bf16.msra.mxu0 %v2477
        %2606 = vmatprep.subr.bf16.mxu0 0
        %2607 = vmatpush1.bf16.msra.mxu0 %v2476
        %2608 = vmatprep.subr.bf16.mxu0 0
        %2609 = vmatpush1.bf16.msra.mxu0 %v2475
        %2610 = vmatprep.subr.bf16.mxu0 0
        %2611 = vmatpush1.bf16.msra.mxu0 %v2474
        %2612 = vmatprep.subr.bf16.mxu0 0
        %2613 = vmatpush1.bf16.msra.mxu0 %v2473
        %2614 = vmatprep.subr.bf16.mxu0 0
        %2615 = vmatpush1.bf16.msra.mxu0 %v2472
        %2616 = vmatprep.subr.bf16.mxu0 0
        %2617 = vmatpush2.bf16.msra.mxu0 0
        %2618 = vmatprep.subr.bf16.mxu0 0
        %2619 = vmatpush2.bf16.msra.mxu0 0
        %2620 = vmatprep.subr.bf16.mxu0 0
        %2621 = vmatpush2.bf16.msra.mxu0 0
        %2622 = vmatprep.subr.bf16.mxu0 0
        %2623 = vmatpush2.bf16.msra.mxu0 0
        %2624 = vmatprep.subr.bf16.mxu0 0
        %2625 = vmatpush2.bf16.msra.mxu0 0
        %2626 = vmatprep.subr.bf16.mxu0 0
        %2627 = vmatpush2.bf16.msra.mxu0 0
        %2628 = vmatprep.subr.bf16.mxu0 0
        %2629 = vmatpush2.bf16.msra.mxu0 0
        %2630 = vmatprep.subr.bf16.mxu0 0
        %2631 = vmatpush2.bf16.msra.mxu0 0
        %2632 = vmatprep.mubr.bf16.mxu0 0
        %2633 = vmatmul.mubr.bf16.gmra.mxu0 %v2278
        %v2634 = vpop.f32.mrf.mxu0
        %v2635 = vadd.f32 %v2595, %v2634
        %v2636 = vpop.f32.mrf.mxu0
        %v2637 = vpop.f32.mrf.mxu0
        %v2638 = vpop.f32.mrf.mxu0
        %2639 = vdwg.mxu0
        %v2720 = vunpack.c.l.b16 %v2180
        %v2721 = vunpack.c.l.b16 %v2181
        %v2722 = vunpack.c.l.b16 %v2182
        %v2723 = vunpack.c.l.b16 %v2183
        %v2724 = vunpack.c.l.b16 %v2184
        %v2725 = vunpack.c.l.b16 %v2185
        %v2726 = vunpack.c.l.b16 %v2186
        %v2727 = vunpack.c.l.b16 %v2187
        %v2728 = vunpack.c.l.b16 %v2188
        %v2729 = vunpack.c.l.b16 %v2189
        %v2730 = vunpack.c.l.b16 %v2190
        %v2731 = vunpack.c.l.b16 %v2191
        %v2732 = vunpack.c.l.b16 %v2192
        %v2733 = vunpack.c.l.b16 %v2193
        %v2734 = vunpack.c.l.b16 %v2194
        %v2735 = vunpack.c.l.b16 %v2195
        %v2736 = vunpack.c.l.b16 %v2196
        %v2737 = vunpack.c.l.b16 %v2197
        %v2738 = vunpack.c.l.b16 %v2198
        %v2739 = vunpack.c.l.b16 %v2199
        %v2740 = vunpack.c.l.b16 %v2200
        %v2741 = vunpack.c.l.b16 %v2201
        %v2742 = vunpack.c.l.b16 %v2202
        %v2743 = vunpack.c.l.b16 %v2203
        %v2744 = vunpack.c.l.b16 %v2204
        %v2745 = vunpack.c.l.b16 %v2205
        %v2746 = vunpack.c.l.b16 %v2206
        %v2747 = vunpack.c.l.b16 %v2207
        %v2748 = vunpack.c.l.b16 %v2208
        %v2749 = vunpack.c.l.b16 %v2209
        %v2750 = vunpack.c.l.b16 %v2210
        %v2751 = vunpack.c.l.b16 %v2211
        %v2752 = vunpack.c.l.b16 %v2212
        %v2753 = vunpack.c.l.b16 %v2213
        %v2754 = vunpack.c.l.b16 %v2214
        %v2755 = vunpack.c.l.b16 %v2215
        %v2756 = vunpack.c.l.b16 %v2216
        %v2757 = vunpack.c.l.b16 %v2217
        %v2758 = vunpack.c.l.b16 %v2218
        %v2759 = vunpack.c.l.b16 %v2219
        %v2760 = vunpack.c.l.b16 %v2220
        %v2761 = vunpack.c.l.b16 %v2221
        %v2762 = vunpack.c.l.b16 %v2222
        %v2763 = vunpack.c.l.b16 %v2223
        %v2764 = vunpack.c.l.b16 %v2224
        %v2765 = vunpack.c.l.b16 %v2225
        %v2766 = vunpack.c.l.b16 %v2226
        %v2767 = vunpack.c.l.b16 %v2227
        %v2768 = vunpack.c.l.b16 %v2228
        %v2769 = vunpack.c.l.b16 %v2229
        %v2770 = vunpack.c.l.b16 %v2230
        %v2771 = vunpack.c.l.b16 %v2231
        %v2772 = vunpack.c.l.b16 %v2232
        %v2773 = vunpack.c.l.b16 %v2233
        %v2774 = vunpack.c.l.b16 %v2234
        %v2775 = vunpack.c.l.b16 %v2235
        %v2776 = vunpack.c.l.b16 %v2236
        %v2777 = vunpack.c.l.b16 %v2237
        %v2778 = vunpack.c.l.b16 %v2238
        %v2779 = vunpack.c.l.b16 %v2239
        %v2780 = vunpack.c.l.b16 %v2240
        %v2781 = vunpack.c.l.b16 %v2241
        %v2782 = vunpack.c.l.b16 %v2242
        %v2783 = vunpack.c.l.b16 %v2243
        %v2784 = vunpack.c.l.b16 %v2244
        %v2785 = vunpack.c.l.b16 %v2245
        %v2786 = vunpack.c.l.b16 %v2246
        %v2787 = vunpack.c.l.b16 %v2247
        %v2788 = vunpack.c.l.b16 %v2248
        %v2789 = vunpack.c.l.b16 %v2249
        %v2790 = vunpack.c.l.b16 %v2250
        %v2791 = vunpack.c.l.b16 %v2251
        %v2792 = vunpack.c.l.b16 %v2252
        %v2793 = vunpack.c.l.b16 %v2253
        %v2794 = vunpack.c.l.b16 %v2254
        %v2795 = vunpack.c.l.b16 %v2255
        %v2796 = vunpack.c.l.b16 %v2256
        %v2797 = vunpack.c.l.b16 %v2257
        %v2798 = vunpack.c.l.b16 %v2258
        %v2799 = vunpack.c.l.b16 %v2259
        %v2800 = vpack.c.b16 %v2721, %v2720
        %v2801 = vpack.c.b16 %v2723, %v2722
        %v2802 = vpack.c.b16 %v2725, %v2724
        %v2803 = vpack.c.b16 %v2727, %v2726
        %v2804 = vpack.c.b16 %v2729, %v2728
        %v2805 = vpack.c.b16 %v2731, %v2730
        %v2806 = vpack.c.b16 %v2733, %v2732
        %v2807 = vpack.c.b16 %v2735, %v2734
        %v2808 = vpack.c.b16 %v2737, %v2736
        %v2809 = vpack.c.b16 %v2739, %v2738
        %v2810 = vpack.c.b16 %v2741, %v2740
        %v2811 = vpack.c.b16 %v2743, %v2742
        %v2812 = vpack.c.b16 %v2745, %v2744
        %v2813 = vpack.c.b16 %v2747, %v2746
        %v2814 = vpack.c.b16 %v2749, %v2748
        %v2815 = vpack.c.b16 %v2751, %v2750
        %v2816 = vpack.c.b16 %v2753, %v2752
        %v2817 = vpack.c.b16 %v2755, %v2754
        %v2818 = vpack.c.b16 %v2757, %v2756
        %v2819 = vpack.c.b16 %v2759, %v2758
        %v2820 = vpack.c.b16 %v2761, %v2760
        %v2821 = vpack.c.b16 %v2763, %v2762
        %v2822 = vpack.c.b16 %v2765, %v2764
        %v2823 = vpack.c.b16 %v2767, %v2766
        %v2824 = vpack.c.b16 %v2769, %v2768
        %v2825 = vpack.c.b16 %v2771, %v2770
        %v2826 = vpack.c.b16 %v2773, %v2772
        %v2827 = vpack.c.b16 %v2775, %v2774
        %v2828 = vpack.c.b16 %v2777, %v2776
        %v2829 = vpack.c.b16 %v2779, %v2778
        %v2830 = vpack.c.b16 %v2781, %v2780
        %v2831 = vpack.c.b16 %v2783, %v2782
        %v2832 = vpack.c.b16 %v2785, %v2784
        %v2833 = vpack.c.b16 %v2787, %v2786
        %v2834 = vpack.c.b16 %v2789, %v2788
        %v2835 = vpack.c.b16 %v2791, %v2790
        %v2836 = vpack.c.b16 %v2793, %v2792
        %v2837 = vpack.c.b16 %v2795, %v2794
        %v2838 = vpack.c.b16 %v2797, %v2796
        %v2839 = vpack.c.b16 %v2799, %v2798
        %2880 = vmatprep.subr.bf16.mxu0 0
        %2881 = vmatpush1.bf16.msra.mxu0 %v2807
        %2882 = vmatprep.subr.bf16.mxu0 0
        %2883 = vmatpush1.bf16.msra.mxu0 %v2806
        %2884 = vmatprep.subr.bf16.mxu0 0
        %2885 = vmatpush1.bf16.msra.mxu0 %v2805
        %2886 = vmatprep.subr.bf16.mxu0 0
        %2887 = vmatpush1.bf16.msra.mxu0 %v2804
        %2888 = vmatprep.subr.bf16.mxu0 0
        %2889 = vmatpush1.bf16.msra.mxu0 %v2803
        %2890 = vmatprep.subr.bf16.mxu0 0
        %2891 = vmatpush1.bf16.msra.mxu0 %v2802
        %2892 = vmatprep.subr.bf16.mxu0 0
        %2893 = vmatpush1.bf16.msra.mxu0 %v2801
        %2894 = vmatprep.subr.bf16.mxu0 0
        %2895 = vmatpush1.bf16.msra.mxu0 %v2800
        %2896 = vmatprep.subr.bf16.mxu0 0
        %2897 = vmatpush2.bf16.msra.mxu0 %v2815
        %2898 = vmatprep.subr.bf16.mxu0 0
        %2899 = vmatpush2.bf16.msra.mxu0 %v2814
        %2900 = vmatprep.subr.bf16.mxu0 0
        %2901 = vmatpush2.bf16.msra.mxu0 %v2813
        %2902 = vmatprep.subr.bf16.mxu0 0
        %2903 = vmatpush2.bf16.msra.mxu0 %v2812
        %2904 = vmatprep.subr.bf16.mxu0 0
        %2905 = vmatpush2.bf16.msra.mxu0 %v2811
        %2906 = vmatprep.subr.bf16.mxu0 0
        %2907 = vmatpush2.bf16.msra.mxu0 %v2810
        %2908 = vmatprep.subr.bf16.mxu0 0
        %2909 = vmatpush2.bf16.msra.mxu0 %v2809
        %2910 = vmatprep.subr.bf16.mxu0 0
        %2911 = vmatpush2.bf16.msra.mxu0 %v2808
        %2912 = vmatprep.mubr.bf16.mxu0 %v2098
        %2913 = vmatmul.mubr.bf16.gmra.mxu0 %v1590
        %v2914 = vpop.f32.mrf.mxu0
        %v2915 = vadd.f32 0.0, %v2914
        %v2916 = vpop.f32.mrf.mxu0
        %v2917 = vpop.f32.mrf.mxu0
        %v2918 = vpop.f32.mrf.mxu0
        %2919 = vdwg.mxu0
        %2920 = vmatprep.subr.bf16.mxu0 0
        %2921 = vmatpush1.bf16.msra.mxu0 %v2823
        %2922 = vmatprep.subr.bf16.mxu0 0
        %2923 = vmatpush1.bf16.msra.mxu0 %v2822
        %2924 = vmatprep.subr.bf16.mxu0 0
        %2925 = vmatpush1.bf16.msra.mxu0 %v2821
        %2926 = vmatprep.subr.bf16.mxu0 0
        %2927 = vmatpush1.bf16.msra.mxu0 %v2820
        %2928 = vmatprep.subr.bf16.mxu0 0
        %2929 = vmatpush1.bf16.msra.mxu0 %v2819
        %2930 = vmatprep.subr.bf16.mxu0 0
        %2931 = vmatpush1.bf16.msra.mxu0 %v2818
        %2932 = vmatprep.subr.bf16.mxu0 0
        %2933 = vmatpush1.bf16.msra.mxu0 %v2817
        %2934 = vmatprep.subr.bf16.mxu0 0
        %2935 = vmatpush1.bf16.msra.mxu0 %v2816
        %2936 = vmatprep.subr.bf16.mxu0 0
        %2937 = vmatpush2.bf16.msra.mxu0 %v2831
        %2938 = vmatprep.subr.bf16.mxu0 0
        %2939 = vmatpush2.bf16.msra.mxu0 %v2830
        %2940 = vmatprep.subr.bf16.mxu0 0
        %2941 = vmatpush2.bf16.msra.mxu0 %v2829
        %2942 = vmatprep.subr.bf16.mxu0 0
        %2943 = vmatpush2.bf16.msra.mxu0 %v2828
        %2944 = vmatprep.subr.bf16.mxu0 0
        %2945 = vmatpush2.bf16.msra.mxu0 %v2827
        %2946 = vmatprep.subr.bf16.mxu0 0
        %2947 = vmatpush2.bf16.msra.mxu0 %v2826
        %2948 = vmatprep.subr.bf16.mxu0 0
        %2949 = vmatpush2.bf16.msra.mxu0 %v2825
        %2950 = vmatprep.subr.bf16.mxu0 0
        %2951 = vmatpush2.bf16.msra.mxu0 %v2824
        %2952 = vmatprep.mubr.bf16.mxu0 %v2275
        %2953 = vmatmul.mubr.bf16.gmra.mxu0 %v2267
        %v2954 = vpop.f32.mrf.mxu0
        %v2955 = vadd.f32 %v2915, %v2954
        %v2956 = vpop.f32.mrf.mxu0
        %v2957 = vpop.f32.mrf.mxu0
        %v2958 = vpop.f32.mrf.mxu0
        %2959 = vdwg.mxu0
        %2960 = vmatprep.subr.bf16.mxu0 0
        %2961 = vmatpush1.bf16.msra.mxu0 %v2839
        %2962 = vmatprep.subr.bf16.mxu0 0
        %2963 = vmatpush1.bf16.msra.mxu0 %v2838
        %2964 = vmatprep.subr.bf16.mxu0 0
        %2965 = vmatpush1.bf16.msra.mxu0 %v2837
        %2966 = vmatprep.subr.bf16.mxu0 0
        %2967 = vmatpush1.bf16.msra.mxu0 %v2836
        %2968 = vmatprep.subr.bf16.mxu0 0
        %2969 = vmatpush1.bf16.msra.mxu0 %v2835
        %2970 = vmatprep.subr.bf16.mxu0 0
        %2971 = vmatpush1.bf16.msra.mxu0 %v2834
        %2972 = vmatprep.subr.bf16.mxu0 0
        %2973 = vmatpush1.bf16.msra.mxu0 %v2833
        %2974 = vmatprep.subr.bf16.mxu0 0
        %2975 = vmatpush1.bf16.msra.mxu0 %v2832
        %2976 = vmatprep.subr.bf16.mxu0 0
        %2977 = vmatpush2.bf16.msra.mxu0 0
        %2978 = vmatprep.subr.bf16.mxu0 0
        %2979 = vmatpush2.bf16.msra.mxu0 0
        %2980 = vmatprep.subr.bf16.mxu0 0
        %2981 = vmatpush2.bf16.msra.mxu0 0
        %2982 = vmatprep.subr.bf16.mxu0 0
        %2983 = vmatpush2.bf16.msra.mxu0 0
        %2984 = vmatprep.subr.bf16.mxu0 0
        %2985 = vmatpush2.bf16.msra.mxu0 0
        %2986 = vmatprep.subr.bf16.mxu0 0
        %2987 = vmatpush2.bf16.msra.mxu0 0
        %2988 = vmatprep.subr.bf16.mxu0 0
        %2989 = vmatpush2.bf16.msra.mxu0 0
        %2990 = vmatprep.subr.bf16.mxu0 0
        %2991 = vmatpush2.bf16.msra.mxu0 0
        %2992 = vmatprep.mubr.bf16.mxu0 0
        %2993 = vmatmul.mubr.bf16.gmra.mxu0 %v2278
        %v2994 = vpop.f32.mrf.mxu0
        %v2995 = vadd.f32 %v2955, %v2994
        %v2996 = vpop.f32.mrf.mxu0
        %v2997 = vpop.f32.mrf.mxu0
        %v2998 = vpop.f32.mrf.mxu0
        %2999 = vdwg.mxu0
        %v3000 = vmax.f32 %v2635, %v2995
        %v3002 = vrot.slane %v2098, 1
        %3004 = vmatprep.subr.bf16.mxu0 0
        %3005 = vmatpush1.bf16.msra.mxu0 %v2447
        %3006 = vmatprep.subr.bf16.mxu0 0
        %3007 = vmatpush1.bf16.msra.mxu0 %v2446
        %3008 = vmatprep.subr.bf16.mxu0 0
        %3009 = vmatpush1.bf16.msra.mxu0 %v2445
        %3010 = vmatprep.subr.bf16.mxu0 0
        %3011 = vmatpush1.bf16.msra.mxu0 %v2444
        %3012 = vmatprep.subr.bf16.mxu0 0
        %3013 = vmatpush1.bf16.msra.mxu0 %v2443
        %3014 = vmatprep.subr.bf16.mxu0 0
        %3015 = vmatpush1.bf16.msra.mxu0 %v2442
        %3016 = vmatprep.subr.bf16.mxu0 0
        %3017 = vmatpush1.bf16.msra.mxu0 %v2441
        %3018 = vmatprep.subr.bf16.mxu0 0
        %3019 = vmatpush1.bf16.msra.mxu0 %v2440
        %3020 = vmatprep.subr.bf16.mxu0 0
        %3021 = vmatpush2.bf16.msra.mxu0 %v2455
        %3022 = vmatprep.subr.bf16.mxu0 0
        %3023 = vmatpush2.bf16.msra.mxu0 %v2454
        %3024 = vmatprep.subr.bf16.mxu0 0
        %3025 = vmatpush2.bf16.msra.mxu0 %v2453
        %3026 = vmatprep.subr.bf16.mxu0 0
        %3027 = vmatpush2.bf16.msra.mxu0 %v2452
        %3028 = vmatprep.subr.bf16.mxu0 0
        %3029 = vmatpush2.bf16.msra.mxu0 %v2451
        %3030 = vmatprep.subr.bf16.mxu0 0
        %3031 = vmatpush2.bf16.msra.mxu0 %v2450
        %3032 = vmatprep.subr.bf16.mxu0 0
        %3033 = vmatpush2.bf16.msra.mxu0 %v2449
        %3034 = vmatprep.subr.bf16.mxu0 0
        %3035 = vmatpush2.bf16.msra.mxu0 %v2448
        %3036 = vmatprep.mubr.bf16.mxu0 %v2267
        %3037 = vmatmul.mubr.bf16.gmra.mxu0 %v2098
        %v3038 = vpop.f32.mrf.mxu0
        %v3039 = vadd.f32 0.0, %v3038
        %v3040 = vpop.f32.mrf.mxu0
        %v3041 = vpop.f32.mrf.mxu0
        %v3042 = vpop.f32.mrf.mxu0
        %3043 = vdwg.mxu0
        %3044 = vmatprep.subr.bf16.mxu0 0
        %3045 = vmatpush1.bf16.msra.mxu0 %v2463
        %3046 = vmatprep.subr.bf16.mxu0 0
        %3047 = vmatpush1.bf16.msra.mxu0 %v2462
        %3048 = vmatprep.subr.bf16.mxu0 0
        %3049 = vmatpush1.bf16.msra.mxu0 %v2461
        %3050 = vmatprep.subr.bf16.mxu0 0
        %3051 = vmatpush1.bf16.msra.mxu0 %v2460
        %3052 = vmatprep.subr.bf16.mxu0 0
        %3053 = vmatpush1.bf16.msra.mxu0 %v2459
        %3054 = vmatprep.subr.bf16.mxu0 0
        %3055 = vmatpush1.bf16.msra.mxu0 %v2458
        %3056 = vmatprep.subr.bf16.mxu0 0
        %3057 = vmatpush1.bf16.msra.mxu0 %v2457
        %3058 = vmatprep.subr.bf16.mxu0 0
        %3059 = vmatpush1.bf16.msra.mxu0 %v2456
        %3060 = vmatprep.subr.bf16.mxu0 0
        %3061 = vmatpush2.bf16.msra.mxu0 %v2471
        %3062 = vmatprep.subr.bf16.mxu0 0
        %3063 = vmatpush2.bf16.msra.mxu0 %v2470
        %3064 = vmatprep.subr.bf16.mxu0 0
        %3065 = vmatpush2.bf16.msra.mxu0 %v2469
        %3066 = vmatprep.subr.bf16.mxu0 0
        %3067 = vmatpush2.bf16.msra.mxu0 %v2468
        %3068 = vmatprep.subr.bf16.mxu0 0
        %3069 = vmatpush2.bf16.msra.mxu0 %v2467
        %3070 = vmatprep.subr.bf16.mxu0 0
        %3071 = vmatpush2.bf16.msra.mxu0 %v2466
        %3072 = vmatprep.subr.bf16.mxu0 0
        %3073 = vmatpush2.bf16.msra.mxu0 %v2465
        %3074 = vmatprep.subr.bf16.mxu0 0
        %3075 = vmatpush2.bf16.msra.mxu0 %v2464
        %3076 = vmatprep.mubr.bf16.mxu0 %v2278
        %3077 = vmatmul.mubr.bf16.gmra.mxu0 %v2275
        %v3078 = vpop.f32.mrf.mxu0
        %v3079 = vadd.f32 %v3039, %v3078
        %v3080 = vpop.f32.mrf.mxu0
        %v3081 = vpop.f32.mrf.mxu0
        %v3082 = vpop.f32.mrf.mxu0
        %3083 = vdwg.mxu0
        %3084 = vmatprep.subr.bf16.mxu0 0
        %3085 = vmatpush1.bf16.msra.mxu0 %v2479
        %3086 = vmatprep.subr.bf16.mxu0 0
        %3087 = vmatpush1.bf16.msra.mxu0 %v2478
        %3088 = vmatprep.subr.bf16.mxu0 0
        %3089 = vmatpush1.bf16.msra.mxu0 %v2477
        %3090 = vmatprep.subr.bf16.mxu0 0
        %3091 = vmatpush1.bf16.msra.mxu0 %v2476
        %3092 = vmatprep.subr.bf16.mxu0 0
        %3093 = vmatpush1.bf16.msra.mxu0 %v2475
        %3094 = vmatprep.subr.bf16.mxu0 0
        %3095 = vmatpush1.bf16.msra.mxu0 %v2474
        %3096 = vmatprep.subr.bf16.mxu0 0
        %3097 = vmatpush1.bf16.msra.mxu0 %v2473
        %3098 = vmatprep.subr.bf16.mxu0 0
        %3099 = vmatpush1.bf16.msra.mxu0 %v2472
        %3100 = vmatprep.subr.bf16.mxu0 0
        %3101 = vmatpush2.bf16.msra.mxu0 0
        %3102 = vmatprep.subr.bf16.mxu0 0
        %3103 = vmatpush2.bf16.msra.mxu0 0
        %3104 = vmatprep.subr.bf16.mxu0 0
        %3105 = vmatpush2.bf16.msra.mxu0 0
        %3106 = vmatprep.subr.bf16.mxu0 0
        %3107 = vmatpush2.bf16.msra.mxu0 0
        %3108 = vmatprep.subr.bf16.mxu0 0
        %3109 = vmatpush2.bf16.msra.mxu0 0
        %3110 = vmatprep.subr.bf16.mxu0 0
        %3111 = vmatpush2.bf16.msra.mxu0 0
        %3112 = vmatprep.subr.bf16.mxu0 0
        %3113 = vmatpush2.bf16.msra.mxu0 0
        %3114 = vmatprep.subr.bf16.mxu0 0
        %3115 = vmatpush2.bf16.msra.mxu0 0
        %3116 = vmatprep.mubr.bf16.mxu0 0
        %3117 = vmatmul.mubr.bf16.gmra.mxu0 %v3002
        %v3118 = vpop.f32.mrf.mxu0
        %v3119 = vadd.f32 %v3079, %v3118
        %v3120 = vpop.f32.mrf.mxu0
        %v3121 = vpop.f32.mrf.mxu0
        %v3122 = vpop.f32.mrf.mxu0
        %3123 = vdwg.mxu0
        %v3124 = vmax.f32 %v3000, %v3119
        %3125 = vmatprep.subr.bf16.mxu0 0
        %3126 = vmatpush1.bf16.msra.mxu0 %v2807
        %3127 = vmatprep.subr.bf16.mxu0 0
        %3128 = vmatpush1.bf16.msra.mxu0 %v2806
        %3129 = vmatprep.subr.bf16.mxu0 0
        %3130 = vmatpush1.bf16.msra.mxu0 %v2805
        %3131 = vmatprep.subr.bf16.mxu0 0
        %3132 = vmatpush1.bf16.msra.mxu0 %v2804
        %3133 = vmatprep.subr.bf16.mxu0 0
        %3134 = vmatpush1.bf16.msra.mxu0 %v2803
        %3135 = vmatprep.subr.bf16.mxu0 0
        %3136 = vmatpush1.bf16.msra.mxu0 %v2802
        %3137 = vmatprep.subr.bf16.mxu0 0
        %3138 = vmatpush1.bf16.msra.mxu0 %v2801
        %3139 = vmatprep.subr.bf16.mxu0 0
        %3140 = vmatpush1.bf16.msra.mxu0 %v2800
        %3141 = vmatprep.subr.bf16.mxu0 0
        %3142 = vmatpush2.bf16.msra.mxu0 %v2815
        %3143 = vmatprep.subr.bf16.mxu0 0
        %3144 = vmatpush2.bf16.msra.mxu0 %v2814
        %3145 = vmatprep.subr.bf16.mxu0 0
        %3146 = vmatpush2.bf16.msra.mxu0 %v2813
        %3147 = vmatprep.subr.bf16.mxu0 0
        %3148 = vmatpush2.bf16.msra.mxu0 %v2812
        %3149 = vmatprep.subr.bf16.mxu0 0
        %3150 = vmatpush2.bf16.msra.mxu0 %v2811
        %3151 = vmatprep.subr.bf16.mxu0 0
        %3152 = vmatpush2.bf16.msra.mxu0 %v2810
        %3153 = vmatprep.subr.bf16.mxu0 0
        %3154 = vmatpush2.bf16.msra.mxu0 %v2809
        %3155 = vmatprep.subr.bf16.mxu0 0
        %3156 = vmatpush2.bf16.msra.mxu0 %v2808
        %3157 = vmatprep.mubr.bf16.mxu0 %v2267
        %3158 = vmatmul.mubr.bf16.gmra.mxu0 %v2098
        %v3159 = vpop.f32.mrf.mxu0
        %v3160 = vadd.f32 0.0, %v3159
        %v3161 = vpop.f32.mrf.mxu0
        %v3162 = vpop.f32.mrf.mxu0
        %v3163 = vpop.f32.mrf.mxu0
        %3164 = vdwg.mxu0
        %3165 = vmatprep.subr.bf16.mxu0 0
        %3166 = vmatpush1.bf16.msra.mxu0 %v2823
        %3167 = vmatprep.subr.bf16.mxu0 0
        %3168 = vmatpush1.bf16.msra.mxu0 %v2822
        %3169 = vmatprep.subr.bf16.mxu0 0
        %3170 = vmatpush1.bf16.msra.mxu0 %v2821
        %3171 = vmatprep.subr.bf16.mxu0 0
        %3172 = vmatpush1.bf16.msra.mxu0 %v2820
        %3173 = vmatprep.subr.bf16.mxu0 0
        %3174 = vmatpush1.bf16.msra.mxu0 %v2819
        %3175 = vmatprep.subr.bf16.mxu0 0
        %3176 = vmatpush1.bf16.msra.mxu0 %v2818
        %3177 = vmatprep.subr.bf16.mxu0 0
        %3178 = vmatpush1.bf16.msra.mxu0 %v2817
        %3179 = vmatprep.subr.bf16.mxu0 0
        %3180 = vmatpush1.bf16.msra.mxu0 %v2816
        %3181 = vmatprep.subr.bf16.mxu0 0
        %3182 = vmatpush2.bf16.msra.mxu0 %v2831
        %3183 = vmatprep.subr.bf16.mxu0 0
        %3184 = vmatpush2.bf16.msra.mxu0 %v2830
        %3185 = vmatprep.subr.bf16.mxu0 0
        %3186 = vmatpush2.bf16.msra.mxu0 %v2829
        %3187 = vmatprep.subr.bf16.mxu0 0
        %3188 = vmatpush2.bf16.msra.mxu0 %v2828
        %3189 = vmatprep.subr.bf16.mxu0 0
        %3190 = vmatpush2.bf16.msra.mxu0 %v2827
        %3191 = vmatprep.subr.bf16.mxu0 0
        %3192 = vmatpush2.bf16.msra.mxu0 %v2826
        %3193 = vmatprep.subr.bf16.mxu0 0
        %3194 = vmatpush2.bf16.msra.mxu0 %v2825
        %3195 = vmatprep.subr.bf16.mxu0 0
        %3196 = vmatpush2.bf16.msra.mxu0 %v2824
        %3197 = vmatprep.mubr.bf16.mxu0 %v2278
        %3198 = vmatmul.mubr.bf16.gmra.mxu0 %v2275
        %v3199 = vpop.f32.mrf.mxu0
        %v3200 = vadd.f32 %v3160, %v3199
        %v3201 = vpop.f32.mrf.mxu0
        %v3202 = vpop.f32.mrf.mxu0
        %v3203 = vpop.f32.mrf.mxu0
        %3204 = vdwg.mxu0
        %3205 = vmatprep.subr.bf16.mxu0 0
        %3206 = vmatpush1.bf16.msra.mxu0 %v2839
        %3207 = vmatprep.subr.bf16.mxu0 0
        %3208 = vmatpush1.bf16.msra.mxu0 %v2838
        %3209 = vmatprep.subr.bf16.mxu0 0
        %3210 = vmatpush1.bf16.msra.mxu0 %v2837
        %3211 = vmatprep.subr.bf16.mxu0 0
        %3212 = vmatpush1.bf16.msra.mxu0 %v2836
        %3213 = vmatprep.subr.bf16.mxu0 0
        %3214 = vmatpush1.bf16.msra.mxu0 %v2835
        %3215 = vmatprep.subr.bf16.mxu0 0
        %3216 = vmatpush1.bf16.msra.mxu0 %v2834
        %3217 = vmatprep.subr.bf16.mxu0 0
        %3218 = vmatpush1.bf16.msra.mxu0 %v2833
        %3219 = vmatprep.subr.bf16.mxu0 0
        %3220 = vmatpush1.bf16.msra.mxu0 %v2832
        %3221 = vmatprep.subr.bf16.mxu0 0
        %3222 = vmatpush2.bf16.msra.mxu0 0
        %3223 = vmatprep.subr.bf16.mxu0 0
        %3224 = vmatpush2.bf16.msra.mxu0 0
        %3225 = vmatprep.subr.bf16.mxu0 0
        %3226 = vmatpush2.bf16.msra.mxu0 0
        %3227 = vmatprep.subr.bf16.mxu0 0
        %3228 = vmatpush2.bf16.msra.mxu0 0
        %3229 = vmatprep.subr.bf16.mxu0 0
        %3230 = vmatpush2.bf16.msra.mxu0 0
        %3231 = vmatprep.subr.bf16.mxu0 0
        %3232 = vmatpush2.bf16.msra.mxu0 0
        %3233 = vmatprep.subr.bf16.mxu0 0
        %3234 = vmatpush2.bf16.msra.mxu0 0
        %3235 = vmatprep.subr.bf16.mxu0 0
        %3236 = vmatpush2.bf16.msra.mxu0 0
        %3237 = vmatprep.mubr.bf16.mxu0 0
        %3238 = vmatmul.mubr.bf16.gmra.mxu0 %v3002
        %v3239 = vpop.f32.mrf.mxu0
        %v3240 = vadd.f32 %v3200, %v3239
        %v3241 = vpop.f32.mrf.mxu0
        %v3242 = vpop.f32.mrf.mxu0
        %v3243 = vpop.f32.mrf.mxu0
        %3244 = vdwg.mxu0
        %v3245 = vmax.f32 %v3124, %v3240
        %v3247 = vlaneseq
        %v3248 = vshrl.u32 %v3247, 7
        %v3249 = vsub.s32 0, %v3248
        %v3250 = vrot.slane %v2260, %v3249
        %v3252 = vadd.f32 %v3245, %v3250
        %v3253 = vmax.f32 %v3252, 0.0
        %v3254 = vpack.c.bf16 %v3253, %v3253
        %v3256 = vshrl.u32 %v3254, 16
        %v3260 = vrot.slane %v3254, 1
        %v3262 = vrot.slane %v3256, 1
        %v3264 = vrot.slane %v3254, 2
        %v3266 = vld [vmem:[#allocation5] sm:$0xf]
        %v3267 = vld [vmem:[#allocation5 + $0x4] sm:$0xf]
        %v3268 = vld [vmem:[#allocation5 + $0x8] sm:$0xf]
        %v3269 = vld [vmem:[#allocation5 + $0xc] sm:$0xf]
        %v3270 = vld [vmem:[#allocation5 + $0x10] sm:$0xf]
        %v3271 = vld [vmem:[#allocation5 + $0x14] sm:$0xf]
        %v3272 = vld [vmem:[#allocation5 + $0x18] sm:$0xf]
        %v3273 = vld [vmem:[#allocation5 + $0x1c] sm:$0xf]
        %v3274 = vld [vmem:[#allocation5 + $0x20] sm:$0xf]
        %v3275 = vld [vmem:[#allocation5 + $0x24] sm:$0xf]
        %v3276 = vld [vmem:[#allocation5 + $0x28] sm:$0xf]
        %v3277 = vld [vmem:[#allocation5 + $0x2c] sm:$0xf]
        %v3278 = vld [vmem:[#allocation5 + $0x30] sm:$0xf]
        %v3279 = vld [vmem:[#allocation5 + $0x34] sm:$0xf]
        %v3280 = vld [vmem:[#allocation5 + $0x38] sm:$0xf]
        %v3281 = vld [vmem:[#allocation5 + $0x3c] sm:$0xf]
        %v3282 = vld [vmem:[#allocation5 + $0x40] sm:$0xf]
        %v3283 = vld [vmem:[#allocation5 + $0x44] sm:$0xf]
        %v3284 = vld [vmem:[#allocation5 + $0x48] sm:$0xf]
        %v3285 = vld [vmem:[#allocation5 + $0x4c] sm:$0xf]
        %v3286 = vld [vmem:[#allocation5 + $0x50] sm:$0xf]
        %v3287 = vld [vmem:[#allocation5 + $0x54] sm:$0xf]
        %v3288 = vld [vmem:[#allocation5 + $0x58] sm:$0xf]
        %v3289 = vld [vmem:[#allocation5 + $0x5c] sm:$0xf]
        %v3290 = vld [vmem:[#allocation5 + $0x60] sm:$0xf]
        %v3291 = vld [vmem:[#allocation5 + $0x64] sm:$0xf]
        %v3292 = vld [vmem:[#allocation5 + $0x68] sm:$0xf]
        %v3293 = vld [vmem:[#allocation5 + $0x6c] sm:$0xf]
        %v3294 = vld [vmem:[#allocation5 + $0x70] sm:$0xf]
        %v3295 = vld [vmem:[#allocation5 + $0x74] sm:$0xf]
        %v3296 = vld [vmem:[#allocation5 + $0x78] sm:$0xf]
        %v3297 = vld [vmem:[#allocation5 + $0x7c] sm:$0xf]
        %v3298 = vld [vmem:[#allocation5 + $0x80] sm:$0xf]
        %v3299 = vld [vmem:[#allocation5 + $0x84] sm:$0xf]
        %v3300 = vld [vmem:[#allocation5 + $0x88] sm:$0xf]
        %v3301 = vld [vmem:[#allocation5 + $0x8c] sm:$0xf]
        %v3302 = vld [vmem:[#allocation5 + $0x90] sm:$0xf]
        %v3303 = vld [vmem:[#allocation5 + $0x94] sm:$0xf]
        %v3304 = vld [vmem:[#allocation5 + $0x98] sm:$0xf]
        %v3305 = vld [vmem:[#allocation5 + $0x9c] sm:$0xf]
        %v3306 = vld [vmem:[#allocation5 + $0xa0] sm:$0xf]
        %v3307 = vld [vmem:[#allocation5 + $0xa4] sm:$0xf]
        %v3308 = vld [vmem:[#allocation5 + $0xa8] sm:$0xf]
        %v3309 = vld [vmem:[#allocation5 + $0xac] sm:$0xf]
        %v3310 = vld [vmem:[#allocation5 + $0xb0] sm:$0xf]
        %v3311 = vld [vmem:[#allocation5 + $0xb4] sm:$0xf]
        %v3312 = vld [vmem:[#allocation5 + $0xb8] sm:$0xf]
        %v3313 = vld [vmem:[#allocation5 + $0xbc] sm:$0xf]
        %v3314 = vld [vmem:[#allocation5 + $0xc0] sm:$0xf]
        %v3315 = vld [vmem:[#allocation5 + $0xc4] sm:$0xf]
        %v3316 = vld [vmem:[#allocation5 + $0xc8] sm:$0xf]
        %v3317 = vld [vmem:[#allocation5 + $0xcc] sm:$0xf]
        %v3318 = vld [vmem:[#allocation5 + $0xd0] sm:$0xf]
        %v3319 = vld [vmem:[#allocation5 + $0xd4] sm:$0xf]
        %v3320 = vld [vmem:[#allocation5 + $0xd8] sm:$0xf]
        %v3321 = vld [vmem:[#allocation5 + $0xdc] sm:$0xf]
        %v3322 = vld [vmem:[#allocation5 + $0xe0] sm:$0xf]
        %v3323 = vld [vmem:[#allocation5 + $0xe4] sm:$0xf]
        %v3324 = vld [vmem:[#allocation5 + $0xe8] sm:$0xf]
        %v3325 = vld [vmem:[#allocation5 + $0xec] sm:$0xf]
        %v3326 = vld [vmem:[#allocation5 + $0xf0] sm:$0xf]
        %v3327 = vld [vmem:[#allocation5 + $0xf4] sm:$0xf]
        %v3328 = vld [vmem:[#allocation5 + $0xf8] sm:$0xf]
        %v3329 = vld [vmem:[#allocation5 + $0xfc] sm:$0xf]
        %v3330 = vld [vmem:[#allocation5 + $0x100] sm:$0xf]
        %v3331 = vld [vmem:[#allocation5 + $0x104] sm:$0xf]
        %v3332 = vld [vmem:[#allocation5 + $0x108] sm:$0xf]
        %v3333 = vld [vmem:[#allocation5 + $0x10c] sm:$0xf]
        %v3334 = vld [vmem:[#allocation5 + $0x110] sm:$0xf]
        %v3335 = vld [vmem:[#allocation5 + $0x114] sm:$0xf]
        %v3336 = vld [vmem:[#allocation5 + $0x118] sm:$0xf]
        %v3337 = vld [vmem:[#allocation5 + $0x11c] sm:$0xf]
        %v3338 = vld [vmem:[#allocation5 + $0x120] sm:$0xf]
        %v3339 = vld [vmem:[#allocation5 + $0x124] sm:$0xf]
        %v3340 = vld [vmem:[#allocation5 + $0x128] sm:$0xf]
        %v3341 = vld [vmem:[#allocation5 + $0x12c] sm:$0xf]
        %v3342 = vld [vmem:[#allocation5 + $0x130] sm:$0xf]
        %v3343 = vld [vmem:[#allocation5 + $0x134] sm:$0xf]
        %v3344 = vld [vmem:[#allocation5 + $0x138] sm:$0xf]
        %v3345 = vld [vmem:[#allocation5 + $0x13c] sm:$0xf]
        %v3346 = vld [vmem:[%s6] sm:$0x1]
        %v3427 = vunpack.c.l.b16 %v3266
        %v3428 = vunpack.c.l.b16 %v3267
        %v3429 = vunpack.c.l.b16 %v3268
        %v3430 = vunpack.c.l.b16 %v3269
        %v3431 = vunpack.c.l.b16 %v3270
        %v3432 = vunpack.c.l.b16 %v3271
        %v3433 = vunpack.c.l.b16 %v3272
        %v3434 = vunpack.c.l.b16 %v3273
        %v3435 = vunpack.c.l.b16 %v3274
        %v3436 = vunpack.c.l.b16 %v3275
        %v3437 = vunpack.c.l.b16 %v3276
        %v3438 = vunpack.c.l.b16 %v3277
        %v3439 = vunpack.c.l.b16 %v3278
        %v3440 = vunpack.c.l.b16 %v3279
        %v3441 = vunpack.c.l.b16 %v3280
        %v3442 = vunpack.c.l.b16 %v3281
        %v3443 = vunpack.c.l.b16 %v3282
        %v3444 = vunpack.c.l.b16 %v3283
        %v3445 = vunpack.c.l.b16 %v3284
        %v3446 = vunpack.c.l.b16 %v3285
        %v3447 = vunpack.c.l.b16 %v3286
        %v3448 = vunpack.c.l.b16 %v3287
        %v3449 = vunpack.c.l.b16 %v3288
        %v3450 = vunpack.c.l.b16 %v3289
        %v3451 = vunpack.c.l.b16 %v3290
        %v3452 = vunpack.c.l.b16 %v3291
        %v3453 = vunpack.c.l.b16 %v3292
        %v3454 = vunpack.c.l.b16 %v3293
        %v3455 = vunpack.c.l.b16 %v3294
        %v3456 = vunpack.c.l.b16 %v3295
        %v3457 = vunpack.c.l.b16 %v3296
        %v3458 = vunpack.c.l.b16 %v3297
        %v3459 = vunpack.c.l.b16 %v3298
        %v3460 = vunpack.c.l.b16 %v3299
        %v3461 = vunpack.c.l.b16 %v3300
        %v3462 = vunpack.c.l.b16 %v3301
        %v3463 = vunpack.c.l.b16 %v3302
        %v3464 = vunpack.c.l.b16 %v3303
        %v3465 = vunpack.c.l.b16 %v3304
        %v3466 = vunpack.c.l.b16 %v3305
        %v3467 = vunpack.c.l.b16 %v3306
        %v3468 = vunpack.c.l.b16 %v3307
        %v3469 = vunpack.c.l.b16 %v3308
        %v3470 = vunpack.c.l.b16 %v3309
        %v3471 = vunpack.c.l.b16 %v3310
        %v3472 = vunpack.c.l.b16 %v3311
        %v3473 = vunpack.c.l.b16 %v3312
        %v3474 = vunpack.c.l.b16 %v3313
        %v3475 = vunpack.c.l.b16 %v3314
        %v3476 = vunpack.c.l.b16 %v3315
        %v3477 = vunpack.c.l.b16 %v3316
        %v3478 = vunpack.c.l.b16 %v3317
        %v3479 = vunpack.c.l.b16 %v3318
        %v3480 = vunpack.c.l.b16 %v3319
        %v3481 = vunpack.c.l.b16 %v3320
        %v3482 = vunpack.c.l.b16 %v3321
        %v3483 = vunpack.c.l.b16 %v3322
        %v3484 = vunpack.c.l.b16 %v3323
        %v3485 = vunpack.c.l.b16 %v3324
        %v3486 = vunpack.c.l.b16 %v3325
        %v3487 = vunpack.c.l.b16 %v3326
        %v3488 = vunpack.c.l.b16 %v3327
        %v3489 = vunpack.c.l.b16 %v3328
        %v3490 = vunpack.c.l.b16 %v3329
        %v3491 = vunpack.c.l.b16 %v3330
        %v3492 = vunpack.c.l.b16 %v3331
        %v3493 = vunpack.c.l.b16 %v3332
        %v3494 = vunpack.c.l.b16 %v3333
        %v3495 = vunpack.c.l.b16 %v3334
        %v3496 = vunpack.c.l.b16 %v3335
        %v3497 = vunpack.c.l.b16 %v3336
        %v3498 = vunpack.c.l.b16 %v3337
        %v3499 = vunpack.c.l.b16 %v3338
        %v3500 = vunpack.c.l.b16 %v3339
        %v3501 = vunpack.c.l.b16 %v3340
        %v3502 = vunpack.c.l.b16 %v3341
        %v3503 = vunpack.c.l.b16 %v3342
        %v3504 = vunpack.c.l.b16 %v3343
        %v3505 = vunpack.c.l.b16 %v3344
        %v3506 = vunpack.c.l.b16 %v3345
        %v3507 = vpack.c.b16 %v3428, %v3427
        %v3508 = vpack.c.b16 %v3430, %v3429
        %v3509 = vpack.c.b16 %v3432, %v3431
        %v3510 = vpack.c.b16 %v3434, %v3433
        %v3511 = vpack.c.b16 %v3436, %v3435
        %v3512 = vpack.c.b16 %v3438, %v3437
        %v3513 = vpack.c.b16 %v3440, %v3439
        %v3514 = vpack.c.b16 %v3442, %v3441
        %v3515 = vpack.c.b16 %v3444, %v3443
        %v3516 = vpack.c.b16 %v3446, %v3445
        %v3517 = vpack.c.b16 %v3448, %v3447
        %v3518 = vpack.c.b16 %v3450, %v3449
        %v3519 = vpack.c.b16 %v3452, %v3451
        %v3520 = vpack.c.b16 %v3454, %v3453
        %v3521 = vpack.c.b16 %v3456, %v3455
        %v3522 = vpack.c.b16 %v3458, %v3457
        %v3523 = vpack.c.b16 %v3460, %v3459
        %v3524 = vpack.c.b16 %v3462, %v3461
        %v3525 = vpack.c.b16 %v3464, %v3463
        %v3526 = vpack.c.b16 %v3466, %v3465
        %v3527 = vpack.c.b16 %v3468, %v3467
        %v3528 = vpack.c.b16 %v3470, %v3469
        %v3529 = vpack.c.b16 %v3472, %v3471
        %v3530 = vpack.c.b16 %v3474, %v3473
        %v3531 = vpack.c.b16 %v3476, %v3475
        %v3532 = vpack.c.b16 %v3478, %v3477
        %v3533 = vpack.c.b16 %v3480, %v3479
        %v3534 = vpack.c.b16 %v3482, %v3481
        %v3535 = vpack.c.b16 %v3484, %v3483
        %v3536 = vpack.c.b16 %v3486, %v3485
        %v3537 = vpack.c.b16 %v3488, %v3487
        %v3538 = vpack.c.b16 %v3490, %v3489
        %v3539 = vpack.c.b16 %v3492, %v3491
        %v3540 = vpack.c.b16 %v3494, %v3493
        %v3541 = vpack.c.b16 %v3496, %v3495
        %v3542 = vpack.c.b16 %v3498, %v3497
        %v3543 = vpack.c.b16 %v3500, %v3499
        %v3544 = vpack.c.b16 %v3502, %v3501
        %v3545 = vpack.c.b16 %v3504, %v3503
        %v3546 = vpack.c.b16 %v3506, %v3505
        %3587 = vmatprep.subr.bf16.mxu0 0
        %3588 = vmatpush1.bf16.msra.mxu0 %v3514
        %3589 = vmatprep.subr.bf16.mxu0 0
        %3590 = vmatpush1.bf16.msra.mxu0 %v3513
        %3591 = vmatprep.subr.bf16.mxu0 0
        %3592 = vmatpush1.bf16.msra.mxu0 %v3512
        %3593 = vmatprep.subr.bf16.mxu0 0
        %3594 = vmatpush1.bf16.msra.mxu0 %v3511
        %3595 = vmatprep.subr.bf16.mxu0 0
        %3596 = vmatpush1.bf16.msra.mxu0 %v3510
        %3597 = vmatprep.subr.bf16.mxu0 0
        %3598 = vmatpush1.bf16.msra.mxu0 %v3509
        %3599 = vmatprep.subr.bf16.mxu0 0
        %3600 = vmatpush1.bf16.msra.mxu0 %v3508
        %3601 = vmatprep.subr.bf16.mxu0 0
        %3602 = vmatpush1.bf16.msra.mxu0 %v3507
        %3603 = vmatprep.subr.bf16.mxu0 0
        %3604 = vmatpush2.bf16.msra.mxu0 %v3522
        %3605 = vmatprep.subr.bf16.mxu0 0
        %3606 = vmatpush2.bf16.msra.mxu0 %v3521
        %3607 = vmatprep.subr.bf16.mxu0 0
        %3608 = vmatpush2.bf16.msra.mxu0 %v3520
        %3609 = vmatprep.subr.bf16.mxu0 0
        %3610 = vmatpush2.bf16.msra.mxu0 %v3519
        %3611 = vmatprep.subr.bf16.mxu0 0
        %3612 = vmatpush2.bf16.msra.mxu0 %v3518
        %3613 = vmatprep.subr.bf16.mxu0 0
        %3614 = vmatpush2.bf16.msra.mxu0 %v3517
        %3615 = vmatprep.subr.bf16.mxu0 0
        %3616 = vmatpush2.bf16.msra.mxu0 %v3516
        %3617 = vmatprep.subr.bf16.mxu0 0
        %3618 = vmatpush2.bf16.msra.mxu0 %v3515
        %3619 = vmatprep.mubr.bf16.mxu0 %v3256
        %3620 = vmatmul.mubr.bf16.gmra.mxu0 %v3254
        %v3621 = vpop.f32.mrf.mxu0
        %v3622 = vadd.f32 %v3346, %v3621
        %v3623 = vpop.f32.mrf.mxu0
        %v3624 = vpop.f32.mrf.mxu0
        %v3625 = vpop.f32.mrf.mxu0
        %3626 = vdwg.mxu0
        %3627 = vmatprep.subr.bf16.mxu0 0
        %3628 = vmatpush1.bf16.msra.mxu0 %v3530
        %3629 = vmatprep.subr.bf16.mxu0 0
        %3630 = vmatpush1.bf16.msra.mxu0 %v3529
        %3631 = vmatprep.subr.bf16.mxu0 0
        %3632 = vmatpush1.bf16.msra.mxu0 %v3528
        %3633 = vmatprep.subr.bf16.mxu0 0
        %3634 = vmatpush1.bf16.msra.mxu0 %v3527
        %3635 = vmatprep.subr.bf16.mxu0 0
        %3636 = vmatpush1.bf16.msra.mxu0 %v3526
        %3637 = vmatprep.subr.bf16.mxu0 0
        %3638 = vmatpush1.bf16.msra.mxu0 %v3525
        %3639 = vmatprep.subr.bf16.mxu0 0
        %3640 = vmatpush1.bf16.msra.mxu0 %v3524
        %3641 = vmatprep.subr.bf16.mxu0 0
        %3642 = vmatpush1.bf16.msra.mxu0 %v3523
        %3643 = vmatprep.subr.bf16.mxu0 0
        %3644 = vmatpush2.bf16.msra.mxu0 %v3538
        %3645 = vmatprep.subr.bf16.mxu0 0
        %3646 = vmatpush2.bf16.msra.mxu0 %v3537
        %3647 = vmatprep.subr.bf16.mxu0 0
        %3648 = vmatpush2.bf16.msra.mxu0 %v3536
        %3649 = vmatprep.subr.bf16.mxu0 0
        %3650 = vmatpush2.bf16.msra.mxu0 %v3535
        %3651 = vmatprep.subr.bf16.mxu0 0
        %3652 = vmatpush2.bf16.msra.mxu0 %v3534
        %3653 = vmatprep.subr.bf16.mxu0 0
        %3654 = vmatpush2.bf16.msra.mxu0 %v3533
        %3655 = vmatprep.subr.bf16.mxu0 0
        %3656 = vmatpush2.bf16.msra.mxu0 %v3532
        %3657 = vmatprep.subr.bf16.mxu0 0
        %3658 = vmatpush2.bf16.msra.mxu0 %v3531
        %3659 = vmatprep.mubr.bf16.mxu0 %v3262
        %3660 = vmatmul.mubr.bf16.gmra.mxu0 %v3260
        %v3661 = vpop.f32.mrf.mxu0
        %v3662 = vadd.f32 %v3622, %v3661
        %v3663 = vpop.f32.mrf.mxu0
        %v3664 = vpop.f32.mrf.mxu0
        %v3665 = vpop.f32.mrf.mxu0
        %3666 = vdwg.mxu0
        %3667 = vmatprep.subr.bf16.mxu0 0
        %3668 = vmatpush1.bf16.msra.mxu0 %v3546
        %3669 = vmatprep.subr.bf16.mxu0 0
        %3670 = vmatpush1.bf16.msra.mxu0 %v3545
        %3671 = vmatprep.subr.bf16.mxu0 0
        %3672 = vmatpush1.bf16.msra.mxu0 %v3544
        %3673 = vmatprep.subr.bf16.mxu0 0
        %3674 = vmatpush1.bf16.msra.mxu0 %v3543
        %3675 = vmatprep.subr.bf16.mxu0 0
        %3676 = vmatpush1.bf16.msra.mxu0 %v3542
        %3677 = vmatprep.subr.bf16.mxu0 0
        %3678 = vmatpush1.bf16.msra.mxu0 %v3541
        %3679 = vmatprep.subr.bf16.mxu0 0
        %3680 = vmatpush1.bf16.msra.mxu0 %v3540
        %3681 = vmatprep.subr.bf16.mxu0 0
        %3682 = vmatpush1.bf16.msra.mxu0 %v3539
        %3683 = vmatprep.subr.bf16.mxu0 0
        %3684 = vmatpush2.bf16.msra.mxu0 0
        %3685 = vmatprep.subr.bf16.mxu0 0
        %3686 = vmatpush2.bf16.msra.mxu0 0
        %3687 = vmatprep.subr.bf16.mxu0 0
        %3688 = vmatpush2.bf16.msra.mxu0 0
        %3689 = vmatprep.subr.bf16.mxu0 0
        %3690 = vmatpush2.bf16.msra.mxu0 0
        %3691 = vmatprep.subr.bf16.mxu0 0
        %3692 = vmatpush2.bf16.msra.mxu0 0
        %3693 = vmatprep.subr.bf16.mxu0 0
        %3694 = vmatpush2.bf16.msra.mxu0 0
        %3695 = vmatprep.subr.bf16.mxu0 0
        %3696 = vmatpush2.bf16.msra.mxu0 0
        %3697 = vmatprep.subr.bf16.mxu0 0
        %3698 = vmatpush2.bf16.msra.mxu0 0
        %3699 = vmatprep.mubr.bf16.mxu0 0
        %3700 = vmatmul.mubr.bf16.gmra.mxu0 %v3264
        %v3701 = vpop.f32.mrf.mxu0
        %v3702 = vadd.f32 %v3662, %v3701
        %v3703 = vpop.f32.mrf.mxu0
        %v3704 = vpop.f32.mrf.mxu0
        %v3705 = vpop.f32.mrf.mxu0
        %3706 = vdwg.mxu0
        %v3707 = vmax.f32 %v3702, 0.0
        %v3708 = vpack.c.bf16 %v3707, %v3707
        %v3709 = vld [vmem:[%s7] sm:$0xf]
        %v3710 = vld [vmem:[%s7 + $0x4] sm:$0xf]
        %v3711 = vld [vmem:[%s7 + $0x8] sm:$0xf]
        %v3712 = vld [vmem:[%s7 + $0xc] sm:$0xf]
        %v3713 = vld [vmem:[%s7 + $0x10] sm:$0xf]
        %v3714 = vld [vmem:[%s7 + $0x14] sm:$0xf]
        %v3715 = vld [vmem:[%s7 + $0x18] sm:$0xf]
        %v3716 = vld [vmem:[%s7 + $0x1c] sm:$0xf]
        %v3717 = vld [vmem:[%s7 + $0x20] sm:$0xf]
        %v3718 = vld [vmem:[%s7 + $0x24] sm:$0xf]
        %v3719 = vld [vmem:[%s7 + $0x28] sm:$0xf]
        %v3720 = vld [vmem:[%s7 + $0x2c] sm:$0xf]
        %v3721 = vld [vmem:[%s7 + $0x30] sm:$0xf]
        %v3722 = vld [vmem:[%s7 + $0x34] sm:$0xf]
        %v3723 = vld [vmem:[%s7 + $0x38] sm:$0xf]
        %v3724 = vld [vmem:[%s7 + $0x3c] sm:$0xf]
        %v3725 = vld [vmem:[%s8] sm:$0x1]
        %v3742 = vunpack.c.l.b16 %v3709
        %v3743 = vunpack.c.l.b16 %v3710
        %v3744 = vunpack.c.l.b16 %v3711
        %v3745 = vunpack.c.l.b16 %v3712
        %v3746 = vunpack.c.l.b16 %v3713
        %v3747 = vunpack.c.l.b16 %v3714
        %v3748 = vunpack.c.l.b16 %v3715
        %v3749 = vunpack.c.l.b16 %v3716
        %v3750 = vunpack.c.l.b16 %v3717
        %v3751 = vunpack.c.l.b16 %v3718
        %v3752 = vunpack.c.l.b16 %v3719
        %v3753 = vunpack.c.l.b16 %v3720
        %v3754 = vunpack.c.l.b16 %v3721
        %v3755 = vunpack.c.l.b16 %v3722
        %v3756 = vunpack.c.l.b16 %v3723
        %v3757 = vunpack.c.l.b16 %v3724
        %v3758 = vpack.c.b16 %v3743, %v3742
        %v3759 = vpack.c.b16 %v3745, %v3744
        %v3760 = vpack.c.b16 %v3747, %v3746
        %v3761 = vpack.c.b16 %v3749, %v3748
        %v3762 = vpack.c.b16 %v3751, %v3750
        %v3763 = vpack.c.b16 %v3753, %v3752
        %v3764 = vpack.c.b16 %v3755, %v3754
        %v3765 = vpack.c.b16 %v3757, %v3756
        %3774 = vmatprep.subr.bf16.mxu0 0
        %3775 = vmatpush1.bf16.msra.mxu0 %v3765
        %3776 = vmatprep.subr.bf16.mxu0 0
        %3777 = vmatpush1.bf16.msra.mxu0 %v3764
        %3778 = vmatprep.subr.bf16.mxu0 0
        %3779 = vmatpush1.bf16.msra.mxu0 %v3763
        %3780 = vmatprep.subr.bf16.mxu0 0
        %3781 = vmatpush1.bf16.msra.mxu0 %v3762
        %3782 = vmatprep.subr.bf16.mxu0 0
        %3783 = vmatpush1.bf16.msra.mxu0 %v3761
        %3784 = vmatprep.subr.bf16.mxu0 0
        %3785 = vmatpush1.bf16.msra.mxu0 %v3760
        %3786 = vmatprep.subr.bf16.mxu0 0
        %3787 = vmatpush1.bf16.msra.mxu0 %v3759
        %3788 = vmatprep.subr.bf16.mxu0 0
        %3789 = vmatpush1.bf16.msra.mxu0 %v3758
        %3790 = vmatprep.subr.bf16.mxu0 0
        %3791 = vmatpush2.bf16.msra.mxu0 0
        %3792 = vmatprep.subr.bf16.mxu0 0
        %3793 = vmatpush2.bf16.msra.mxu0 0
        %3794 = vmatprep.subr.bf16.mxu0 0
        %3795 = vmatpush2.bf16.msra.mxu0 0
        %3796 = vmatprep.subr.bf16.mxu0 0
        %3797 = vmatpush2.bf16.msra.mxu0 0
        %3798 = vmatprep.subr.bf16.mxu0 0
        %3799 = vmatpush2.bf16.msra.mxu0 0
        %3800 = vmatprep.subr.bf16.mxu0 0
        %3801 = vmatpush2.bf16.msra.mxu0 0
        %3802 = vmatprep.subr.bf16.mxu0 0
        %3803 = vmatpush2.bf16.msra.mxu0 0
        %3804 = vmatprep.subr.bf16.mxu0 0
        %3805 = vmatpush2.bf16.msra.mxu0 0
        %3806 = vmatprep.mubr.bf16.mxu0 0
        %3807 = vmatmul.mubr.bf16.gmra.mxu0 %v3708
        %v3808 = vpop.f32.mrf.mxu0
        %v3809 = vadd.f32 %v3725, %v3808
        %v3810 = vpop.f32.mrf.mxu0
        %v3811 = vpop.f32.mrf.mxu0
        %v3812 = vpop.f32.mrf.mxu0
        %3813 = vdwg.mxu0
        %v3814 = vmax.f32 %v3809, 0.0
        %v3815 = vpack.c.bf16 %v3814, %v3814
        %v3816 = vld [vmem:[#allocation7] sm:$0xf]
        %v3817 = vld [vmem:[#allocation7 + $0x4] sm:$0xf]
        %v3818 = vld [vmem:[#allocation7 + $0x8] sm:$0xf]
        %v3819 = vld [vmem:[#allocation7 + $0xc] sm:$0xf]
        %v3820 = vld [vmem:[#allocation7 + $0x10] sm:$0xf]
        %v3821 = vld [vmem:[#allocation7 + $0x14] sm:$0xf]
        %v3822 = vld [vmem:[#allocation7 + $0x18] sm:$0xf]
        %v3823 = vld [vmem:[#allocation7 + $0x1c] sm:$0xf]
        %v3824 = vld [vmem:[#allocation7 + $0x20] sm:$0xf]
        %v3825 = vld [vmem:[#allocation7 + $0x24] sm:$0xf]
        %v3826 = vld [vmem:[#allocation7 + $0x28] sm:$0xf]
        %v3827 = vld [vmem:[#allocation7 + $0x2c] sm:$0xf]
        %v3828 = vld [vmem:[#allocation7 + $0x30] sm:$0xf]
        %v3829 = vld [vmem:[#allocation7 + $0x34] sm:$0xf]
        %v3830 = vld [vmem:[#allocation7 + $0x38] sm:$0xf]
        %v3831 = vld [vmem:[#allocation7 + $0x3c] sm:$0xf]
        %v3832 = vld [vmem:[%s10] sm:$0x1]
        %v3849 = vunpack.c.l.b16 %v3816
        %v3850 = vunpack.c.l.b16 %v3817
        %v3851 = vunpack.c.l.b16 %v3818
        %v3852 = vunpack.c.l.b16 %v3819
        %v3853 = vunpack.c.l.b16 %v3820
        %v3854 = vunpack.c.l.b16 %v3821
        %v3855 = vunpack.c.l.b16 %v3822
        %v3856 = vunpack.c.l.b16 %v3823
        %v3857 = vunpack.c.l.b16 %v3824
        %v3858 = vunpack.c.l.b16 %v3825
        %v3859 = vunpack.c.l.b16 %v3826
        %v3860 = vunpack.c.l.b16 %v3827
        %v3861 = vunpack.c.l.b16 %v3828
        %v3862 = vunpack.c.l.b16 %v3829
        %v3863 = vunpack.c.l.b16 %v3830
        %v3864 = vunpack.c.l.b16 %v3831
        %v3865 = vpack.c.b16 %v3850, %v3849
        %v3866 = vpack.c.b16 %v3852, %v3851
        %v3867 = vpack.c.b16 %v3854, %v3853
        %v3868 = vpack.c.b16 %v3856, %v3855
        %v3869 = vpack.c.b16 %v3858, %v3857
        %v3870 = vpack.c.b16 %v3860, %v3859
        %v3871 = vpack.c.b16 %v3862, %v3861
        %v3872 = vpack.c.b16 %v3864, %v3863
        %3881 = vmatprep.subr.bf16.mxu0 0
        %3882 = vmatpush1.bf16.msra.mxu0 %v3872
        %3883 = vmatprep.subr.bf16.mxu0 0
        %3884 = vmatpush1.bf16.msra.mxu0 %v3871
        %3885 = vmatprep.subr.bf16.mxu0 0
        %3886 = vmatpush1.bf16.msra.mxu0 %v3870
        %3887 = vmatprep.subr.bf16.mxu0 0
        %3888 = vmatpush1.bf16.msra.mxu0 %v3869
        %3889 = vmatprep.subr.bf16.mxu0 0
        %3890 = vmatpush1.bf16.msra.mxu0 %v3868
        %3891 = vmatprep.subr.bf16.mxu0 0
        %3892 = vmatpush1.bf16.msra.mxu0 %v3867
        %3893 = vmatprep.subr.bf16.mxu0 0
        %3894 = vmatpush1.bf16.msra.mxu0 %v3866
        %3895 = vmatprep.subr.bf16.mxu0 0
        %3896 = vmatpush1.bf16.msra.mxu0 %v3865
        %3897 = vmatprep.subr.bf16.mxu0 0
        %3898 = vmatpush2.bf16.msra.mxu0 0
        %3899 = vmatprep.subr.bf16.mxu0 0
        %3900 = vmatpush2.bf16.msra.mxu0 0
        %3901 = vmatprep.subr.bf16.mxu0 0
        %3902 = vmatpush2.bf16.msra.mxu0 0
        %3903 = vmatprep.subr.bf16.mxu0 0
        %3904 = vmatpush2.bf16.msra.mxu0 0
        %3905 = vmatprep.subr.bf16.mxu0 0
        %3906 = vmatpush2.bf16.msra.mxu0 0
        %3907 = vmatprep.subr.bf16.mxu0 0
        %3908 = vmatpush2.bf16.msra.mxu0 0
        %3909 = vmatprep.subr.bf16.mxu0 0
        %3910 = vmatpush2.bf16.msra.mxu0 0
        %3911 = vmatprep.subr.bf16.mxu0 0
        %3912 = vmatpush2.bf16.msra.mxu0 0
        %3913 = vmatprep.mubr.bf16.mxu0 0
        %3914 = vmatmul.mubr.bf16.gmra.mxu0 %v3815
        %v3915 = vpop.f32.mrf.mxu0
        %v3916 = vadd.f32 %v3832, %v3915
        %v3917 = vpop.f32.mrf.mxu0
        %v3918 = vpop.f32.mrf.mxu0
        %v3919 = vpop.f32.mrf.mxu0
        %3920 = vdwg.mxu0
        %vm3921 = vcmask 1040384
        %v3922 = vsel %vm3921, %v3916, -inf
        %3923 = vmax.xlane.f32.xlu0 %v3922
        %v3924 = vpop.xlane.xlu0 %3923
        %v3925 = vsub.f32 %v3916, %v3924
        %v3926 = vmul.f32 %v3925, 1.442695
        %v3927 = vpow.pop %v3926
        %v3928 = vsel %vm3921, %v3927, 0.0
        %3929 = vadd.xlane.f32.xlu0 %v3928
        %v3930 = vpop.xlane.xlu0 %3929
        %v3931 = vrcp.pop %v3930
        %v3932 = vmul.f32 %v3927, %v3931
        %3933 = vst [vmem:[%s423] sm:$0x1] %v3932
        %s3934 = sand.u32 %s271, 1
        %s3935 = scalar_lea.sflag [#allocation4], %s3934
        %s3936 = sand.u32 %s271, 1
        %s3937 = scalar_lea.vmem [#allocation8], %s3936
        // Predicated region
        $region77: #{classifier_net.1} parent=63 // pred_check
          %p3938 = pneg %p281
        $region78: #{classifier_net.1} parent=63 // pred_check_branch
          %3940 = sbr.rel (%p3938) target = $region80
        $region79: #{classifier_net.1} parent=63 // pred_region
          %s3942 = ssub.s32 16, 16
          %3943 = vsyncadd %s3935, %s3942
          %s3944 = smul.addr %s27, 16
          %s3945 = scalar_lea.hbm %s11, %s3944
          %s3947 = sshll.u32 %s3937, 4
          %s3948 = int_to_ptr.vmem [resolvable:$true] %s3947
          %3950 = dma.vmem_to_hbm [thread:$0]  %s3948, 16, %s3945, %s3935
        $region80: #{classifier_net.1} parent=63 // pred_fallthru
          _
      $region64: #{classifier_net.1} parent=5 // pred_fallthru
        _
      %p3951 = scmp.le.s32.totalorder 2, %s22
      // Predicated region
      $region81: #{classifier_net.1} parent=5 // pred_check
        %p3952 = pneg %p3951
      $region82: #{classifier_net.1} parent=5 // pred_check_branch
        %3954 = sbr.rel (%p3952) target = $region84
      $region83: #{classifier_net.1} parent=5 // pred_region
        %s3955 = ssub.s32 %s22, 2
        // Predicated region
        $region85: #{classifier_net.1} parent=83 // pred_check
          %p3956 = pneg %p287
        $region86: #{classifier_net.1} parent=83 // pred_check_branch
          %3958 = sbr.rel (%p3956) target = $region88
        $region87: #{classifier_net.1} parent=83 // pred_region
          %s3959 = sand.u32 %s272, 1
          %s3960 = scalar_lea.sflag [#allocation4], %s3959
          %s3961 = sand.u32 %s272, 1
          %s3962 = scalar_lea.vmem [#allocation8], %s3961
          %3963 = dma.done %s3960, 16
        $region88: #{classifier_net.1} parent=83 // pred_fallthru
          _
      $region84: #{classifier_net.1} parent=5 // pred_fallthru
        _
    $region6: #{classifier_net.1} parent=1 // loop_footer
      %s26 = sadd.s32 1, %s22
    $region7: #{classifier_net.1} parent=1 // loop_footer_branch
      %21 = sbr.rel target = $region3
    $region8: #{classifier_net.1} parent=1 // loop_exit
      _
    %3964 = vsyncpa [#allocation3], 1
    %s3965 = scalar_lea.sflag [#allocation3], 1
    %3966 = vsyncpa %s3965, 1
    %3967 = vsyncpa [#allocation6], 1
    %3968 = vsyncpa [#allocation4], 1
    %s3969 = scalar_lea.sflag [#allocation4], 1
    %3970 = vsyncpa %s3969, 1

</llo_original>
